<compile_context>
chip_gen: v7x
topology: tpu7x:2x2x1
jax: 0.10.0
libtpu: 0.0.40
codegen_flags: <defaults>
</compile_context>

<pallas_src>
import functools

import jax
import jax.numpy as jnp
from jax import lax
from jax.experimental import pallas as pl
from jax.experimental.pallas import tpu as pltpu

# Under physical VMEM on every target (v5e/v6e: 128 MiB, v7x: 64 MiB) while
# well above the small scoped defaults (16 / 32 / 32 MiB).
_VMEM_LIMIT = 48 * 1024 * 1024


# ---------------------------------------------------------------------------
# Pallas kernels
# ---------------------------------------------------------------------------
def _mm_bias_lrelu_kernel(a_ref, w_ref, b_ref, o_ref, *, slope):
    """o = LeakyReLU(a @ w + b); one M tile per grid step (full K per step)."""
    y = jnp.dot(a_ref[...], w_ref[...],
                preferred_element_type=jnp.float32) + b_ref[...]
    o_ref[...] = jnp.where(y >= 0, y, slope * y).astype(o_ref.dtype)


def _mm_bn_lrelu_kernel(a_ref, w_ref, b_ref, g_ref, beta_ref, o_ref, acc_ref,
                        *, eps, slope):
    """o = LeakyReLU(BN(a @ w + b)), K-tiled; fp32 accumulation in VMEM scratch.

    BN uses per-channel training-mode statistics over ALL rows, so M stays a
    single block (required for correct batch statistics).
    """
    k = pl.program_id(0)

    @pl.when(k == 0)
    def _():
        acc_ref[...] = jnp.broadcast_to(b_ref[...], acc_ref.shape)

    acc_ref[...] += jnp.dot(a_ref[...], w_ref[...],
                            preferred_element_type=jnp.float32)

    @pl.when(k == pl.num_programs(0) - 1)
    def _():
        y = acc_ref[...]
        mean = jnp.mean(y, axis=0, keepdims=True)
        var = jnp.mean(jnp.square(y - mean), axis=0, keepdims=True)  # biased
        y = (y - mean) * lax.rsqrt(var + eps)
        y = y * g_ref[...] + beta_ref[...]
        o_ref[...] = jnp.where(y >= 0, y, slope * y).astype(o_ref.dtype)


def _fc_bn_lrelu_fc_kernel(a_ref, w1_ref, b1_ref, g_ref, beta_ref, w2_ref,
                           o_ref, acc_ref, *, eps, slope):
    """partial = LeakyReLU(BN(a @ w1_tile + b1_tile)) @ w2_tile.

    Grid = (H tiles ["parallel"], K tiles ["arbitrary"]).  BN1d stats are
    per-feature, so H tiles are independent; partial logits per H tile are
    summed by the wrapper.  The hidden activation never leaves VMEM.
    """
    k = pl.program_id(1)

    @pl.when(k == 0)
    def _():
        acc_ref[...] = jnp.broadcast_to(b1_ref[...], acc_ref.shape)

    acc_ref[...] += jnp.dot(a_ref[...], w1_ref[...],
                            preferred_element_type=jnp.float32)

    @pl.when(k == pl.num_programs(1) - 1)
    def _():
        y = acc_ref[...]
        mean = jnp.mean(y, axis=0, keepdims=True)
        var = jnp.mean(jnp.square(y - mean), axis=0, keepdims=True)  # biased
        y = (y - mean) * lax.rsqrt(var + eps)
        y = y * g_ref[...] + beta_ref[...]
        y = jnp.where(y >= 0, y, slope * y)            # fp32 hidden
        w2 = w2_ref[...]                               # [O, block_h] fp32
        if w2.shape[0] == 1:
            # N=1 output: VPU multiply + lane reduce, fully fp32, no MXU pass.
            logits = jnp.sum(y * w2, axis=1, keepdims=True)
        else:
            logits = lax.dot_general(y, w2, (((1,), (1,)), ((), ())),
                                     preferred_element_type=jnp.float32)
        o_ref[...] = logits


# ---------------------------------------------------------------------------
# Pallas wrappers
# ---------------------------------------------------------------------------
def _pick_block_m(M, cap):
    """Largest divisor of M <= cap that is a multiple of 8 (else full M)."""
    if M <= cap:
        return M
    for bm in range(cap - cap % 8, 7, -8):
        if M % bm == 0:
            return bm
    return M  # fallback: single whole-M block (correct; only hit for odd M)


def _largest_lane_divisor(K, cap=1024):
    """Largest 128-multiple divisor of K that is <= cap (else full K)."""
    b = min(cap - cap % 128, K)
    for bk in range(b, 127, -128):
        if K % bk == 0:
            return bk
    return K


def conv1_matmul_lrelu(a, w, b, *, slope=0.2, block_m_cap=4096):
    """a: [M,32] bf16 (two NHWC pixels per row), w: [32,128] bf16 block-diag,
    b: [1,128] f32 -> [M,128] bf16 (lane-dense stores)."""
    M, K = a.shape
    _, N = w.shape
    block_m = _pick_block_m(M, block_m_cap)
    kernel = functools.partial(_mm_bias_lrelu_kernel, slope=slope)
    return pl.pallas_call(
        kernel,
        out_shape=jax.ShapeDtypeStruct((M, N), jnp.bfloat16),
        grid_spec=pltpu.PrefetchScalarGridSpec(
            num_scalar_prefetch=0,
            grid=(M // block_m,),
            in_specs=[
                pl.BlockSpec((block_m, K), lambda m: (m, 0)),
                pl.BlockSpec((K, N), lambda m: (0, 0)),
                pl.BlockSpec((1, N), lambda m: (0, 0)),
            ],
            out_specs=pl.BlockSpec((block_m, N), lambda m: (m, 0)),
        ),
        compiler_params=pltpu.CompilerParams(
            dimension_semantics=("parallel",)),
    )(a, w, b)


def conv2_matmul_bn_lrelu(a, w, b, gamma, beta, *, block_k=256,
                          eps=1e-5, slope=0.2):
    """a: [M,K] bf16, w: [K,N] bf16 -> LeakyReLU(BN(a @ w + b)) [M,N] bf16."""
    M, K = a.shape
    _, N = w.shape
    if K % block_k != 0:
        block_k = K
    nk = K // block_k
    # TODO(synk): for very large batch on v7x (64 MiB VMEM), switch to M-tiled
    # two-pass BN (sum/sumsq scratch) so the whole-M residency goes away.
    kernel = functools.partial(_mm_bn_lrelu_kernel, eps=eps, slope=slope)
    return pl.pallas_call(
        kernel,
        out_shape=jax.ShapeDtypeStruct((M, N), jnp.bfloat16),
        grid_spec=pltpu.PrefetchScalarGridSpec(
            num_scalar_prefetch=0,
            grid=(nk,),
            in_specs=[
                pl.BlockSpec((M, block_k), lambda k: (0, k)),
                pl.BlockSpec((block_k, N), lambda k: (k, 0)),
                pl.BlockSpec((1, N), lambda k: (0, 0)),
                pl.BlockSpec((1, N), lambda k: (0, 0)),
                pl.BlockSpec((1, N), lambda k: (0, 0)),
            ],
            out_specs=pl.BlockSpec((M, N), lambda k: (0, 0)),
            scratch_shapes=[pltpu.VMEM((M, N), jnp.float32)],
        ),
        compiler_params=pltpu.CompilerParams(
            dimension_semantics=("arbitrary",),
            vmem_limit_bytes=_VMEM_LIMIT),
    )(a, w, b, gamma, beta)


def fc_bn_lrelu_fc(a, w1, b1, gamma, beta, w2t, b2, *, block_h=512,
                   eps=1e-5, slope=0.2):
    """a:[M,K] bf16, w1:[K,H] bf16, w2t:[O,H] f32, b2:[1,O] f32 -> [M,O] f32."""
    M, K = a.shape
    _, H = w1.shape
    O = w2t.shape[0]
    block_k = _largest_lane_divisor(K)           # 896 for K=6272
    nk = K // block_k
    if H % block_h != 0 or block_h % 128 != 0:
        block_h = H
    nh = H // block_h

    kernel = functools.partial(_fc_bn_lrelu_fc_kernel, eps=eps, slope=slope)
    partials = pl.pallas_call(
        kernel,
        out_shape=jax.ShapeDtypeStruct((nh, M, O), jnp.float32),
        grid_spec=pltpu.PrefetchScalarGridSpec(
            num_scalar_prefetch=0,
            grid=(nh, nk),
            in_specs=[
                pl.BlockSpec((M, block_k), lambda h, k: (0, k)),
                pl.BlockSpec((block_k, block_h), lambda h, k: (k, h)),
                pl.BlockSpec((1, block_h), lambda h, k: (0, h)),
                pl.BlockSpec((1, block_h), lambda h, k: (0, h)),
                pl.BlockSpec((1, block_h), lambda h, k: (0, h)),
                pl.BlockSpec((O, block_h), lambda h, k: (0, h)),
            ],
            out_specs=pl.BlockSpec((None, M, O), lambda h, k: (h, 0, 0)),
            scratch_shapes=[pltpu.VMEM((M, block_h), jnp.float32)],
        ),
        compiler_params=pltpu.CompilerParams(
            dimension_semantics=("parallel", "arbitrary"),
            vmem_limit_bytes=_VMEM_LIMIT),
    )(a, w1, b1, gamma, beta, w2t)
    return jnp.sum(partials, axis=0) + b2


# ---------------------------------------------------------------------------
# Glue: NHWC im2col (pure layout plumbing, stays in the activation dtype)
# ---------------------------------------------------------------------------
def im2col_nhwc(x, kh, kw, stride, pad):
    """x: [B,H,W,C] -> ([B*Ho*Wo, kh*kw*C], Ho, Wo); columns in (kh,kw,C)."""
    B, H, W, C = x.shape
    Ho = (H + 2 * pad - kh) // stride + 1
    Wo = (W + 2 * pad - kw) // stride + 1
    xp = jnp.pad(x, ((0, 0), (pad, pad), (pad, pad), (0, 0)))
    patches = []
    for i in range(kh):
        for j in range(kw):
            patches.append(
                xp[:, i:i + stride * Ho:stride, j:j + stride * Wo:stride, :])
    cols = jnp.stack(patches, axis=3)                 # [B, Ho, Wo, kh*kw, C]
    return cols.reshape(B * Ho * Wo, kh * kw * C), Ho, Wo


# ---------------------------------------------------------------------------
# Parameters: created in PyTorch layout, converted ONCE to kernel layout
# ---------------------------------------------------------------------------
def init_params(key, input_dim=1, output_dim=1):
    ks = jax.random.split(key, 4)

    def winit(k, shape, fan_in):
        return jax.random.normal(k, shape, jnp.float32) / jnp.sqrt(fan_in)

    # PyTorch-layout weights.
    conv1_w_t = winit(ks[0], (64, input_dim, 4, 4), input_dim * 16)
    conv2_w_t = winit(ks[1], (128, 64, 4, 4), 64 * 16)
    fc1_w_t = winit(ks[2], (1024, 128 * 7 * 7), 128 * 7 * 7)
    fc2_w_t = winit(ks[3], (output_dim, 1024), 1024)

    def conv_w_to_cols(w):   # [Cout, Cin, kh, kw] -> [kh*kw*Cin, Cout]
        Cout, Cin, kh, kw = w.shape
        return w.transpose(2, 3, 1, 0).reshape(kh * kw * Cin, Cout)

    p = {}
    # conv1: pack two adjacent output pixels per matmul row -> lane-dense out.
    w1c = conv_w_to_cols(conv1_w_t)                                  # [16, 64]
    z = jnp.zeros_like(w1c)
    w1_big = jnp.concatenate(
        [jnp.concatenate([w1c, z], axis=1),
         jnp.concatenate([z, w1c], axis=1)], axis=0)                 # [32, 128]
    b1c = jnp.zeros((1, 64), jnp.float32)
    p["conv1_w"] = w1_big.astype(jnp.bfloat16)
    p["conv1_b"] = jnp.tile(b1c, (1, 2))                             # [1, 128]

    p["conv2_w"] = conv_w_to_cols(conv2_w_t).astype(jnp.bfloat16)    # [1024,128]
    p["conv2_b"] = jnp.zeros((1, 128), jnp.float32)
    p["bn2_g"] = jnp.ones((1, 128), jnp.float32)
    p["bn2_b"] = jnp.zeros((1, 128), jnp.float32)

    # fc1: PyTorch input index is (c, h, w); our flatten is NHWC (h, w, c),
    # so permute the weight rows once here instead of transposing activations.
    fc1_w = fc1_w_t.reshape(1024, 128, 7, 7).transpose(2, 3, 1, 0)
    p["fc1_w"] = fc1_w.reshape(7 * 7 * 128, 1024).astype(jnp.bfloat16)  # [6272,1024]
    p["fc1_b"] = jnp.zeros((1, 1024), jnp.float32)
    p["bn3_g"] = jnp.ones((1, 1024), jnp.float32)
    p["bn3_b"] = jnp.zeros((1, 1024), jnp.float32)

    # fc2 stays fp32 [O, H]: the N=1 product runs on the VPU in fp32.
    p["fc2_wt"] = fc2_w_t.astype(jnp.float32)                        # [O, 1024]
    p["fc2_b"] = jnp.zeros((1, output_dim), jnp.float32)
    return p


# ---------------------------------------------------------------------------
# Forward pass (mirrors Discriminator.forward, training-mode BN)
# ---------------------------------------------------------------------------
def discriminator_forward(params, x_nchw):
    B = x_nchw.shape[0]
    # Single entry transpose NCHW -> NHWC (C=1: effectively a reshape); cast
    # to bf16 once so every downstream activation streams HBM at half width.
    x = jnp.transpose(x_nchw, (0, 2, 3, 1)).astype(jnp.bfloat16)

    # conv1 + LeakyReLU(0.2): packed lane-dense matmul, parallel over M tiles.
    cols1, Ho1, Wo1 = im2col_nhwc(x, 4, 4, 2, 1)            # [B*14*14, 16] bf16
    cols1p = cols1.reshape(-1, 32)                          # two pixels / row
    h1 = conv1_matmul_lrelu(cols1p, params["conv1_w"], params["conv1_b"])
    h1 = h1.reshape(B, Ho1, Wo1, 64)                        # NHWC bf16

    # conv2 + BatchNorm2d(128) + LeakyReLU(0.2): one fused, K-tiled kernel.
    cols2, Ho2, Wo2 = im2col_nhwc(h1, 4, 4, 2, 1)           # [B*7*7, 1024] bf16
    h2 = conv2_matmul_bn_lrelu(cols2, params["conv2_w"], params["conv2_b"],
                               params["bn2_g"], params["bn2_b"])  # [B*49,128] bf16

    # Flatten in NHWC order (pure reshape); fc1's rows were permuted at init
    # so this matches PyTorch's x.view(-1, 128*7*7) semantics.
    flat = h2.reshape(B, Ho2 * Wo2 * 128)                   # [B, 6272] bf16

    # fc1 + BatchNorm1d(1024) + LeakyReLU(0.2) + fc2 -> logits (single kernel,
    # H split into "parallel" tiles; fc2 on VPU in fp32).
    out = fc_bn_lrelu_fc(flat, params["fc1_w"], params["fc1_b"],
                         params["bn3_g"], params["bn3_b"],
                         params["fc2_wt"], params["fc2_b"])
    return out


# ---------------------------------------------------------------------------
if __name__ == "__main__":
    key = jax.random.PRNGKey(0)
    pkey, xkey = jax.random.split(key)

    params = init_params(pkey, input_dim=1, output_dim=1)
    # fc layer requires 7x7 spatial after two stride-2 convs => 28x28 input.
    x = jax.random.normal(xkey, (2, 1, 28, 28), jnp.float32)  # NCHW like PyTorch

    fwd = jax.jit(discriminator_forward)
    out = fwd(params, x)
    jax.block_until_ready(out)

    assert out.shape == (2, 1), out.shape
    assert out.dtype == jnp.float32
    print("KERNEL_OK")
</pallas_src>

<mosaic_0001>
module attributes {stable_mosaic.version = 11 : i64} {
  func.func @_mm_bias_lrelu_kernel(%arg0: i32, %arg1: memref<196x32xbf16, #tpu.memory_space<vmem>>, %arg2: memref<32x128xbf16, #tpu.memory_space<vmem>>, %arg3: memref<1x128xf32, #tpu.memory_space<vmem>>, %arg4: memref<196x128xbf16, #tpu.memory_space<vmem>>) attributes {dimension_semantics = [#tpu.dimension_semantics<parallel>], iteration_bounds = array<i64: 1>, scalar_prefetch = 0 : i64, scratch_operands = 0 : i64, tpu.core_type = #tpu.core_type<tc>, window_params = [{transform_indices = @transform_0, window_bounds = array<i64: 196, 32>}, {pipeline_mode = #tpu.pipeline_mode<synchronous>, transform_indices = @transform_1, window_bounds = array<i64: 32, 128>}, {pipeline_mode = #tpu.pipeline_mode<synchronous>, transform_indices = @transform_2, window_bounds = array<i64: 1, 128>}, {transform_indices = @transform_3, window_bounds = array<i64: 196, 128>}]} {
    %c0 = arith.constant 0 : index
    %c0_0 = arith.constant 0 : index
    %0 = vector.load %arg1[%c0, %c0_0] : memref<196x32xbf16, #tpu.memory_space<vmem>>, vector<196x32xbf16>
    %c0_1 = arith.constant 0 : index
    %c0_2 = arith.constant 0 : index
    %1 = vector.load %arg2[%c0_1, %c0_2] : memref<32x128xbf16, #tpu.memory_space<vmem>>, vector<32x128xbf16>
    %cst = arith.constant dense<0.000000e+00> : vector<196x128xf32>
    %2 = tpu.matmul %0, %1, %cst {dimension_numbers = #tpu.dot_dimension_numbers<[1], [0], [0], [1], [0, 0, 1, 1], [], []>} : vector<196x32xbf16>, vector<32x128xbf16>, vector<196x128xf32> -> vector<196x128xf32>
    %c0_3 = arith.constant 0 : index
    %c0_4 = arith.constant 0 : index
    %3 = vector.load %arg3[%c0_3, %c0_4] : memref<1x128xf32, #tpu.memory_space<vmem>>, vector<1x128xf32>
    %4 = vector.broadcast %3 : vector<1x128xf32> to vector<196x128xf32>
    %5 = arith.addf %2, %4 : vector<196x128xf32>
    %cst_5 = arith.constant 0.000000e+00 : f32
    %6 = vector.broadcast %cst_5 : f32 to vector<196x128xf32>
    %7 = arith.cmpf oge, %5, %6 : vector<196x128xf32>
    %cst_6 = arith.constant 2.000000e-01 : f32
    %8 = vector.broadcast %cst_6 : f32 to vector<196x128xf32>
    %9 = arith.mulf %8, %5 : vector<196x128xf32>
    %10 = arith.select %7, %5, %9 : vector<196x128xi1>, vector<196x128xf32>
    %11 = arith.truncf %10 : vector<196x128xf32> to vector<196x128xbf16>
    %c0_7 = arith.constant 0 : index
    %c0_8 = arith.constant 0 : index
    %12 = vector.load %arg4[%c0_7, %c0_8] : memref<196x128xbf16, #tpu.memory_space<vmem>>, vector<196x128xbf16>
    tpu.vector_store %arg4[%c0_7, %c0_8], %11 {strides = array<i32>} : memref<196x128xbf16, #tpu.memory_space<vmem>>, vector<196x128xbf16>,
    return
  }
  func.func @transform_0(%arg0: i32) -> (i32, i32) {
    %c0_i32 = arith.constant 0 : i32
    %c0_i32_0 = arith.constant 0 : i32
    return %arg0, %c0_i32 : i32, i32
  }
  func.func @transform_1(%arg0: i32) -> (i32, i32) {
    %c0_i32 = arith.constant 0 : i32
    %c0_i32_0 = arith.constant 0 : i32
    %c0_i32_1 = arith.constant 0 : i32
    return %c0_i32, %c0_i32_0 : i32, i32
  }
  func.func @transform_2(%arg0: i32) -> (i32, i32) {
    %c0_i32 = arith.constant 0 : i32
    %c0_i32_0 = arith.constant 0 : i32
    %c0_i32_1 = arith.constant 0 : i32
    return %c0_i32, %c0_i32_0 : i32, i32
  }
  func.func @transform_3(%arg0: i32) -> (i32, i32) {
    %c0_i32 = arith.constant 0 : i32
    %c0_i32_0 = arith.constant 0 : i32
    return %arg0, %c0_i32 : i32, i32
  }
}

module attributes {stable_mosaic.version = 11 : i64} {
  func.func @_mm_bn_lrelu_kernel(%arg0: i32, %arg1: memref<98x256xbf16, #tpu.memory_space<vmem>>, %arg2: memref<256x128xbf16, #tpu.memory_space<vmem>>, %arg3: memref<1x128xf32, #tpu.memory_space<vmem>>, %arg4: memref<1x128xf32, #tpu.memory_space<vmem>>, %arg5: memref<1x128xf32, #tpu.memory_space<vmem>>, %arg6: memref<98x128xbf16, #tpu.memory_space<vmem>>, %arg7: memref<98x128xf32, #tpu.memory_space<vmem>>) attributes {dimension_semantics = [#tpu.dimension_semantics<arbitrary>], iteration_bounds = array<i64: 4>, scalar_prefetch = 0 : i64, scratch_operands = 1 : i64, tpu.core_type = #tpu.core_type<tc>, window_params = [{transform_indices = @transform_0, window_bounds = array<i64: 98, 256>}, {transform_indices = @transform_1, window_bounds = array<i64: 256, 128>}, {pipeline_mode = #tpu.pipeline_mode<synchronous>, transform_indices = @transform_2, window_bounds = array<i64: 1, 128>}, {pipeline_mode = #tpu.pipeline_mode<synchronous>, transform_indices = @transform_3, window_bounds = array<i64: 1, 128>}, {pipeline_mode = #tpu.pipeline_mode<synchronous>, transform_indices = @transform_4, window_bounds = array<i64: 1, 128>}, {pipeline_mode = #tpu.pipeline_mode<synchronous>, transform_indices = @transform_5, window_bounds = array<i64: 98, 128>}]} {
    %c0_i32 = arith.constant 0 : i32
    %0 = arith.cmpi eq, %arg0, %c0_i32 : i32
    %1 = arith.extui %0 : i1 to i32
    %c0_i32_0 = arith.constant 0 : i32
    %2 = arith.cmpi ne, %1, %c0_i32_0 : i32
    scf.if %2 {
      %c0_9 = arith.constant 0 : index
      %c0_10 = arith.constant 0 : index
      %12 = vector.load %arg3[%c0_9, %c0_10] : memref<1x128xf32, #tpu.memory_space<vmem>>, vector<1x128xf32>
      %13 = vector.shape_cast %12 : vector<1x128xf32> to vector<1x128xf32>
      %14 = vector.broadcast %13 : vector<1x128xf32> to vector<98x128xf32>
      %c0_11 = arith.constant 0 : index
      %c0_12 = arith.constant 0 : index
      %15 = vector.load %arg7[%c0_11, %c0_12] : memref<98x128xf32, #tpu.memory_space<vmem>>, vector<98x128xf32>
      tpu.vector_store %arg7[%c0_11, %c0_12], %14 {strides = array<i32>} : memref<98x128xf32, #tpu.memory_space<vmem>>, vector<98x128xf32>,
    } else {
    }
    %c0 = arith.constant 0 : index
    %c0_1 = arith.constant 0 : index
    %3 = vector.load %arg7[%c0, %c0_1] : memref<98x128xf32, #tpu.memory_space<vmem>>, vector<98x128xf32>
    %c0_2 = arith.constant 0 : index
    %c0_3 = arith.constant 0 : index
    %4 = vector.load %arg1[%c0_2, %c0_3] : memref<98x256xbf16, #tpu.memory_space<vmem>>, vector<98x256xbf16>
    %c0_4 = arith.constant 0 : index
    %c0_5 = arith.constant 0 : index
    %5 = vector.load %arg2[%c0_4, %c0_5] : memref<256x128xbf16, #tpu.memory_space<vmem>>, vector<256x128xbf16>
    %cst = arith.constant dense<0.000000e+00> : vector<98x128xf32>
    %6 = tpu.matmul %4, %5, %cst {dimension_numbers = #tpu.dot_dimension_numbers<[1], [0], [0], [1], [0, 0, 1, 1], [], []>} : vector<98x256xbf16>, vector<256x128xbf16>, vector<98x128xf32> -> vector<98x128xf32>
    %7 = arith.addf %3, %6 : vector<98x128xf32>
    %c0_6 = arith.constant 0 : index
    %c0_7 = arith.constant 0 : index
    %8 = vector.load %arg7[%c0_6, %c0_7] : memref<98x128xf32, #tpu.memory_space<vmem>>, vector<98x128xf32>
    tpu.vector_store %arg7[%c0_6, %c0_7], %7 {strides = array<i32>} : memref<98x128xf32, #tpu.memory_space<vmem>>, vector<98x128xf32>,
    %c3_i32 = arith.constant 3 : i32
    %9 = arith.cmpi eq, %arg0, %c3_i32 : i32
    %10 = arith.extui %9 : i1 to i32
    %c0_i32_8 = arith.constant 0 : i32
    %11 = arith.cmpi ne, %10, %c0_i32_8 : i32
    scf.if %11 {
      %c0_9 = arith.constant 0 : index
      %c0_10 = arith.constant 0 : index
      %12 = vector.load %arg7[%c0_9, %c0_10] : memref<98x128xf32, #tpu.memory_space<vmem>>, vector<98x128xf32>
      %cst_11 = arith.constant dense<0.000000e+00> : vector<128xf32>
      %13 = vector.multi_reduction <add>, %12, %cst_11 [0] : vector<98x128xf32> to vector<128xf32>
      %14 = vector.shape_cast %13 : vector<128xf32> to vector<1x128xf32>
      %cst_12 = arith.constant 9.800000e+01 : f32
      %15 = vector.broadcast %cst_12 : f32 to vector<1x128xf32>
      %16 = arith.divf %14, %15 : vector<1x128xf32>
      %17 = vector.broadcast %16 : vector<1x128xf32> to vector<98x128xf32>
      %18 = arith.subf %12, %17 : vector<98x128xf32>
      %19 = arith.mulf %18, %18 : vector<98x128xf32>
      %cst_13 = arith.constant dense<0.000000e+00> : vector<128xf32>
      %20 = vector.multi_reduction <add>, %19, %cst_13 [0] : vector<98x128xf32> to vector<128xf32>
      %21 = vector.shape_cast %20 : vector<128xf32> to vector<1x128xf32>
      %cst_14 = arith.constant 9.800000e+01 : f32
      %22 = vector.broadcast %cst_14 : f32 to vector<1x128xf32>
      %23 = arith.divf %21, %22 : vector<1x128xf32>
      %24 = vector.broadcast %16 : vector<1x128xf32> to vector<98x128xf32>
      %25 = arith.subf %12, %24 : vector<98x128xf32>
      %cst_15 = arith.constant 9.99999974E-6 : f32
      %26 = vector.broadcast %cst_15 : f32 to vector<1x128xf32>
      %27 = arith.addf %23, %26 : vector<1x128xf32>
      %28 = math.rsqrt %27 : vector<1x128xf32>
      %29 = vector.broadcast %28 : vector<1x128xf32> to vector<98x128xf32>
      %30 = arith.mulf %25, %29 : vector<98x128xf32>
      %c0_16 = arith.constant 0 : index
      %c0_17 = arith.constant 0 : index
      %31 = vector.load %arg4[%c0_16, %c0_17] : memref<1x128xf32, #tpu.memory_space<vmem>>, vector<1x128xf32>
      %32 = vector.broadcast %31 : vector<1x128xf32> to vector<98x128xf32>
      %33 = arith.mulf %30, %32 : vector<98x128xf32>
      %c0_18 = arith.constant 0 : index
      %c0_19 = arith.constant 0 : index
      %34 = vector.load %arg5[%c0_18, %c0_19] : memref<1x128xf32, #tpu.memory_space<vmem>>, vector<1x128xf32>
      %35 = vector.broadcast %34 : vector<1x128xf32> to vector<98x128xf32>
      %36 = arith.addf %33, %35 : vector<98x128xf32>
      %cst_20 = arith.constant 0.000000e+00 : f32
      %37 = vector.broadcast %cst_20 : f32 to vector<98x128xf32>
      %38 = arith.cmpf oge, %36, %37 : vector<98x128xf32>
      %cst_21 = arith.constant 2.000000e-01 : f32
      %39 = vector.broadcast %cst_21 : f32 to vector<98x128xf32>
      %40 = arith.mulf %39, %36 : vector<98x128xf32>
      %41 = arith.select %38, %36, %40 : vector<98x128xi1>, vector<98x128xf32>
      %42 = arith.truncf %41 : vector<98x128xf32> to vector<98x128xbf16>
      %c0_22 = arith.constant 0 : index
      %c0_23 = arith.constant 0 : index
      %43 = vector.load %arg6[%c0_22, %c0_23] : memref<98x128xbf16, #tpu.memory_space<vmem>>, vector<98x128xbf16>
      tpu.vector_store %arg6[%c0_22, %c0_23], %42 {strides = array<i32>} : memref<98x128xbf16, #tpu.memory_space<vmem>>, vector<98x128xbf16>,
    } else {
    }
    return
  }
  func.func @transform_0(%arg0: i32) -> (i32, i32) {
    %c0_i32 = arith.constant 0 : i32
    %c0_i32_0 = arith.constant 0 : i32
    return %c0_i32, %arg0 : i32, i32
  }
  func.func @transform_1(%arg0: i32) -> (i32, i32) {
    %c0_i32 = arith.constant 0 : i32
    %c0_i32_0 = arith.constant 0 : i32
    return %arg0, %c0_i32 : i32, i32
  }
  func.func @transform_2(%arg0: i32) -> (i32, i32) {
    %c0_i32 = arith.constant 0 : i32
    %c0_i32_0 = arith.constant 0 : i32
    %c0_i32_1 = arith.constant 0 : i32
    return %c0_i32, %c0_i32_0 : i32, i32
  }
  func.func @transform_3(%arg0: i32) -> (i32, i32) {
    %c0_i32 = arith.constant 0 : i32
    %c0_i32_0 = arith.constant 0 : i32
    %c0_i32_1 = arith.constant 0 : i32
    return %c0_i32, %c0_i32_0 : i32, i32
  }
  func.func @transform_4(%arg0: i32) -> (i32, i32) {
    %c0_i32 = arith.constant 0 : i32
    %c0_i32_0 = arith.constant 0 : i32
    %c0_i32_1 = arith.constant 0 : i32
    return %c0_i32, %c0_i32_0 : i32, i32
  }
  func.func @transform_5(%arg0: i32) -> (i32, i32) {
    %c0_i32 = arith.constant 0 : i32
    %c0_i32_0 = arith.constant 0 : i32
    %c0_i32_1 = arith.constant 0 : i32
    return %c0_i32, %c0_i32_0 : i32, i32
  }
}

module attributes {stable_mosaic.version = 11 : i64} {
  func.func @_fc_bn_lrelu_fc_kernel(%arg0: i32, %arg1: i32, %arg2: memref<2x896xbf16, #tpu.memory_space<vmem>>, %arg3: memref<896x512xbf16, #tpu.memory_space<vmem>>, %arg4: memref<1x512xf32, #tpu.memory_space<vmem>>, %arg5: memref<1x512xf32, #tpu.memory_space<vmem>>, %arg6: memref<1x512xf32, #tpu.memory_space<vmem>>, %arg7: memref<1x512xf32, #tpu.memory_space<vmem>>, %arg8: memref<1x2x1xf32, #tpu.memory_space<vmem>>, %arg9: memref<2x512xf32, #tpu.memory_space<vmem>>) attributes {dimension_semantics = [#tpu.dimension_semantics<parallel>, #tpu.dimension_semantics<arbitrary>], iteration_bounds = array<i64: 2, 7>, scalar_prefetch = 0 : i64, scratch_operands = 1 : i64, tpu.core_type = #tpu.core_type<tc>, window_params = [{transform_indices = @transform_0, window_bounds = array<i64: 2, 896>}, {transform_indices = @transform_1, window_bounds = array<i64: 896, 512>}, {transform_indices = @transform_2, window_bounds = array<i64: 1, 512>}, {transform_indices = @transform_3, window_bounds = array<i64: 1, 512>}, {transform_indices = @transform_4, window_bounds = array<i64: 1, 512>}, {transform_indices = @transform_5, window_bounds = array<i64: 1, 512>}, {transform_indices = @transform_6, window_bounds = array<i64: 1, 2, 1>}]} {
    %c0_i32 = arith.constant 0 : i32
    %0 = arith.cmpi eq, %arg1, %c0_i32 : i32
    %1 = arith.extui %0 : i1 to i32
    %c0_i32_0 = arith.constant 0 : i32
    %2 = arith.cmpi ne, %1, %c0_i32_0 : i32
    scf.if %2 {
      %c0_9 = arith.constant 0 : index
      %c0_10 = arith.constant 0 : index
      %12 = vector.load %arg4[%c0_9, %c0_10] : memref<1x512xf32, #tpu.memory_space<vmem>>, vector<1x512xf32>
      %13 = vector.shape_cast %12 : vector<1x512xf32> to vector<1x512xf32>
      %14 = vector.broadcast %13 : vector<1x512xf32> to vector<2x512xf32>
      %c0_11 = arith.constant 0 : index
      %c0_12 = arith.constant 0 : index
      %15 = vector.load %arg9[%c0_11, %c0_12] : memref<2x512xf32, #tpu.memory_space<vmem>>, vector<2x512xf32>
      tpu.vector_store %arg9[%c0_11, %c0_12], %14 {strides = array<i32>} : memref<2x512xf32, #tpu.memory_space<vmem>>, vector<2x512xf32>,
    } else {
    }
    %c0 = arith.constant 0 : index
    %c0_1 = arith.constant 0 : index
    %3 = vector.load %arg9[%c0, %c0_1] : memref<2x512xf32, #tpu.memory_space<vmem>>, vector<2x512xf32>
    %c0_2 = arith.constant 0 : index
    %c0_3 = arith.constant 0 : index
    %4 = vector.load %arg2[%c0_2, %c0_3] : memref<2x896xbf16, #tpu.memory_space<vmem>>, vector<2x896xbf16>
    %c0_4 = arith.constant 0 : index
    %c0_5 = arith.constant 0 : index
    %5 = vector.load %arg3[%c0_4, %c0_5] : memref<896x512xbf16, #tpu.memory_space<vmem>>, vector<896x512xbf16>
    %cst = arith.constant dense<0.000000e+00> : vector<2x512xf32>
    %6 = tpu.matmul %4, %5, %cst {dimension_numbers = #tpu.dot_dimension_numbers<[1], [0], [0], [1], [0, 0, 1, 1], [], []>} : vector<2x896xbf16>, vector<896x512xbf16>, vector<2x512xf32> -> vector<2x512xf32>
    %7 = arith.addf %3, %6 : vector<2x512xf32>
    %c0_6 = arith.constant 0 : index
    %c0_7 = arith.constant 0 : index
    %8 = vector.load %arg9[%c0_6, %c0_7] : memref<2x512xf32, #tpu.memory_space<vmem>>, vector<2x512xf32>
    tpu.vector_store %arg9[%c0_6, %c0_7], %7 {strides = array<i32>} : memref<2x512xf32, #tpu.memory_space<vmem>>, vector<2x512xf32>,
    %c6_i32 = arith.constant 6 : i32
    %9 = arith.cmpi eq, %arg1, %c6_i32 : i32
    %10 = arith.extui %9 : i1 to i32
    %c0_i32_8 = arith.constant 0 : i32
    %11 = arith.cmpi ne, %10, %c0_i32_8 : i32
    scf.if %11 {
      %c0_9 = arith.constant 0 : index
      %c0_10 = arith.constant 0 : index
      %12 = vector.load %arg9[%c0_9, %c0_10] : memref<2x512xf32, #tpu.memory_space<vmem>>, vector<2x512xf32>
      %cst_11 = arith.constant dense<0.000000e+00> : vector<512xf32>
      %13 = vector.multi_reduction <add>, %12, %cst_11 [0] : vector<2x512xf32> to vector<512xf32>
      %14 = vector.shape_cast %13 : vector<512xf32> to vector<1x512xf32>
      %cst_12 = arith.constant 2.000000e+00 : f32
      %15 = vector.broadcast %cst_12 : f32 to vector<1x512xf32>
      %16 = arith.divf %14, %15 : vector<1x512xf32>
      %17 = vector.broadcast %16 : vector<1x512xf32> to vector<2x512xf32>
      %18 = arith.subf %12, %17 : vector<2x512xf32>
      %19 = arith.mulf %18, %18 : vector<2x512xf32>
      %cst_13 = arith.constant dense<0.000000e+00> : vector<512xf32>
      %20 = vector.multi_reduction <add>, %19, %cst_13 [0] : vector<2x512xf32> to vector<512xf32>
      %21 = vector.shape_cast %20 : vector<512xf32> to vector<1x512xf32>
      %cst_14 = arith.constant 2.000000e+00 : f32
      %22 = vector.broadcast %cst_14 : f32 to vector<1x512xf32>
      %23 = arith.divf %21, %22 : vector<1x512xf32>
      %24 = vector.broadcast %16 : vector<1x512xf32> to vector<2x512xf32>
      %25 = arith.subf %12, %24 : vector<2x512xf32>
      %cst_15 = arith.constant 9.99999974E-6 : f32
      %26 = vector.broadcast %cst_15 : f32 to vector<1x512xf32>
      %27 = arith.addf %23, %26 : vector<1x512xf32>
      %28 = math.rsqrt %27 : vector<1x512xf32>
      %29 = vector.broadcast %28 : vector<1x512xf32> to vector<2x512xf32>
      %30 = arith.mulf %25, %29 : vector<2x512xf32>
      %c0_16 = arith.constant 0 : index
      %c0_17 = arith.constant 0 : index
      %31 = vector.load %arg5[%c0_16, %c0_17] : memref<1x512xf32, #tpu.memory_space<vmem>>, vector<1x512xf32>
      %32 = vector.broadcast %31 : vector<1x512xf32> to vector<2x512xf32>
      %33 = arith.mulf %30, %32 : vector<2x512xf32>
      %c0_18 = arith.constant 0 : index
      %c0_19 = arith.constant 0 : index
      %34 = vector.load %arg6[%c0_18, %c0_19] : memref<1x512xf32, #tpu.memory_space<vmem>>, vector<1x512xf32>
      %35 = vector.broadcast %34 : vector<1x512xf32> to vector<2x512xf32>
      %36 = arith.addf %33, %35 : vector<2x512xf32>
      %cst_20 = arith.constant 0.000000e+00 : f32
      %37 = vector.broadcast %cst_20 : f32 to vector<2x512xf32>
      %38 = arith.cmpf oge, %36, %37 : vector<2x512xf32>
      %cst_21 = arith.constant 2.000000e-01 : f32
      %39 = vector.broadcast %cst_21 : f32 to vector<2x512xf32>
      %40 = arith.mulf %39, %36 : vector<2x512xf32>
      %41 = arith.select %38, %36, %40 : vector<2x512xi1>, vector<2x512xf32>
      %c0_22 = arith.constant 0 : index
      %c0_23 = arith.constant 0 : index
      %42 = vector.load %arg7[%c0_22, %c0_23] : memref<1x512xf32, #tpu.memory_space<vmem>>, vector<1x512xf32>
      %43 = vector.broadcast %42 : vector<1x512xf32> to vector<2x512xf32>
      %44 = arith.mulf %41, %43 : vector<2x512xf32>
      %cst_24 = arith.constant dense<0.000000e+00> : vector<2xf32>
      %45 = vector.multi_reduction <add>, %44, %cst_24 [1] : vector<2x512xf32> to vector<2xf32>
      %46 = vector.shape_cast %45 : vector<2xf32> to vector<2x1xf32>
      %c0_25 = arith.constant 0 : index
      %c0_26 = arith.constant 0 : index
      %c0_27 = arith.constant 0 : index
      %47 = vector.load %arg8[%c0_25, %c0_26, %c0_27] : memref<1x2x1xf32, #tpu.memory_space<vmem>>, vector<1x2x1xf32>
      %48 = vector.shape_cast %47 : vector<1x2x1xf32> to vector<2x1xf32>
      %49 = vector.shape_cast %46 : vector<2x1xf32> to vector<1x2x1xf32>
      tpu.vector_store %arg8[%c0_25, %c0_26, %c0_27], %49 {strides = array<i32>} : memref<1x2x1xf32, #tpu.memory_space<vmem>>, vector<1x2x1xf32>,
    } else {
    }
    return
  }
  func.func @transform_0(%arg0: i32, %arg1: i32) -> (i32, i32) {
    %c0_i32 = arith.constant 0 : i32
    %c0_i32_0 = arith.constant 0 : i32
    return %c0_i32, %arg1 : i32, i32
  }
  func.func @transform_1(%arg0: i32, %arg1: i32) -> (i32, i32) {
    %c0_i32 = arith.constant 0 : i32
    return %arg1, %arg0 : i32, i32
  }
  func.func @transform_2(%arg0: i32, %arg1: i32) -> (i32, i32) {
    %c0_i32 = arith.constant 0 : i32
    %c0_i32_0 = arith.constant 0 : i32
    return %c0_i32, %arg0 : i32, i32
  }
  func.func @transform_3(%arg0: i32, %arg1: i32) -> (i32, i32) {
    %c0_i32 = arith.constant 0 : i32
    %c0_i32_0 = arith.constant 0 : i32
    return %c0_i32, %arg0 : i32, i32
  }
  func.func @transform_4(%arg0: i32, %arg1: i32) -> (i32, i32) {
    %c0_i32 = arith.constant 0 : i32
    %c0_i32_0 = arith.constant 0 : i32
    return %c0_i32, %arg0 : i32, i32
  }
  func.func @transform_5(%arg0: i32, %arg1: i32) -> (i32, i32) {
    %c0_i32 = arith.constant 0 : i32
    %c0_i32_0 = arith.constant 0 : i32
    return %c0_i32, %arg0 : i32, i32
  }
  func.func @transform_6(%arg0: i32, %arg1: i32) -> (i32, i32, i32) {
    %c0_i32 = arith.constant 0 : i32
    %c0_i32_0 = arith.constant 0 : i32
    %c0_i32_1 = arith.constant 0 : i32
    return %arg0, %c0_i32, %c0_i32_0 : i32, i32, i32
  }
}

</mosaic_0001>

<llo_original>
// kernel: discriminator_forward.3
$region0: #{discriminator_forward.3}
  #allocation0 [shape = 'u32[]', space=smem, size = 0x4, offset = 0x4, fixed_abs, tag = 'smem constant byte address 0x4 - core index']
  #allocation1 [shape = 'u32[144,128]{1,0:T(1,128)}', space=vmem, size = 0x12000, scoped, tag = 'internal scratch']
  %s0 = inlined_call_operand.vmem [shape: bf16[196,32], index: 0, kind: input, shape index: {}]
  %s1 = inlined_call_operand.hbm [shape: bf16[32,128], index: 1, kind: input, shape index: {}]
  %s2 = inlined_call_operand.hbm [shape: f32[1,128], index: 2, kind: input, shape index: {}]
  %s3 = inlined_call_operand.vmem [shape: bf16[196,128], index: 3, kind: output, shape index: {}]
  %s4 = sld [smem:[#allocation0]]
  $region30: #{discriminator_forward.3} parent=0
    _
  %s6 = ssub.s32 1, %s4
  %s7 = scalar_select 0, %s6, %s4
  $region1: #{discriminator_forward.3} parent=0
    #allocation2 [shape = 'u8[8192]{0}', space=vmem, size = 0x2000, scoped, tag = 'input window, operand 1, single buffered']
    #allocation3 [shape = 's32[1]{0}', space=sflag, size = 0x4, scoped, tag = 'scoped memory for discriminator_forward.3']
    #allocation4 [shape = 'u8[512]{0}', space=vmem, size = 0x400, scoped, tag = 'input window, operand 2, single buffered']
    #allocation5 [shape = 's32[1]{0}', space=sflag, size = 0x4, scoped, tag = 'scoped memory for discriminator_forward.3']
    %8 = vsyncpa [#allocation3], 0
    %9 = vsyncpa [#allocation5], 0
    // Predicated region
    $region2: #{discriminator_forward.3} parent=1 // pred_check
      _
    $region3: #{discriminator_forward.3} parent=1 // pred_check_branch
      %11 = sbr.rel (0) target = $region5
    $region4: #{discriminator_forward.3} parent=1 // pred_region
      _
    $region5: #{discriminator_forward.3} parent=1 // pred_fallthru
      _
    // Predicated region
    $region6: #{discriminator_forward.3} parent=1 // pred_check
      _
    $region7: #{discriminator_forward.3} parent=1 // pred_check_branch
      %13 = sbr.rel (0) target = $region9
    $region8: #{discriminator_forward.3} parent=1 // pred_region
      %s15 = ssub.s32 256, 256
      %16 = vsyncadd [#allocation3], %s15
      %s17 = sshll.u32 [#allocation2], 4
      %s18 = int_to_ptr.vmem [resolvable:$true] %s17
      %23 = dma.hbm_to_vmem [thread:$0]  %s1, 256, %s18, [#allocation3], 64, 64, 4
    $region9: #{discriminator_forward.3} parent=1 // pred_fallthru
      _
    // Predicated region
    $region10: #{discriminator_forward.3} parent=1 // pred_check
      _
    $region11: #{discriminator_forward.3} parent=1 // pred_check_branch
      %25 = sbr.rel (0) target = $region13
    $region12: #{discriminator_forward.3} parent=1 // pred_region
      %s27 = ssub.s32 16, 16
      %28 = vsyncadd [#allocation5], %s27
      %s30 = sshll.u32 [#allocation4], 4
      %s31 = int_to_ptr.vmem [resolvable:$true] %s30
      %33 = dma.hbm_to_vmem [thread:$0]  %s2, 16, %s31, [#allocation5]
    $region13: #{discriminator_forward.3} parent=1 // pred_fallthru
      _
    // Predicated region
    $region14: #{discriminator_forward.3} parent=1 // pred_check
      _
    $region15: #{discriminator_forward.3} parent=1 // pred_check_branch
      %35 = sbr.rel (0) target = $region17
    $region16: #{discriminator_forward.3} parent=1 // pred_region
      %36 = dma.done [#allocation3], 256
    $region17: #{discriminator_forward.3} parent=1 // pred_fallthru
      _
    // Predicated region
    $region18: #{discriminator_forward.3} parent=1 // pred_check
      _
    $region19: #{discriminator_forward.3} parent=1 // pred_check_branch
      %38 = sbr.rel (0) target = $region21
    $region20: #{discriminator_forward.3} parent=1 // pred_region
      %39 = dma.done [#allocation5], 16
    $region21: #{discriminator_forward.3} parent=1 // pred_fallthru
      _
    %v41 = vld [vmem:[%s0] sm:$0xf]
    %v42 = vld [vmem:[%s0 + $0x4] sm:$0xf]
    %v43 = vld [vmem:[%s0 + $0x8] sm:$0xf]
    %v44 = vld [vmem:[%s0 + $0xc] sm:$0xf]
    %v45 = vld [vmem:[%s0 + $0x10] sm:$0xf]
    %v46 = vld [vmem:[%s0 + $0x14] sm:$0xf]
    %v47 = vld [vmem:[%s0 + $0x18] sm:$0xf]
    %v48 = vld [vmem:[%s0 + $0x1c] sm:$0xf]
    %v49 = vld [vmem:[%s0 + $0x20] sm:$0xf]
    %v50 = vld [vmem:[%s0 + $0x24] sm:$0xf]
    %v51 = vld [vmem:[%s0 + $0x28] sm:$0xf]
    %v52 = vld [vmem:[%s0 + $0x2c] sm:$0xf]
    %v53 = vld [vmem:[%s0 + $0x30] sm:$0xf]
    %v54 = vld [vmem:[%s0 + $0x34] sm:$0xf]
    %v55 = vld [vmem:[%s0 + $0x38] sm:$0xf]
    %v56 = vld [vmem:[%s0 + $0x3c] sm:$0xf]
    %v57 = vld [vmem:[%s0 + $0x40] sm:$0xf]
    %v58 = vld [vmem:[%s0 + $0x44] sm:$0xf]
    %v59 = vld [vmem:[%s0 + $0x48] sm:$0xf]
    %v60 = vld [vmem:[%s0 + $0x4c] sm:$0xf]
    %v61 = vld [vmem:[%s0 + $0x50] sm:$0xf]
    %v62 = vld [vmem:[%s0 + $0x54] sm:$0xf]
    %v63 = vld [vmem:[%s0 + $0x58] sm:$0xf]
    %v64 = vld [vmem:[%s0 + $0x5c] sm:$0xf]
    %v65 = vld [vmem:[%s0 + $0x60] sm:$0x3]
    %v66 = vld [vmem:[#allocation2] sm:$0xf]
    %v67 = vld [vmem:[#allocation2 + $0x4] sm:$0xf]
    %v68 = vld [vmem:[#allocation2 + $0x8] sm:$0xf]
    %v69 = vld [vmem:[#allocation2 + $0xc] sm:$0xf]
    %v70 = vld [vmem:[#allocation4] sm:$0x1]
    %v72 = vlaneseq
    %v73 = vshrl.u32 %v72, 7
    %v74 = vsub.s32 0, %v73
    %v75 = vrot.slane %v70, %v74
    %v102 = vunpack.c.l.b16 %v41
    %v103 = vunpack.c.l.b16 %v42
    %v104 = vunpack.c.l.b16 %v43
    %v105 = vunpack.c.l.b16 %v44
    %v106 = vunpack.c.l.b16 %v45
    %v107 = vunpack.c.l.b16 %v46
    %v108 = vunpack.c.l.b16 %v47
    %v109 = vunpack.c.l.b16 %v48
    %v110 = vunpack.c.l.b16 %v49
    %v111 = vunpack.c.l.b16 %v50
    %v112 = vunpack.c.l.b16 %v51
    %v113 = vunpack.c.l.b16 %v52
    %v114 = vunpack.c.l.b16 %v53
    %v115 = vunpack.c.l.b16 %v54
    %v116 = vunpack.c.l.b16 %v55
    %v117 = vunpack.c.l.b16 %v56
    %v118 = vunpack.c.l.b16 %v57
    %v119 = vunpack.c.l.b16 %v58
    %v120 = vunpack.c.l.b16 %v59
    %v121 = vunpack.c.l.b16 %v60
    %v122 = vunpack.c.l.b16 %v61
    %v123 = vunpack.c.l.b16 %v62
    %v124 = vunpack.c.l.b16 %v63
    %v125 = vunpack.c.l.b16 %v64
    %v126 = vunpack.c.l.b16 %v65
    %v127 = vpack.c.b16 %v103, %v102
    %v128 = vpack.c.b16 %v105, %v104
    %v129 = vpack.c.b16 %v107, %v106
    %v130 = vpack.c.b16 %v109, %v108
    %v131 = vpack.c.b16 %v111, %v110
    %v132 = vpack.c.b16 %v113, %v112
    %v133 = vpack.c.b16 %v115, %v114
    %v134 = vpack.c.b16 %v117, %v116
    %v135 = vpack.c.b16 %v119, %v118
    %v136 = vpack.c.b16 %v121, %v120
    %v137 = vpack.c.b16 %v123, %v122
    %v138 = vpack.c.b16 %v125, %v124
    %v139 = vpack.c.b16 %v126, %v126
    %v144 = vunpack.c.l.b16 %v66
    %v145 = vunpack.c.l.b16 %v67
    %v146 = vunpack.c.l.b16 %v68
    %v147 = vunpack.c.l.b16 %v69
    %v148 = vpack.c.b16 %v145, %v144
    %v149 = vpack.c.b16 %v147, %v146
    %vm152 = vcmask 261120
    %v154 = vsel %vm152, %v127, 0
    %v157 = vsel %vm152, %v128, 0
    %v160 = vsel %vm152, %v129, 0
    %v163 = vsel %vm152, %v130, 0
    %v166 = vsel %vm152, %v131, 0
    %v169 = vsel %vm152, %v132, 0
    %v172 = vsel %vm152, %v133, 0
    %v175 = vsel %vm152, %v134, 0
    %v178 = vsel %vm152, %v135, 0
    %v181 = vsel %vm152, %v136, 0
    %v184 = vsel %vm152, %v137, 0
    %v187 = vsel %vm152, %v138, 0
    %v190 = vsel %vm152, %v139, 0
    %192 = vmatprep.subr.bf16.mxu0 0
    %193 = vmatpush1.bf16.msra.mxu0 %v148
    %194 = vmatprep.subr.bf16.mxu0 0
    %195 = vmatpush1.bf16.msra.mxu0 %v149
    %196 = vmatprep.subr.bf16.mxu0 0
    %197 = vmatpush1.bf16.msra.mxu0 0
    %198 = vmatprep.subr.bf16.mxu0 0
    %199 = vmatpush1.bf16.msra.mxu0 0
    %200 = vmatprep.subr.bf16.mxu0 0
    %201 = vmatpush1.bf16.msra.mxu0 0
    %202 = vmatprep.subr.bf16.mxu0 0
    %203 = vmatpush1.bf16.msra.mxu0 0
    %204 = vmatprep.subr.bf16.mxu0 0
    %205 = vmatpush1.bf16.msra.mxu0 0
    %206 = vmatprep.subr.bf16.mxu0 0
    %207 = vmatpush1.bf16.msra.mxu0 0
    %208 = vmatprep.subr.bf16.mxu0 0
    %209 = vmatpush1.bf16.msra.mxu0 0
    %210 = vmatprep.subr.bf16.mxu0 0
    %211 = vmatpush1.bf16.msra.mxu0 0
    %212 = vmatprep.subr.bf16.mxu0 0
    %213 = vmatpush1.bf16.msra.mxu0 0
    %214 = vmatprep.subr.bf16.mxu0 0
    %215 = vmatpush1.bf16.msra.mxu0 0
    %216 = vmatprep.subr.bf16.mxu0 0
    %217 = vmatpush1.bf16.msra.mxu0 0
    %218 = vmatprep.subr.bf16.mxu0 0
    %219 = vmatpush1.bf16.msra.mxu0 0
    %220 = vmatprep.subr.bf16.mxu0 0
    %221 = vmatpush1.bf16.msra.mxu0 0
    %222 = vmatprep.subr.bf16.mxu0 0
    %223 = vmatpush1.bf16.msra.mxu0 0
    %224 = vmatprep.mubr.bf16.mxu0 0
    %225 = vmatmul.mubr.bf16.gmra.mrb[0].mxu0 %v154
    %v226 = vpop.f32.mrb[0].mxu0
    %v227 = vadd.f32 %v75, %v226
    %v228 = vpop.f32.mrb[0].mxu0
    %v229 = vpop.f32.mrb[0].mxu0
    %v230 = vadd.f32 %v75, %v229
    %v231 = vpop.f32.mrb[0].mxu0
    %232 = vmatprep.mubr.bf16.mxu0 0
    %233 = vmatmul.mubr.bf16.gmra.mrb[0].mxu0 %v157
    %v234 = vpop.f32.mrb[0].mxu0
    %v235 = vadd.f32 %v75, %v234
    %v236 = vpop.f32.mrb[0].mxu0
    %v237 = vpop.f32.mrb[0].mxu0
    %v238 = vadd.f32 %v75, %v237
    %v239 = vpop.f32.mrb[0].mxu0
    %240 = vmatprep.mubr.bf16.mxu0 0
    %241 = vmatmul.mubr.bf16.gmra.mrb[0].mxu0 %v160
    %v242 = vpop.f32.mrb[0].mxu0
    %v243 = vadd.f32 %v75, %v242
    %v244 = vpop.f32.mrb[0].mxu0
    %v245 = vpop.f32.mrb[0].mxu0
    %v246 = vadd.f32 %v75, %v245
    %v247 = vpop.f32.mrb[0].mxu0
    %248 = vmatprep.mubr.bf16.mxu0 0
    %249 = vmatmul.mubr.bf16.gmra.mrb[0].mxu0 %v163
    %v250 = vpop.f32.mrb[0].mxu0
    %v251 = vadd.f32 %v75, %v250
    %v252 = vpop.f32.mrb[0].mxu0
    %v253 = vpop.f32.mrb[0].mxu0
    %v254 = vadd.f32 %v75, %v253
    %v255 = vpop.f32.mrb[0].mxu0
    %256 = vmatprep.mubr.bf16.mxu0 0
    %257 = vmatmul.mubr.bf16.gmra.mrb[0].mxu0 %v166
    %v258 = vpop.f32.mrb[0].mxu0
    %v259 = vadd.f32 %v75, %v258
    %v260 = vpop.f32.mrb[0].mxu0
    %v261 = vpop.f32.mrb[0].mxu0
    %v262 = vadd.f32 %v75, %v261
    %v263 = vpop.f32.mrb[0].mxu0
    %264 = vmatprep.mubr.bf16.mxu0 0
    %265 = vmatmul.mubr.bf16.gmra.mrb[0].mxu0 %v169
    %v266 = vpop.f32.mrb[0].mxu0
    %v267 = vadd.f32 %v75, %v266
    %v268 = vpop.f32.mrb[0].mxu0
    %v269 = vpop.f32.mrb[0].mxu0
    %v270 = vadd.f32 %v75, %v269
    %v271 = vpop.f32.mrb[0].mxu0
    %272 = vmatprep.mubr.bf16.mxu0 0
    %273 = vmatmul.mubr.bf16.gmra.mrb[0].mxu0 %v172
    %v274 = vpop.f32.mrb[0].mxu0
    %v275 = vadd.f32 %v75, %v274
    %v276 = vpop.f32.mrb[0].mxu0
    %v277 = vpop.f32.mrb[0].mxu0
    %v278 = vadd.f32 %v75, %v277
    %v279 = vpop.f32.mrb[0].mxu0
    %280 = vmatprep.mubr.bf16.mxu0 0
    %281 = vmatmul.mubr.bf16.gmra.mrb[0].mxu0 %v175
    %v282 = vpop.f32.mrb[0].mxu0
    %v283 = vadd.f32 %v75, %v282
    %v284 = vpop.f32.mrb[0].mxu0
    %v285 = vpop.f32.mrb[0].mxu0
    %v286 = vadd.f32 %v75, %v285
    %v287 = vpop.f32.mrb[0].mxu0
    %288 = vmatprep.mubr.bf16.mxu0 0
    %289 = vmatmul.mubr.bf16.gmra.mrb[0].mxu0 %v178
    %v290 = vpop.f32.mrb[0].mxu0
    %v291 = vadd.f32 %v75, %v290
    %v292 = vpop.f32.mrb[0].mxu0
    %v293 = vpop.f32.mrb[0].mxu0
    %v294 = vadd.f32 %v75, %v293
    %v295 = vpop.f32.mrb[0].mxu0
    %296 = vmatprep.mubr.bf16.mxu0 0
    %297 = vmatmul.mubr.bf16.gmra.mrb[0].mxu0 %v181
    %v298 = vpop.f32.mrb[0].mxu0
    %v299 = vadd.f32 %v75, %v298
    %v300 = vpop.f32.mrb[0].mxu0
    %v301 = vpop.f32.mrb[0].mxu0
    %v302 = vadd.f32 %v75, %v301
    %v303 = vpop.f32.mrb[0].mxu0
    %304 = vmatprep.mubr.bf16.mxu0 0
    %305 = vmatmul.mubr.bf16.gmra.mrb[0].mxu0 %v184
    %v306 = vpop.f32.mrb[0].mxu0
    %v307 = vadd.f32 %v75, %v306
    %v308 = vpop.f32.mrb[0].mxu0
    %v309 = vpop.f32.mrb[0].mxu0
    %v310 = vadd.f32 %v75, %v309
    %v311 = vpop.f32.mrb[0].mxu0
    %312 = vmatprep.mubr.bf16.mxu0 0
    %313 = vmatmul.mubr.bf16.gmra.mrb[0].mxu0 %v187
    %v314 = vpop.f32.mrb[0].mxu0
    %v315 = vadd.f32 %v75, %v314
    %v316 = vpop.f32.mrb[0].mxu0
    %v317 = vpop.f32.mrb[0].mxu0
    %v318 = vadd.f32 %v75, %v317
    %v319 = vpop.f32.mrb[0].mxu0
    %320 = vmatprep.mubr.bf16.mxu0 0
    %321 = vmatmul.mubr.bf16.gmra.mrb[0].mxu0 %v190
    %v322 = vpop.f32.mrb[0].mxu0
    %v323 = vadd.f32 %v75, %v322
    %v324 = vpop.f32.mrb[0].mxu0
    %v325 = vpop.f32.mrb[0].mxu0
    %v326 = vpop.f32.mrb[0].mxu0
    %327 = vdwg.mxu0
    %vm328 = vcmp.ge.f32.partialorder %v227, 0.0
    %vm329 = vcmp.ge.f32.partialorder %v230, 0.0
    %vm330 = vcmp.ge.f32.partialorder %v235, 0.0
    %vm331 = vcmp.ge.f32.partialorder %v238, 0.0
    %vm332 = vcmp.ge.f32.partialorder %v243, 0.0
    %vm333 = vcmp.ge.f32.partialorder %v246, 0.0
    %vm334 = vcmp.ge.f32.partialorder %v251, 0.0
    %vm335 = vcmp.ge.f32.partialorder %v254, 0.0
    %vm336 = vcmp.ge.f32.partialorder %v259, 0.0
    %vm337 = vcmp.ge.f32.partialorder %v262, 0.0
    %vm338 = vcmp.ge.f32.partialorder %v267, 0.0
    %vm339 = vcmp.ge.f32.partialorder %v270, 0.0
    %vm340 = vcmp.ge.f32.partialorder %v275, 0.0
    %vm341 = vcmp.ge.f32.partialorder %v278, 0.0
    %vm342 = vcmp.ge.f32.partialorder %v283, 0.0
    %vm343 = vcmp.ge.f32.partialorder %v286, 0.0
    %vm344 = vcmp.ge.f32.partialorder %v291, 0.0
    %vm345 = vcmp.ge.f32.partialorder %v294, 0.0
    %vm346 = vcmp.ge.f32.partialorder %v299, 0.0
    %vm347 = vcmp.ge.f32.partialorder %v302, 0.0
    %vm348 = vcmp.ge.f32.partialorder %v307, 0.0
    %vm349 = vcmp.ge.f32.partialorder %v310, 0.0
    %vm350 = vcmp.ge.f32.partialorder %v315, 0.0
    %vm351 = vcmp.ge.f32.partialorder %v318, 0.0
    %vm352 = vcmp.ge.f32.partialorder %v323, 0.0
    %v353 = vmul.f32 %v227, 0.2
    %v354 = vmul.f32 %v230, 0.2
    %v355 = vmul.f32 %v235, 0.2
    %v356 = vmul.f32 %v238, 0.2
    %v357 = vmul.f32 %v243, 0.2
    %v358 = vmul.f32 %v246, 0.2
    %v359 = vmul.f32 %v251, 0.2
    %v360 = vmul.f32 %v254, 0.2
    %v361 = vmul.f32 %v259, 0.2
    %v362 = vmul.f32 %v262, 0.2
    %v363 = vmul.f32 %v267, 0.2
    %v364 = vmul.f32 %v270, 0.2
    %v365 = vmul.f32 %v275, 0.2
    %v366 = vmul.f32 %v278, 0.2
    %v367 = vmul.f32 %v283, 0.2
    %v368 = vmul.f32 %v286, 0.2
    %v369 = vmul.f32 %v291, 0.2
    %v370 = vmul.f32 %v294, 0.2
    %v371 = vmul.f32 %v299, 0.2
    %v372 = vmul.f32 %v302, 0.2
    %v373 = vmul.f32 %v307, 0.2
    %v374 = vmul.f32 %v310, 0.2
    %v375 = vmul.f32 %v315, 0.2
    %v376 = vmul.f32 %v318, 0.2
    %v377 = vmul.f32 %v323, 0.2
    %v378 = vsel %vm328, %v227, %v353
    %v379 = vsel %vm329, %v230, %v354
    %v380 = vsel %vm330, %v235, %v355
    %v381 = vsel %vm331, %v238, %v356
    %v382 = vsel %vm332, %v243, %v357
    %v383 = vsel %vm333, %v246, %v358
    %v384 = vsel %vm334, %v251, %v359
    %v385 = vsel %vm335, %v254, %v360
    %v386 = vsel %vm336, %v259, %v361
    %v387 = vsel %vm337, %v262, %v362
    %v388 = vsel %vm338, %v267, %v363
    %v389 = vsel %vm339, %v270, %v364
    %v390 = vsel %vm340, %v275, %v365
    %v391 = vsel %vm341, %v278, %v366
    %v392 = vsel %vm342, %v283, %v367
    %v393 = vsel %vm343, %v286, %v368
    %v394 = vsel %vm344, %v291, %v369
    %v395 = vsel %vm345, %v294, %v370
    %v396 = vsel %vm346, %v299, %v371
    %v397 = vsel %vm347, %v302, %v372
    %v398 = vsel %vm348, %v307, %v373
    %v399 = vsel %vm349, %v310, %v374
    %v400 = vsel %vm350, %v315, %v375
    %v401 = vsel %vm351, %v318, %v376
    %v402 = vsel %vm352, %v323, %v377
    %v403 = vpack.c.bf16 %v379, %v378
    %v404 = vpack.c.bf16 %v381, %v380
    %v405 = vpack.c.bf16 %v383, %v382
    %v406 = vpack.c.bf16 %v385, %v384
    %v407 = vpack.c.bf16 %v387, %v386
    %v408 = vpack.c.bf16 %v389, %v388
    %v409 = vpack.c.bf16 %v391, %v390
    %v410 = vpack.c.bf16 %v393, %v392
    %v411 = vpack.c.bf16 %v395, %v394
    %v412 = vpack.c.bf16 %v397, %v396
    %v413 = vpack.c.bf16 %v399, %v398
    %v414 = vpack.c.bf16 %v401, %v400
    %v415 = vpack.c.bf16 %v402, %v402
    %v429 = vunpack.c.l.b16 %v403
    %v430 = vunpack.c.h.b16 %v403
    %v431 = vunpack.c.l.b16 %v404
    %v432 = vunpack.c.h.b16 %v404
    %v433 = vunpack.c.l.b16 %v405
    %v434 = vunpack.c.h.b16 %v405
    %v435 = vunpack.c.l.b16 %v406
    %v436 = vunpack.c.h.b16 %v406
    %v437 = vunpack.c.l.b16 %v407
    %v438 = vunpack.c.h.b16 %v407
    %v439 = vunpack.c.l.b16 %v408
    %v440 = vunpack.c.h.b16 %v408
    %v441 = vunpack.c.l.b16 %v409
    %v442 = vunpack.c.h.b16 %v409
    %v443 = vunpack.c.l.b16 %v410
    %v444 = vunpack.c.h.b16 %v410
    %v445 = vunpack.c.l.b16 %v411
    %v446 = vunpack.c.h.b16 %v411
    %v447 = vunpack.c.l.b16 %v412
    %v448 = vunpack.c.h.b16 %v412
    %v449 = vunpack.c.l.b16 %v413
    %v450 = vunpack.c.h.b16 %v413
    %v451 = vunpack.c.l.b16 %v414
    %v452 = vunpack.c.h.b16 %v414
    %v453 = vunpack.c.l.b16 %v415
    %v454 = vpack.c.b16 %v429, %v429
    %v455 = vpack.c.b16 %v430, %v430
    %v456 = vpack.c.b16 %v431, %v431
    %v457 = vpack.c.b16 %v432, %v432
    %v458 = vpack.c.b16 %v433, %v433
    %v459 = vpack.c.b16 %v434, %v434
    %v460 = vpack.c.b16 %v435, %v435
    %v461 = vpack.c.b16 %v436, %v436
    %v462 = vpack.c.b16 %v437, %v437
    %v463 = vpack.c.b16 %v438, %v438
    %v464 = vpack.c.b16 %v439, %v439
    %v465 = vpack.c.b16 %v440, %v440
    %v466 = vpack.c.b16 %v441, %v441
    %v467 = vpack.c.b16 %v442, %v442
    %v468 = vpack.c.b16 %v443, %v443
    %v469 = vpack.c.b16 %v444, %v444
    %v470 = vpack.c.b16 %v445, %v445
    %v471 = vpack.c.b16 %v446, %v446
    %v472 = vpack.c.b16 %v447, %v447
    %v473 = vpack.c.b16 %v448, %v448
    %v474 = vpack.c.b16 %v449, %v449
    %v475 = vpack.c.b16 %v450, %v450
    %v476 = vpack.c.b16 %v451, %v451
    %v477 = vpack.c.b16 %v452, %v452
    %v478 = vpack.c.b16 %v453, %v453
    %504 = vst [vmem:[%s3] sm:$0xf] %v454
    %505 = vst [vmem:[%s3 + $0x4] sm:$0xf] %v455
    %506 = vst [vmem:[%s3 + $0x8] sm:$0xf] %v456
    %507 = vst [vmem:[%s3 + $0xc] sm:$0xf] %v457
    %508 = vst [vmem:[%s3 + $0x10] sm:$0xf] %v458
    %509 = vst [vmem:[%s3 + $0x14] sm:$0xf] %v459
    %510 = vst [vmem:[%s3 + $0x18] sm:$0xf] %v460
    %511 = vst [vmem:[%s3 + $0x1c] sm:$0xf] %v461
    %512 = vst [vmem:[%s3 + $0x20] sm:$0xf] %v462
    %513 = vst [vmem:[%s3 + $0x24] sm:$0xf] %v463
    %514 = vst [vmem:[%s3 + $0x28] sm:$0xf] %v464
    %515 = vst [vmem:[%s3 + $0x2c] sm:$0xf] %v465
    %516 = vst [vmem:[%s3 + $0x30] sm:$0xf] %v466
    %517 = vst [vmem:[%s3 + $0x34] sm:$0xf] %v467
    %518 = vst [vmem:[%s3 + $0x38] sm:$0xf] %v468
    %519 = vst [vmem:[%s3 + $0x3c] sm:$0xf] %v469
    %520 = vst [vmem:[%s3 + $0x40] sm:$0xf] %v470
    %521 = vst [vmem:[%s3 + $0x44] sm:$0xf] %v471
    %522 = vst [vmem:[%s3 + $0x48] sm:$0xf] %v472
    %523 = vst [vmem:[%s3 + $0x4c] sm:$0xf] %v473
    %524 = vst [vmem:[%s3 + $0x50] sm:$0xf] %v474
    %525 = vst [vmem:[%s3 + $0x54] sm:$0xf] %v475
    %526 = vst [vmem:[%s3 + $0x58] sm:$0xf] %v476
    %527 = vst [vmem:[%s3 + $0x5c] sm:$0xf] %v477
    %528 = vst [vmem:[%s3 + $0x60] sm:$0x3] %v478
    // Predicated region
    $region22: #{discriminator_forward.3} parent=1 // pred_check
      _
    $region23: #{discriminator_forward.3} parent=1 // pred_check_branch
      %530 = sbr.rel (0) target = $region25
    $region24: #{discriminator_forward.3} parent=1 // pred_region
      _
    $region25: #{discriminator_forward.3} parent=1 // pred_fallthru
      _
    // Predicated region
    $region26: #{discriminator_forward.3} parent=1 // pred_check
      _
    $region27: #{discriminator_forward.3} parent=1 // pred_check_branch
      %532 = sbr.rel (0) target = $region29
    $region28: #{discriminator_forward.3} parent=1 // pred_region
      _
    $region29: #{discriminator_forward.3} parent=1 // pred_fallthru
      _
    %533 = vsyncpa [#allocation3], 1
    %534 = vsyncpa [#allocation5], 1

// kernel: discriminator_forward.4
$region0: #{discriminator_forward.4}
  #allocation0 [shape = 'u32[]', space=smem, size = 0x4, offset = 0x4, fixed_abs, tag = 'smem constant byte address 0x4 - core index']
  #allocation1 [shape = 'u32[144,128]{1,0:T(1,128)}', space=vmem, size = 0x12000, scoped, tag = 'internal scratch']
  #allocation2 [shape = 'f32[98,128]{1,0:T(8,128)}', space=vmem, size = 0xd000, scoped, tag = 'scratch operand']
  %s0 = inlined_call_operand.vmem [shape: bf16[98,1024], index: 0, kind: input, shape index: {}]
  %s1 = inlined_call_operand.hbm [shape: bf16[1024,128], index: 1, kind: input, shape index: {}]
  %s2 = inlined_call_operand.hbm [shape: f32[1,128], index: 2, kind: input, shape index: {}]
  %s3 = inlined_call_operand.hbm [shape: f32[1,128], index: 3, kind: input, shape index: {}]
  %s4 = inlined_call_operand.hbm [shape: f32[1,128], index: 4, kind: input, shape index: {}]
  %s5 = inlined_call_operand.vmem [shape: bf16[98,128], index: 5, kind: output, shape index: {}]
  %s6 = sld [smem:[#allocation0]]
  $region115: #{discriminator_forward.4} parent=0
    _
  %s8 = ssub.s32 1, %s6
  %s9 = scalar_select 0, %s8, %s6
  $region1: #{discriminator_forward.4} parent=0
    #allocation3 [shape = 'u8[106496]{0}', space=vmem, size = 0x1a000, scoped, tag = 'input window, operand 0']
    #allocation4 [shape = 'u8[131072]{0}', space=vmem, size = 0x20000, scoped, tag = 'input window, operand 1']
    #allocation5 [shape = 's32[2]{0}', space=sflag, size = 0x8, scoped, tag = 'scoped memory for discriminator_forward.4']
    #allocation6 [shape = 'u8[512]{0}', space=vmem, size = 0x400, scoped, tag = 'input window, operand 2, single buffered']
    #allocation7 [shape = 's32[1]{0}', space=sflag, size = 0x4, scoped, tag = 'scoped memory for discriminator_forward.4']
    #allocation8 [shape = 'u8[512]{0}', space=vmem, size = 0x400, scoped, tag = 'input window, operand 3, single buffered']
    #allocation9 [shape = 'u8[512]{0}', space=vmem, size = 0x400, scoped, tag = 'input window, operand 4, single buffered']
    #allocation10 [shape = 's32[1]{0}', space=sflag, size = 0x4, scoped, tag = 'scoped memory for discriminator_forward.4']
    %10 = vsyncpa [#allocation5], 0
    %s11 = scalar_lea.sflag [#allocation5], 1
    %12 = vsyncpa %s11, 0
    %13 = vsyncpa [#allocation7], 0
    %14 = vsyncpa [#allocation10], 0
    loop: start=0, step=1, limit=6
    $region2: #{discriminator_forward.4} parent=1 // loop_pre_header
      _
    $region3: #{discriminator_forward.4} parent=1 // loop_header
      %s16 = sphi 0, %s20
      %p17 = scmp.ge.s32.totalorder %s16, 6
      %s26 = sphi 0, %s28
      %s29 = sphi 0, %s26
      %s30 = sphi 0, %s29
      %s46 = sphi 0, %s30
      %s52 = sphi 0, %s54
      %s55 = sphi 0, %s52
      %s56 = sphi 0, %s55
      %s72 = sphi 0, %s56
      %s76 = sphi 0, %s76
      %s78 = sphi 0, %s76
      %s79 = sphi 0, %s78
      %s93 = sphi 0, %s79
      %s97 = sphi 0, %s97
      %s99 = sphi 0, %s97
      %s100 = sphi 0, %s99
      %s114 = sphi 0, %s100
      %s118 = sphi 0, %s118
      %s120 = sphi 0, %s118
      %s121 = sphi 0, %s120
      %s135 = sphi 0, %s121
      %s139 = sphi 0, %s139
      %s141 = sphi 0, %s139
      %s142 = sphi 0, %s141
      %s156 = sphi 0, %s142
    $region4: #{discriminator_forward.4} parent=1 // loop_header_branch
      %19 = sbr.rel (%p17) target = $region8
    $region5: #{discriminator_forward.4} parent=1 // loop_body
      %s21 = ssub.s32 %s16, 1
      %s22 = ssub.s32 %s16, 2
      %s23 = sadd.s32 %s16, 1
      %s24 = ssub.s32 %s16, %s23
      %p25 = scmp.eq.s32.totalorder %s24, 0
      %s27 = sadd.s32 %s26, 1
      %s28 = scalar_select %p25, %s26, %s27
      %p31 = pneg %p25
      %p32 = scmp.eq.s32.totalorder %s16, 3
      %p33 = por %p31, %p32
      %p34 = scmp.ne.s32.totalorder %s26, %s29
      %p35 = scmp.eq.s32.totalorder %s16, 0
      %p36 = por %p34, %p35
      %p37 = scmp.ne.s32.totalorder %s26, %s29
      %p38 = scmp.eq.s32.totalorder %s21, 3
      %p39 = por %p37, %p38
      %p40 = scmp.ne.s32.totalorder %s29, %s30
      %p41 = scmp.eq.s32.totalorder %s21, 0
      %p42 = por %p40, %p41
      %p43 = scmp.ne.s32.totalorder %s29, %s30
      %p44 = scmp.eq.s32.totalorder %s22, 3
      %p45 = por %p43, %p44
      %p47 = scmp.ne.s32.totalorder %s30, %s46
      %p48 = scmp.eq.s32.totalorder %s22, 0
      %p49 = por %p47, %p48
      %s50 = ssub.s32 %s16, %s23
      %p51 = scmp.eq.s32.totalorder %s50, 0
      %s53 = sadd.s32 %s52, 1
      %s54 = scalar_select %p51, %s52, %s53
      %p57 = pneg %p51
      %p58 = scmp.eq.s32.totalorder %s16, 3
      %p59 = por %p57, %p58
      %p60 = scmp.ne.s32.totalorder %s52, %s55
      %p61 = scmp.eq.s32.totalorder %s16, 0
      %p62 = por %p60, %p61
      %p63 = scmp.ne.s32.totalorder %s52, %s55
      %p64 = scmp.eq.s32.totalorder %s21, 3
      %p65 = por %p63, %p64
      %p66 = scmp.ne.s32.totalorder %s55, %s56
      %p67 = scmp.eq.s32.totalorder %s21, 0
      %p68 = por %p66, %p67
      %p69 = scmp.ne.s32.totalorder %s55, %s56
      %p70 = scmp.eq.s32.totalorder %s22, 3
      %p71 = por %p69, %p70
      %p73 = scmp.ne.s32.totalorder %s56, %s72
      %p74 = scmp.eq.s32.totalorder %s22, 0
      %p75 = por %p73, %p74
      %s77 = sadd.s32 %s76, 1
      %p80 = scmp.eq.s32.totalorder %s16, 3
      %p81 = scmp.ne.s32.totalorder %s76, %s78
      %p82 = scmp.eq.s32.totalorder %s16, 0
      %p83 = por %p81, %p82
      %p84 = scmp.ne.s32.totalorder %s76, %s78
      %p85 = scmp.eq.s32.totalorder %s21, 3
      %p86 = por %p84, %p85
      %p87 = scmp.ne.s32.totalorder %s78, %s79
      %p88 = scmp.eq.s32.totalorder %s21, 0
      %p89 = por %p87, %p88
      %p90 = scmp.ne.s32.totalorder %s78, %s79
      %p91 = scmp.eq.s32.totalorder %s22, 3
      %p92 = por %p90, %p91
      %p94 = scmp.ne.s32.totalorder %s79, %s93
      %p95 = scmp.eq.s32.totalorder %s22, 0
      %p96 = por %p94, %p95
      %s98 = sadd.s32 %s97, 1
      %p101 = scmp.eq.s32.totalorder %s16, 3
      %p102 = scmp.ne.s32.totalorder %s97, %s99
      %p103 = scmp.eq.s32.totalorder %s16, 0
      %p104 = por %p102, %p103
      %p105 = scmp.ne.s32.totalorder %s97, %s99
      %p106 = scmp.eq.s32.totalorder %s21, 3
      %p107 = por %p105, %p106
      %p108 = scmp.ne.s32.totalorder %s99, %s100
      %p109 = scmp.eq.s32.totalorder %s21, 0
      %p110 = por %p108, %p109
      %p111 = scmp.ne.s32.totalorder %s99, %s100
      %p112 = scmp.eq.s32.totalorder %s22, 3
      %p113 = por %p111, %p112
      %p115 = scmp.ne.s32.totalorder %s100, %s114
      %p116 = scmp.eq.s32.totalorder %s22, 0
      %p117 = por %p115, %p116
      %s119 = sadd.s32 %s118, 1
      %p122 = scmp.eq.s32.totalorder %s16, 3
      %p123 = scmp.ne.s32.totalorder %s118, %s120
      %p124 = scmp.eq.s32.totalorder %s16, 0
      %p125 = por %p123, %p124
      %p126 = scmp.ne.s32.totalorder %s118, %s120
      %p127 = scmp.eq.s32.totalorder %s21, 3
      %p128 = por %p126, %p127
      %p129 = scmp.ne.s32.totalorder %s120, %s121
      %p130 = scmp.eq.s32.totalorder %s21, 0
      %p131 = por %p129, %p130
      %p132 = scmp.ne.s32.totalorder %s120, %s121
      %p133 = scmp.eq.s32.totalorder %s22, 3
      %p134 = por %p132, %p133
      %p136 = scmp.ne.s32.totalorder %s121, %s135
      %p137 = scmp.eq.s32.totalorder %s22, 0
      %p138 = por %p136, %p137
      %s140 = sadd.s32 %s139, 1
      %p143 = scmp.eq.s32.totalorder %s16, 3
      %p144 = scmp.ne.s32.totalorder %s139, %s141
      %p145 = scmp.eq.s32.totalorder %s16, 0
      %p146 = por %p144, %p145
      %p147 = scmp.ne.s32.totalorder %s139, %s141
      %p148 = scmp.eq.s32.totalorder %s21, 3
      %p149 = por %p147, %p148
      %p150 = scmp.ne.s32.totalorder %s141, %s142
      %p151 = scmp.eq.s32.totalorder %s21, 0
      %p152 = por %p150, %p151
      %p153 = scmp.ne.s32.totalorder %s141, %s142
      %p154 = scmp.eq.s32.totalorder %s22, 3
      %p155 = por %p153, %p154
      %p157 = scmp.ne.s32.totalorder %s142, %s156
      %p158 = scmp.eq.s32.totalorder %s22, 0
      %p159 = por %p157, %p158
      %p160 = scmp.le.s32.totalorder 1, %s16
      %p161 = scmp.lt.s32.totalorder %s16, 5
      %p162 = pnand %p160, %p161
      %p163 = pneg %p162
      // Predicated region
      $region9: #{discriminator_forward.4} parent=5 // pred_check
        _
      $region10: #{discriminator_forward.4} parent=5 // pred_check_branch
        %165 = sbr.rel (%p162) target = $region12
      $region11: #{discriminator_forward.4} parent=5 // pred_region
        %s166 = ssub.s32 %s16, 1
        // Predicated region
        $region13: #{discriminator_forward.4} parent=11 // pred_check
          %p167 = pneg %p89
        $region14: #{discriminator_forward.4} parent=11 // pred_check_branch
          %169 = sbr.rel (%p167) target = $region16
        $region15: #{discriminator_forward.4} parent=11 // pred_region
          %s171 = ssub.s32 16, 16
          %172 = vsyncadd [#allocation7], %s171
          %s174 = sshll.u32 [#allocation6], 4
          %s175 = int_to_ptr.vmem [resolvable:$true] %s174
          %177 = dma.hbm_to_vmem [thread:$0]  %s2, 16, %s175, [#allocation7]
        $region16: #{discriminator_forward.4} parent=11 // pred_fallthru
          _
        // Predicated region
        $region17: #{discriminator_forward.4} parent=11 // pred_check
          %p178 = pneg %p110
        $region18: #{discriminator_forward.4} parent=11 // pred_check_branch
          %180 = sbr.rel (%p178) target = $region20
        $region19: #{discriminator_forward.4} parent=11 // pred_region
          %s182 = ssub.s32 16, 16
          %183 = vsyncadd [#allocation7], %s182
          %s185 = sshll.u32 [#allocation8], 4
          %s186 = int_to_ptr.vmem [resolvable:$true] %s185
          %188 = dma.hbm_to_vmem [thread:$0]  %s3, 16, %s186, [#allocation7]
        $region20: #{discriminator_forward.4} parent=11 // pred_fallthru
          _
        // Predicated region
        $region21: #{discriminator_forward.4} parent=11 // pred_check
          %p189 = pneg %p131
        $region22: #{discriminator_forward.4} parent=11 // pred_check_branch
          %191 = sbr.rel (%p189) target = $region24
        $region23: #{discriminator_forward.4} parent=11 // pred_region
          %s193 = ssub.s32 16, 16
          %194 = vsyncadd [#allocation10], %s193
          %s196 = sshll.u32 [#allocation9], 4
          %s197 = int_to_ptr.vmem [resolvable:$true] %s196
          %199 = dma.hbm_to_vmem [thread:$0]  %s4, 16, %s197, [#allocation10]
        $region24: #{discriminator_forward.4} parent=11 // pred_fallthru
          _
      $region12: #{discriminator_forward.4} parent=5 // pred_fallthru
        _
      %p200 = scmp.lt.s32.totalorder %s16, 4
      // Predicated region
      $region25: #{discriminator_forward.4} parent=5 // pred_check
        %p201 = pneg %p200
      $region26: #{discriminator_forward.4} parent=5 // pred_check_branch
        %203 = sbr.rel (%p201) target = $region28
      $region27: #{discriminator_forward.4} parent=5 // pred_region
        // Predicated region
        $region29: #{discriminator_forward.4} parent=27 // pred_check
          %p204 = pneg %p36
        $region30: #{discriminator_forward.4} parent=27 // pred_check_branch
          %206 = sbr.rel (%p204) target = $region32
        $region31: #{discriminator_forward.4} parent=27 // pred_region
          %s207 = sand.u32 %s26, 1
          %s208 = sand.u32 %s26, 1
          %s209 = smul.addr %s208, 104
          %s210 = scalar_lea.vmem [#allocation3], %s209
          %s211 = smul.u32 2, %s16
          %s212 = smul.addr %s211, 4
          %s213 = scalar_lea.vmem %s0, %s212
          // Predicated region
          $region33: #{discriminator_forward.4} parent=31 // pred_check
            _
          $region34: #{discriminator_forward.4} parent=31 // pred_check_branch
            %215 = sbr.rel (0) target = $region36
          $region35: #{discriminator_forward.4} parent=31 // pred_region
            // Predicated region
            $region37: #{discriminator_forward.4} parent=35 // pred_check
              _
            $region38: #{discriminator_forward.4} parent=35 // pred_check_branch
              %217 = sbr.rel (0) target = $region40
            $region39: #{discriminator_forward.4} parent=35 // pred_region
              // Predicated region
              $region52: #{discriminator_forward.4} parent=39 // pred_check
                _
              $region53: #{discriminator_forward.4} parent=39 // pred_check_branch
                %256 = sbr.rel (0) target = $region55
              $region54: #{discriminator_forward.4} parent=39 // pred_region
                loop: start=0, step=1, limit=1
                $region56: #{discriminator_forward.4} parent=54 // loop_pre_header
                  _
                $region57: #{discriminator_forward.4} parent=54 // loop_header
                  %s258 = sphi 0, %s262
                  %p259 = scmp.ge.s32.totalorder %s258, 1
                  %s263 = sphi %s213, %s213
                  %s264 = sphi %s210, %s210
                $region58: #{discriminator_forward.4} parent=54 // loop_header_branch
                  %261 = sbr.rel (%p259) target = $region62
                $region59: #{discriminator_forward.4} parent=54 // loop_body
                  %v265 = vld [vmem:[%s263] sm:$0xff]
                  %266 = vst [vmem:[%s264] sm:$0xff] %v265
                  %v267 = vld [vmem:[%s263 + $0x20] sm:$0xff]
                  %268 = vst [vmem:[%s264 + $0x8] sm:$0xff] %v267
                  %v269 = vld [vmem:[%s263 + $0x40] sm:$0xff]
                  %270 = vst [vmem:[%s264 + $0x10] sm:$0xff] %v269
                  %v271 = vld [vmem:[%s263 + $0x60] sm:$0xff]
                  %272 = vst [vmem:[%s264 + $0x18] sm:$0xff] %v271
                  %v273 = vld [vmem:[%s263 + $0x80] sm:$0xff]
                  %274 = vst [vmem:[%s264 + $0x20] sm:$0xff] %v273
                  %v275 = vld [vmem:[%s263 + $0xa0] sm:$0xff]
                  %276 = vst [vmem:[%s264 + $0x28] sm:$0xff] %v275
                  %v277 = vld [vmem:[%s263 + $0xc0] sm:$0xff]
                  %278 = vst [vmem:[%s264 + $0x30] sm:$0xff] %v277
                  %v279 = vld [vmem:[%s263 + $0xe0] sm:$0xff]
                  %280 = vst [vmem:[%s264 + $0x38] sm:$0xff] %v279
                  %v281 = vld [vmem:[%s263 + $0x100] sm:$0xff]
                  %282 = vst [vmem:[%s264 + $0x40] sm:$0xff] %v281
                  %v283 = vld [vmem:[%s263 + $0x120] sm:$0xff]
                  %284 = vst [vmem:[%s264 + $0x48] sm:$0xff] %v283
                  %v285 = vld [vmem:[%s263 + $0x140] sm:$0xff]
                  %286 = vst [vmem:[%s264 + $0x50] sm:$0xff] %v285
                  %v287 = vld [vmem:[%s263 + $0x160] sm:$0xff]
                  %288 = vst [vmem:[%s264 + $0x58] sm:$0xff] %v287
                  %v289 = vld [vmem:[%s263 + $0x180] sm:$0xff]
                  %290 = vst [vmem:[%s264 + $0x60] sm:$0xff] %v289
                $region60: #{discriminator_forward.4} parent=54 // loop_footer
                  %s262 = sadd.s32 1, %s258
                $region61: #{discriminator_forward.4} parent=54 // loop_footer_branch
                  %257 = sbr.rel target = $region57
                $region62: #{discriminator_forward.4} parent=54 // loop_exit
                  _
              $region55: #{discriminator_forward.4} parent=39 // pred_fallthru
                _
              // Predicated region
              $region63: #{discriminator_forward.4} parent=39 // pred_check
                _
              $region64: #{discriminator_forward.4} parent=39 // pred_check_branch
                %292 = sbr.rel target = $region66
              $region65: #{discriminator_forward.4} parent=39 // pred_region
                _
              $region66: #{discriminator_forward.4} parent=39 // pred_fallthru
                _
            $region40: #{discriminator_forward.4} parent=35 // pred_fallthru
              _
            // Predicated region
            $region41: #{discriminator_forward.4} parent=35 // pred_check
              _
            $region42: #{discriminator_forward.4} parent=35 // pred_check_branch
              %219 = sbr.rel target = $region44
            $region43: #{discriminator_forward.4} parent=35 // pred_region
              loop: start=0, step=1, limit=1
              $region45: #{discriminator_forward.4} parent=43 // loop_pre_header
                _
              $region46: #{discriminator_forward.4} parent=43 // loop_header
                %s222 = sphi 0, %s226
                %p223 = scmp.ge.s32.totalorder %s222, 1
                %s227 = sphi %s213, %s213
                %s228 = sphi %s210, %s210
              $region47: #{discriminator_forward.4} parent=43 // loop_header_branch
                %225 = sbr.rel (%p223) target = $region51
              $region48: #{discriminator_forward.4} parent=43 // loop_body
                %v229 = vld [vmem:[%s227] sm:$0xff]
                %230 = vst [vmem:[%s228] sm:$0xff] %v229
                %v231 = vld [vmem:[%s227 + $0x20] sm:$0xff]
                %232 = vst [vmem:[%s228 + $0x8] sm:$0xff] %v231
                %v233 = vld [vmem:[%s227 + $0x40] sm:$0xff]
                %234 = vst [vmem:[%s228 + $0x10] sm:$0xff] %v233
                %v235 = vld [vmem:[%s227 + $0x60] sm:$0xff]
                %236 = vst [vmem:[%s228 + $0x18] sm:$0xff] %v235
                %v237 = vld [vmem:[%s227 + $0x80] sm:$0xff]
                %238 = vst [vmem:[%s228 + $0x20] sm:$0xff] %v237
                %v239 = vld [vmem:[%s227 + $0xa0] sm:$0xff]
                %240 = vst [vmem:[%s228 + $0x28] sm:$0xff] %v239
                %v241 = vld [vmem:[%s227 + $0xc0] sm:$0xff]
                %242 = vst [vmem:[%s228 + $0x30] sm:$0xff] %v241
                %v243 = vld [vmem:[%s227 + $0xe0] sm:$0xff]
                %244 = vst [vmem:[%s228 + $0x38] sm:$0xff] %v243
                %v245 = vld [vmem:[%s227 + $0x100] sm:$0xff]
                %246 = vst [vmem:[%s228 + $0x40] sm:$0xff] %v245
                %v247 = vld [vmem:[%s227 + $0x120] sm:$0xff]
                %248 = vst [vmem:[%s228 + $0x48] sm:$0xff] %v247
                %v249 = vld [vmem:[%s227 + $0x140] sm:$0xff]
                %250 = vst [vmem:[%s228 + $0x50] sm:$0xff] %v249
                %v251 = vld [vmem:[%s227 + $0x160] sm:$0xff]
                %252 = vst [vmem:[%s228 + $0x58] sm:$0xff] %v251
                %v253 = vld [vmem:[%s227 + $0x180] sm:$0xff]
                %254 = vst [vmem:[%s228 + $0x60] sm:$0xff] %v253
              $region49: #{discriminator_forward.4} parent=43 // loop_footer
                %s226 = sadd.s32 1, %s222
              $region50: #{discriminator_forward.4} parent=43 // loop_footer_branch
                %221 = sbr.rel target = $region46
              $region51: #{discriminator_forward.4} parent=43 // loop_exit
                _
            $region44: #{discriminator_forward.4} parent=35 // pred_fallthru
              _
          $region36: #{discriminator_forward.4} parent=31 // pred_fallthru
            _
          %293 = vnop
        $region32: #{discriminator_forward.4} parent=27 // pred_fallthru
          _
        // Predicated region
        $region67: #{discriminator_forward.4} parent=27 // pred_check
          %p294 = pneg %p62
        $region68: #{discriminator_forward.4} parent=27 // pred_check_branch
          %296 = sbr.rel (%p294) target = $region70
        $region69: #{discriminator_forward.4} parent=27 // pred_region
          %s297 = sand.u32 %s52, 1
          %s298 = scalar_lea.sflag [#allocation5], %s297
          %s299 = sand.u32 %s52, 1
          %s300 = smul.addr %s299, 128
          %s301 = scalar_lea.vmem [#allocation4], %s300
          %s302 = smul.u32 32, %s16
          %s304 = ssub.s32 2048, 2048
          %305 = vsyncadd %s298, %s304
          %s306 = smul.addr %s302, 64
          %s307 = scalar_lea.hbm %s1, %s306
          %s308 = sshll.u32 %s301, 4
          %s309 = int_to_ptr.vmem [resolvable:$true] %s308
          %314 = dma.hbm_to_vmem [thread:$0]  %s307, 2048, %s309, %s298, 64, 64, 4
        $region70: #{discriminator_forward.4} parent=27 // pred_fallthru
          _
      $region28: #{discriminator_forward.4} parent=5 // pred_fallthru
        _
      %p315 = scmp.le.s32.totalorder 1, %s16
      %p316 = scmp.lt.s32.totalorder %s16, 5
      %p317 = pnand %p315, %p316
      %p318 = pneg %p317
      // Predicated region
      $region71: #{discriminator_forward.4} parent=5 // pred_check
        _
      $region72: #{discriminator_forward.4} parent=5 // pred_check_branch
        %320 = sbr.rel (%p317) target = $region74
      $region73: #{discriminator_forward.4} parent=5 // pred_region
        %s321 = ssub.s32 %s16, 1
        %s322 = sand.u32 %s29, 1
        %s323 = sand.u32 %s29, 1
        %s324 = smul.addr %s323, 104
        %s325 = scalar_lea.vmem [#allocation3], %s324
        // Predicated region
        $region75: #{discriminator_forward.4} parent=73 // pred_check
          %p326 = pneg %p42
        $region76: #{discriminator_forward.4} parent=73 // pred_check_branch
          %328 = sbr.rel (%p326) target = $region78
        $region77: #{discriminator_forward.4} parent=73 // pred_region
          _
        $region78: #{discriminator_forward.4} parent=73 // pred_fallthru
          _
        %s329 = sand.u32 %s55, 1
        %s330 = scalar_lea.sflag [#allocation5], %s329
        %s331 = sand.u32 %s55, 1
        %s332 = smul.addr %s331, 128
        %s333 = scalar_lea.vmem [#allocation4], %s332
        // Predicated region
        $region79: #{discriminator_forward.4} parent=73 // pred_check
          %p334 = pneg %p68
        $region80: #{discriminator_forward.4} parent=73 // pred_check_branch
          %336 = sbr.rel (%p334) target = $region82
        $region81: #{discriminator_forward.4} parent=73 // pred_region
          %337 = dma.done %s330, 2048
        $region82: #{discriminator_forward.4} parent=73 // pred_fallthru
          _
        // Predicated region
        $region83: #{discriminator_forward.4} parent=73 // pred_check
          %p338 = pneg %p89
        $region84: #{discriminator_forward.4} parent=73 // pred_check_branch
          %340 = sbr.rel (%p338) target = $region86
        $region85: #{discriminator_forward.4} parent=73 // pred_region
          %341 = dma.done [#allocation7], 16
        $region86: #{discriminator_forward.4} parent=73 // pred_fallthru
          _
        // Predicated region
        $region87: #{discriminator_forward.4} parent=73 // pred_check
          %p342 = pneg %p110
        $region88: #{discriminator_forward.4} parent=73 // pred_check_branch
          %344 = sbr.rel (%p342) target = $region90
        $region89: #{discriminator_forward.4} parent=73 // pred_region
          %345 = dma.done [#allocation7], 16
        $region90: #{discriminator_forward.4} parent=73 // pred_fallthru
          _
        // Predicated region
        $region91: #{discriminator_forward.4} parent=73 // pred_check
          %p346 = pneg %p131
        $region92: #{discriminator_forward.4} parent=73 // pred_check_branch
          %348 = sbr.rel (%p346) target = $region94
        $region93: #{discriminator_forward.4} parent=73 // pred_region
          %349 = dma.done [#allocation10], 16
        $region94: #{discriminator_forward.4} parent=73 // pred_fallthru
          _
        %s350 = sand.u32 %s29, 1
        %s351 = sand.u32 %s29, 1
        %s352 = smul.addr %s351, 104
        %s353 = scalar_lea.vmem [#allocation3], %s352
        %p354 = pneg %p42
        %p355 = pneg %p39
        %s356 = sand.u32 %s55, 1
        %s357 = scalar_lea.sflag [#allocation5], %s356
        %s358 = sand.u32 %s55, 1
        %s359 = smul.addr %s358, 128
        %s360 = scalar_lea.vmem [#allocation4], %s359
        %p361 = pneg %p68
        %p362 = pneg %p65
        %p363 = pneg %p89
        %p364 = pneg %p86
        %p365 = pneg %p110
        %p366 = pneg %p107
        %p367 = pneg %p131
        %p368 = pneg %p128
        %p369 = pneg %p152
        %p370 = pneg %p149
        %s371 = smul.u32 2, %s21
        %s372 = smul.u32 32, %s21
        %p374 = scmp.eq.s32.totalorder %s21, 0
        // Predicated region
        $region95: #{discriminator_forward.4} parent=73 // pred_check
          %p375 = pneg %p374
        $region96: #{discriminator_forward.4} parent=73 // pred_check_branch
          %377 = sbr.rel (%p375) target = $region98
        $region97: #{discriminator_forward.4} parent=73 // pred_region
          %v378 = vld [vmem:[#allocation6] sm:$0x1]
          %v380 = vlaneseq
          %v381 = vshrl.u32 %v380, 7
          %v382 = vsub.s32 0, %v381
          %v383 = vrot.slane %v378, %v382
          %385 = vst [vmem:[#allocation2] sm:$0xff] %v383
          %386 = vst [vmem:[#allocation2 + $0x8] sm:$0xff] %v383
          %387 = vst [vmem:[#allocation2 + $0x10] sm:$0xff] %v383
          %388 = vst [vmem:[#allocation2 + $0x18] sm:$0xff] %v383
          %389 = vst [vmem:[#allocation2 + $0x20] sm:$0xff] %v383
          %390 = vst [vmem:[#allocation2 + $0x28] sm:$0xff] %v383
          %391 = vst [vmem:[#allocation2 + $0x30] sm:$0xff] %v383
          %392 = vst [vmem:[#allocation2 + $0x38] sm:$0xff] %v383
          %393 = vst [vmem:[#allocation2 + $0x40] sm:$0xff] %v383
          %394 = vst [vmem:[#allocation2 + $0x48] sm:$0xff] %v383
          %395 = vst [vmem:[#allocation2 + $0x50] sm:$0xff] %v383
          %396 = vst [vmem:[#allocation2 + $0x58] sm:$0xff] %v383
          %397 = vst [vmem:[#allocation2 + $0x60] sm:$0x3] %v383
        $region98: #{discriminator_forward.4} parent=73 // pred_fallthru
          _
        %v398 = vld [vmem:[#allocation2] sm:$0xff]
        %v399 = vld [vmem:[#allocation2 + $0x8] sm:$0xff]
        %v400 = vld [vmem:[#allocation2 + $0x10] sm:$0xff]
        %v401 = vld [vmem:[#allocation2 + $0x18] sm:$0xff]
        %v402 = vld [vmem:[#allocation2 + $0x20] sm:$0xff]
        %v403 = vld [vmem:[#allocation2 + $0x28] sm:$0xff]
        %v404 = vld [vmem:[#allocation2 + $0x30] sm:$0xff]
        %v405 = vld [vmem:[#allocation2 + $0x38] sm:$0xff]
        %v406 = vld [vmem:[#allocation2 + $0x40] sm:$0xff]
        %v407 = vld [vmem:[#allocation2 + $0x48] sm:$0xff]
        %v408 = vld [vmem:[#allocation2 + $0x50] sm:$0xff]
        %v409 = vld [vmem:[#allocation2 + $0x58] sm:$0xff]
        %v410 = vld [vmem:[#allocation2 + $0x60] sm:$0x3]
        %v411 = vld [vmem:[%s325] sm:$0xff]
        %v412 = vld [vmem:[%s325 + $0x8] sm:$0xff]
        %v413 = vld [vmem:[%s325 + $0x10] sm:$0xff]
        %v414 = vld [vmem:[%s325 + $0x18] sm:$0xff]
        %v415 = vld [vmem:[%s325 + $0x20] sm:$0xff]
        %v416 = vld [vmem:[%s325 + $0x28] sm:$0xff]
        %v417 = vld [vmem:[%s325 + $0x30] sm:$0xff]
        %v418 = vld [vmem:[%s325 + $0x38] sm:$0xff]
        %v419 = vld [vmem:[%s325 + $0x40] sm:$0xff]
        %v420 = vld [vmem:[%s325 + $0x48] sm:$0xff]
        %v421 = vld [vmem:[%s325 + $0x50] sm:$0xff]
        %v422 = vld [vmem:[%s325 + $0x58] sm:$0xff]
        %v423 = vld [vmem:[%s325 + $0x60] sm:$0x11]
        %v424 = vld [vmem:[%s333] sm:$0xf]
        %v425 = vld [vmem:[%s333 + $0x4] sm:$0xf]
        %v426 = vld [vmem:[%s333 + $0x8] sm:$0xf]
        %v427 = vld [vmem:[%s333 + $0xc] sm:$0xf]
        %v428 = vld [vmem:[%s333 + $0x10] sm:$0xf]
        %v429 = vld [vmem:[%s333 + $0x14] sm:$0xf]
        %v430 = vld [vmem:[%s333 + $0x18] sm:$0xf]
        %v431 = vld [vmem:[%s333 + $0x1c] sm:$0xf]
        %v432 = vld [vmem:[%s333 + $0x20] sm:$0xf]
        %v433 = vld [vmem:[%s333 + $0x24] sm:$0xf]
        %v434 = vld [vmem:[%s333 + $0x28] sm:$0xf]
        %v435 = vld [vmem:[%s333 + $0x2c] sm:$0xf]
        %v436 = vld [vmem:[%s333 + $0x30] sm:$0xf]
        %v437 = vld [vmem:[%s333 + $0x34] sm:$0xf]
        %v438 = vld [vmem:[%s333 + $0x38] sm:$0xf]
        %v439 = vld [vmem:[%s333 + $0x3c] sm:$0xf]
        %v440 = vld [vmem:[%s333 + $0x40] sm:$0xf]
        %v441 = vld [vmem:[%s333 + $0x44] sm:$0xf]
        %v442 = vld [vmem:[%s333 + $0x48] sm:$0xf]
        %v443 = vld [vmem:[%s333 + $0x4c] sm:$0xf]
        %v444 = vld [vmem:[%s333 + $0x50] sm:$0xf]
        %v445 = vld [vmem:[%s333 + $0x54] sm:$0xf]
        %v446 = vld [vmem:[%s333 + $0x58] sm:$0xf]
        %v447 = vld [vmem:[%s333 + $0x5c] sm:$0xf]
        %v448 = vld [vmem:[%s333 + $0x60] sm:$0xf]
        %v449 = vld [vmem:[%s333 + $0x64] sm:$0xf]
        %v450 = vld [vmem:[%s333 + $0x68] sm:$0xf]
        %v451 = vld [vmem:[%s333 + $0x6c] sm:$0xf]
        %v452 = vld [vmem:[%s333 + $0x70] sm:$0xf]
        %v453 = vld [vmem:[%s333 + $0x74] sm:$0xf]
        %v454 = vld [vmem:[%s333 + $0x78] sm:$0xf]
        %v455 = vld [vmem:[%s333 + $0x7c] sm:$0xf]
        %v469 = vunpack.c.l.b16 %v411
        %v470 = vunpack.c.h.b16 %v411
        %v471 = vunpack.c.l.b16 %v412
        %v472 = vunpack.c.h.b16 %v412
        %v473 = vunpack.c.l.b16 %v413
        %v474 = vunpack.c.h.b16 %v413
        %v475 = vunpack.c.l.b16 %v414
        %v476 = vunpack.c.h.b16 %v414
        %v477 = vunpack.c.l.b16 %v415
        %v478 = vunpack.c.h.b16 %v415
        %v479 = vunpack.c.l.b16 %v416
        %v480 = vunpack.c.h.b16 %v416
        %v481 = vunpack.c.l.b16 %v417
        %v482 = vunpack.c.h.b16 %v417
        %v483 = vunpack.c.l.b16 %v418
        %v484 = vunpack.c.h.b16 %v418
        %v485 = vunpack.c.l.b16 %v419
        %v486 = vunpack.c.h.b16 %v419
        %v487 = vunpack.c.l.b16 %v420
        %v488 = vunpack.c.h.b16 %v420
        %v489 = vunpack.c.l.b16 %v421
        %v490 = vunpack.c.h.b16 %v421
        %v491 = vunpack.c.l.b16 %v422
        %v492 = vunpack.c.h.b16 %v422
        %v493 = vunpack.c.l.b16 %v423
        %v494 = vunpack.c.h.b16 %v423
        %v495 = vpack.c.b16 %v471, %v469
        %v496 = vpack.c.b16 %v472, %v470
        %v497 = vpack.c.b16 %v475, %v473
        %v498 = vpack.c.b16 %v476, %v474
        %v499 = vpack.c.b16 %v479, %v477
        %v500 = vpack.c.b16 %v480, %v478
        %v501 = vpack.c.b16 %v483, %v481
        %v502 = vpack.c.b16 %v484, %v482
        %v503 = vpack.c.b16 %v487, %v485
        %v504 = vpack.c.b16 %v488, %v486
        %v505 = vpack.c.b16 %v491, %v489
        %v506 = vpack.c.b16 %v492, %v490
        %v507 = vpack.c.b16 %v493, %v493
        %v508 = vpack.c.b16 %v494, %v494
        %v555 = vunpack.c.l.b16 %v424
        %v556 = vunpack.c.l.b16 %v425
        %v557 = vunpack.c.l.b16 %v426
        %v558 = vunpack.c.l.b16 %v427
        %v559 = vunpack.c.l.b16 %v428
        %v560 = vunpack.c.l.b16 %v429
        %v561 = vunpack.c.l.b16 %v430
        %v562 = vunpack.c.l.b16 %v431
        %v563 = vunpack.c.l.b16 %v432
        %v564 = vunpack.c.l.b16 %v433
        %v565 = vunpack.c.l.b16 %v434
        %v566 = vunpack.c.l.b16 %v435
        %v567 = vunpack.c.l.b16 %v436
        %v568 = vunpack.c.l.b16 %v437
        %v569 = vunpack.c.l.b16 %v438
        %v570 = vunpack.c.l.b16 %v439
        %v571 = vunpack.c.l.b16 %v440
        %v572 = vunpack.c.l.b16 %v441
        %v573 = vunpack.c.l.b16 %v442
        %v574 = vunpack.c.l.b16 %v443
        %v575 = vunpack.c.l.b16 %v444
        %v576 = vunpack.c.l.b16 %v445
        %v577 = vunpack.c.l.b16 %v446
        %v578 = vunpack.c.l.b16 %v447
        %v579 = vunpack.c.l.b16 %v448
        %v580 = vunpack.c.l.b16 %v449
        %v581 = vunpack.c.l.b16 %v450
        %v582 = vunpack.c.l.b16 %v451
        %v583 = vunpack.c.l.b16 %v452
        %v584 = vunpack.c.l.b16 %v453
        %v585 = vunpack.c.l.b16 %v454
        %v586 = vunpack.c.l.b16 %v455
        %v587 = vpack.c.b16 %v556, %v555
        %v588 = vpack.c.b16 %v558, %v557
        %v589 = vpack.c.b16 %v560, %v559
        %v590 = vpack.c.b16 %v562, %v561
        %v591 = vpack.c.b16 %v564, %v563
        %v592 = vpack.c.b16 %v566, %v565
        %v593 = vpack.c.b16 %v568, %v567
        %v594 = vpack.c.b16 %v570, %v569
        %v595 = vpack.c.b16 %v572, %v571
        %v596 = vpack.c.b16 %v574, %v573
        %v597 = vpack.c.b16 %v576, %v575
        %v598 = vpack.c.b16 %v578, %v577
        %v599 = vpack.c.b16 %v580, %v579
        %v600 = vpack.c.b16 %v582, %v581
        %v601 = vpack.c.b16 %v584, %v583
        %v602 = vpack.c.b16 %v586, %v585
        %619 = vmatprep.subr.bf16.mxu0 0
        %620 = vmatpush1.bf16.msra.mxu0 %v587
        %621 = vmatprep.subr.bf16.mxu0 0
        %622 = vmatpush1.bf16.msra.mxu0 %v588
        %623 = vmatprep.subr.bf16.mxu0 0
        %624 = vmatpush1.bf16.msra.mxu0 %v589
        %625 = vmatprep.subr.bf16.mxu0 0
        %626 = vmatpush1.bf16.msra.mxu0 %v590
        %627 = vmatprep.subr.bf16.mxu0 0
        %628 = vmatpush1.bf16.msra.mxu0 %v591
        %629 = vmatprep.subr.bf16.mxu0 0
        %630 = vmatpush1.bf16.msra.mxu0 %v592
        %631 = vmatprep.subr.bf16.mxu0 0
        %632 = vmatpush1.bf16.msra.mxu0 %v593
        %633 = vmatprep.subr.bf16.mxu0 0
        %634 = vmatpush1.bf16.msra.mxu0 %v594
        %635 = vmatprep.subr.bf16.mxu0 0
        %636 = vmatpush1.bf16.msra.mxu0 %v595
        %637 = vmatprep.subr.bf16.mxu0 0
        %638 = vmatpush1.bf16.msra.mxu0 %v596
        %639 = vmatprep.subr.bf16.mxu0 0
        %640 = vmatpush1.bf16.msra.mxu0 %v597
        %641 = vmatprep.subr.bf16.mxu0 0
        %642 = vmatpush1.bf16.msra.mxu0 %v598
        %643 = vmatprep.subr.bf16.mxu0 0
        %644 = vmatpush1.bf16.msra.mxu0 %v599
        %645 = vmatprep.subr.bf16.mxu0 0
        %646 = vmatpush1.bf16.msra.mxu0 %v600
        %647 = vmatprep.subr.bf16.mxu0 0
        %648 = vmatpush1.bf16.msra.mxu0 %v601
        %649 = vmatprep.subr.bf16.mxu0 0
        %650 = vmatpush1.bf16.msra.mxu0 %v602
        %651 = vmatprep.mubr.bf16.mxu0 %v496
        %652 = vmatmul.mubr.bf16.gmra.mrb[0].mxu0 %v495
        %v653 = vpop.f32.mrb[0].mxu0
        %v654 = vadd.f32 0.0, %v653
        %v655 = vpop.f32.mrb[0].mxu0
        %v656 = vpop.f32.mrb[0].mxu0
        %v657 = vadd.f32 0.0, %v656
        %v658 = vpop.f32.mrb[0].mxu0
        %659 = vmatprep.mubr.bf16.mxu0 %v498
        %660 = vmatmul.mubr.bf16.gmra.mrb[0].mxu0 %v497
        %v661 = vpop.f32.mrb[0].mxu0
        %v662 = vadd.f32 0.0, %v661
        %v663 = vpop.f32.mrb[0].mxu0
        %v664 = vpop.f32.mrb[0].mxu0
        %v665 = vadd.f32 0.0, %v664
        %v666 = vpop.f32.mrb[0].mxu0
        %667 = vmatprep.mubr.bf16.mxu0 %v500
        %668 = vmatmul.mubr.bf16.gmra.mrb[0].mxu0 %v499
        %v669 = vpop.f32.mrb[0].mxu0
        %v670 = vadd.f32 0.0, %v669
        %v671 = vpop.f32.mrb[0].mxu0
        %v672 = vpop.f32.mrb[0].mxu0
        %v673 = vadd.f32 0.0, %v672
        %v674 = vpop.f32.mrb[0].mxu0
        %675 = vmatprep.mubr.bf16.mxu0 %v502
        %676 = vmatmul.mubr.bf16.gmra.mrb[0].mxu0 %v501
        %v677 = vpop.f32.mrb[0].mxu0
        %v678 = vadd.f32 0.0, %v677
        %v679 = vpop.f32.mrb[0].mxu0
        %v680 = vpop.f32.mrb[0].mxu0
        %v681 = vadd.f32 0.0, %v680
        %v682 = vpop.f32.mrb[0].mxu0
        %683 = vmatprep.mubr.bf16.mxu0 %v504
        %684 = vmatmul.mubr.bf16.gmra.mrb[0].mxu0 %v503
        %v685 = vpop.f32.mrb[0].mxu0
        %v686 = vadd.f32 0.0, %v685
        %v687 = vpop.f32.mrb[0].mxu0
        %v688 = vpop.f32.mrb[0].mxu0
        %v689 = vadd.f32 0.0, %v688
        %v690 = vpop.f32.mrb[0].mxu0
        %691 = vmatprep.mubr.bf16.mxu0 %v506
        %692 = vmatmul.mubr.bf16.gmra.mrb[0].mxu0 %v505
        %v693 = vpop.f32.mrb[0].mxu0
        %v694 = vadd.f32 0.0, %v693
        %v695 = vpop.f32.mrb[0].mxu0
        %v696 = vpop.f32.mrb[0].mxu0
        %v697 = vadd.f32 0.0, %v696
        %v698 = vpop.f32.mrb[0].mxu0
        %699 = vmatprep.mubr.bf16.mxu0 %v508
        %700 = vmatmul.mubr.bf16.gmra.mrb[0].mxu0 %v507
        %v701 = vpop.f32.mrb[0].mxu0
        %v702 = vadd.f32 0.0, %v701
        %v703 = vpop.f32.mrb[0].mxu0
        %v704 = vpop.f32.mrb[0].mxu0
        %v705 = vpop.f32.mrb[0].mxu0
        %706 = vdwg.mxu0
        %v707 = vadd.f32 %v398, %v654
        %v708 = vadd.f32 %v399, %v657
        %v709 = vadd.f32 %v400, %v662
        %v710 = vadd.f32 %v401, %v665
        %v711 = vadd.f32 %v402, %v670
        %v712 = vadd.f32 %v403, %v673
        %v713 = vadd.f32 %v404, %v678
        %v714 = vadd.f32 %v405, %v681
        %v715 = vadd.f32 %v406, %v686
        %v716 = vadd.f32 %v407, %v689
        %v717 = vadd.f32 %v408, %v694
        %v718 = vadd.f32 %v409, %v697
        %v719 = vadd.f32 %v410, %v702
        %720 = vst [vmem:[#allocation2] sm:$0xff] %v707
        %721 = vst [vmem:[#allocation2 + $0x8] sm:$0xff] %v708
        %722 = vst [vmem:[#allocation2 + $0x10] sm:$0xff] %v709
        %723 = vst [vmem:[#allocation2 + $0x18] sm:$0xff] %v710
        %724 = vst [vmem:[#allocation2 + $0x20] sm:$0xff] %v711
        %725 = vst [vmem:[#allocation2 + $0x28] sm:$0xff] %v712
        %726 = vst [vmem:[#allocation2 + $0x30] sm:$0xff] %v713
        %727 = vst [vmem:[#allocation2 + $0x38] sm:$0xff] %v714
        %728 = vst [vmem:[#allocation2 + $0x40] sm:$0xff] %v715
        %729 = vst [vmem:[#allocation2 + $0x48] sm:$0xff] %v716
        %730 = vst [vmem:[#allocation2 + $0x50] sm:$0xff] %v717
        %731 = vst [vmem:[#allocation2 + $0x58] sm:$0xff] %v718
        %732 = vst [vmem:[#allocation2 + $0x60] sm:$0x3] %v719
        %p733 = scmp.eq.s32.totalorder %s21, 3
        // Predicated region
        $region99: #{discriminator_forward.4} parent=73 // pred_check
          %p734 = pneg %p733
        $region100: #{discriminator_forward.4} parent=73 // pred_check_branch
          %736 = sbr.rel (%p734) target = $region102
        $region101: #{discriminator_forward.4} parent=73 // pred_region
          %v737 = vld [vmem:[#allocation2] sm:$0xff]
          %v738 = vld [vmem:[#allocation2 + $0x8] sm:$0xff]
          %v739 = vld [vmem:[#allocation2 + $0x10] sm:$0xff]
          %v740 = vld [vmem:[#allocation2 + $0x18] sm:$0xff]
          %v741 = vld [vmem:[#allocation2 + $0x20] sm:$0xff]
          %v742 = vld [vmem:[#allocation2 + $0x28] sm:$0xff]
          %v743 = vld [vmem:[#allocation2 + $0x30] sm:$0xff]
          %v744 = vld [vmem:[#allocation2 + $0x38] sm:$0xff]
          %v745 = vld [vmem:[#allocation2 + $0x40] sm:$0xff]
          %v746 = vld [vmem:[#allocation2 + $0x48] sm:$0xff]
          %v747 = vld [vmem:[#allocation2 + $0x50] sm:$0xff]
          %v748 = vld [vmem:[#allocation2 + $0x58] sm:$0xff]
          %v749 = vld [vmem:[#allocation2 + $0x60] sm:$0x3]
          %v750 = vadd.f32 %v737, %v738
          %v751 = vadd.f32 %v750, %v739
          %v752 = vadd.f32 %v751, %v740
          %v753 = vadd.f32 %v752, %v741
          %v754 = vadd.f32 %v753, %v742
          %v755 = vadd.f32 %v754, %v743
          %v756 = vadd.f32 %v755, %v744
          %v757 = vadd.f32 %v756, %v745
          %v758 = vadd.f32 %v757, %v746
          %v759 = vadd.f32 %v758, %v747
          %v760 = vadd.f32 %v759, %v748
          %vm761 = vcmask 1041408
          %v762 = vsel %vm761, %v749, 0.0
          %v763 = vadd.f32 %v760, %v762
          %v764 = vrot.slane %v763, 4
          %v765 = vadd.f32 %v763, %v764
          %v766 = vrot.slane %v765, 2
          %v767 = vadd.f32 %v765, %v766
          %v768 = vrot.slane %v767, 1
          %v769 = vadd.f32 %v767, %v768
          %v770 = vrcp.pop 98.0
          %v771 = vmul.f32 %v769, %v770
          %v772 = vsub.f32 %v737, %v771
          %v773 = vsub.f32 %v738, %v771
          %v774 = vsub.f32 %v739, %v771
          %v775 = vsub.f32 %v740, %v771
          %v776 = vsub.f32 %v741, %v771
          %v777 = vsub.f32 %v742, %v771
          %v778 = vsub.f32 %v743, %v771
          %v779 = vsub.f32 %v744, %v771
          %v780 = vsub.f32 %v745, %v771
          %v781 = vsub.f32 %v746, %v771
          %v782 = vsub.f32 %v747, %v771
          %v783 = vsub.f32 %v748, %v771
          %v784 = vsub.f32 %v749, %v771
          %v785 = vmul.f32 %v772, %v772
          %v786 = vmul.f32 %v773, %v773
          %v787 = vmul.f32 %v774, %v774
          %v788 = vmul.f32 %v775, %v775
          %v789 = vmul.f32 %v776, %v776
          %v790 = vmul.f32 %v777, %v777
          %v791 = vmul.f32 %v778, %v778
          %v792 = vmul.f32 %v779, %v779
          %v793 = vmul.f32 %v780, %v780
          %v794 = vmul.f32 %v781, %v781
          %v795 = vmul.f32 %v782, %v782
          %v796 = vmul.f32 %v783, %v783
          %v797 = vmul.f32 %v784, %v784
          %v798 = vadd.f32 %v785, %v786
          %v799 = vadd.f32 %v798, %v787
          %v800 = vadd.f32 %v799, %v788
          %v801 = vadd.f32 %v800, %v789
          %v802 = vadd.f32 %v801, %v790
          %v803 = vadd.f32 %v802, %v791
          %v804 = vadd.f32 %v803, %v792
          %v805 = vadd.f32 %v804, %v793
          %v806 = vadd.f32 %v805, %v794
          %v807 = vadd.f32 %v806, %v795
          %v808 = vadd.f32 %v807, %v796
          %v809 = vsel %vm761, %v797, 0.0
          %v810 = vadd.f32 %v808, %v809
          %v811 = vrot.slane %v810, 4
          %v812 = vadd.f32 %v810, %v811
          %v813 = vrot.slane %v812, 2
          %v814 = vadd.f32 %v812, %v813
          %v815 = vrot.slane %v814, 1
          %v816 = vadd.f32 %v814, %v815
          %v817 = vmul.f32 %v816, %v770
          %v818 = vadd.f32 %v817, 1e-05
          %v819 = vrsqrt.pop %v818
          %v820 = vmul.f32 %v772, %v819
          %v821 = vmul.f32 %v773, %v819
          %v822 = vmul.f32 %v774, %v819
          %v823 = vmul.f32 %v775, %v819
          %v824 = vmul.f32 %v776, %v819
          %v825 = vmul.f32 %v777, %v819
          %v826 = vmul.f32 %v778, %v819
          %v827 = vmul.f32 %v779, %v819
          %v828 = vmul.f32 %v780, %v819
          %v829 = vmul.f32 %v781, %v819
          %v830 = vmul.f32 %v782, %v819
          %v831 = vmul.f32 %v783, %v819
          %v832 = vmul.f32 %v784, %v819
          %v833 = vld [vmem:[#allocation8] sm:$0x1]
          %v835 = vlaneseq
          %v836 = vshrl.u32 %v835, 7
          %v837 = vsub.s32 0, %v836
          %v838 = vrot.slane %v833, %v837
          %v840 = vmul.f32 %v820, %v838
          %v841 = vmul.f32 %v821, %v838
          %v842 = vmul.f32 %v822, %v838
          %v843 = vmul.f32 %v823, %v838
          %v844 = vmul.f32 %v824, %v838
          %v845 = vmul.f32 %v825, %v838
          %v846 = vmul.f32 %v826, %v838
          %v847 = vmul.f32 %v827, %v838
          %v848 = vmul.f32 %v828, %v838
          %v849 = vmul.f32 %v829, %v838
          %v850 = vmul.f32 %v830, %v838
          %v851 = vmul.f32 %v831, %v838
          %v852 = vmul.f32 %v832, %v838
          %v853 = vld [vmem:[#allocation9] sm:$0x1]
          %v855 = vlaneseq
          %v856 = vshrl.u32 %v855, 7
          %v857 = vsub.s32 0, %v856
          %v858 = vrot.slane %v853, %v857
          %v860 = vadd.f32 %v840, %v858
          %v861 = vadd.f32 %v841, %v858
          %v862 = vadd.f32 %v842, %v858
          %v863 = vadd.f32 %v843, %v858
          %v864 = vadd.f32 %v844, %v858
          %v865 = vadd.f32 %v845, %v858
          %v866 = vadd.f32 %v846, %v858
          %v867 = vadd.f32 %v847, %v858
          %v868 = vadd.f32 %v848, %v858
          %v869 = vadd.f32 %v849, %v858
          %v870 = vadd.f32 %v850, %v858
          %v871 = vadd.f32 %v851, %v858
          %v872 = vadd.f32 %v852, %v858
          %vm873 = vcmp.ge.f32.partialorder %v860, 0.0
          %vm874 = vcmp.ge.f32.partialorder %v861, 0.0
          %vm875 = vcmp.ge.f32.partialorder %v862, 0.0
          %vm876 = vcmp.ge.f32.partialorder %v863, 0.0
          %vm877 = vcmp.ge.f32.partialorder %v864, 0.0
          %vm878 = vcmp.ge.f32.partialorder %v865, 0.0
          %vm879 = vcmp.ge.f32.partialorder %v866, 0.0
          %vm880 = vcmp.ge.f32.partialorder %v867, 0.0
          %vm881 = vcmp.ge.f32.partialorder %v868, 0.0
          %vm882 = vcmp.ge.f32.partialorder %v869, 0.0
          %vm883 = vcmp.ge.f32.partialorder %v870, 0.0
          %vm884 = vcmp.ge.f32.partialorder %v871, 0.0
          %vm885 = vcmp.ge.f32.partialorder %v872, 0.0
          %v886 = vmul.f32 %v860, 0.2
          %v887 = vmul.f32 %v861, 0.2
          %v888 = vmul.f32 %v862, 0.2
          %v889 = vmul.f32 %v863, 0.2
          %v890 = vmul.f32 %v864, 0.2
          %v891 = vmul.f32 %v865, 0.2
          %v892 = vmul.f32 %v866, 0.2
          %v893 = vmul.f32 %v867, 0.2
          %v894 = vmul.f32 %v868, 0.2
          %v895 = vmul.f32 %v869, 0.2
          %v896 = vmul.f32 %v870, 0.2
          %v897 = vmul.f32 %v871, 0.2
          %v898 = vmul.f32 %v872, 0.2
          %v899 = vsel %vm873, %v860, %v886
          %v900 = vsel %vm874, %v861, %v887
          %v901 = vsel %vm875, %v862, %v888
          %v902 = vsel %vm876, %v863, %v889
          %v903 = vsel %vm877, %v864, %v890
          %v904 = vsel %vm878, %v865, %v891
          %v905 = vsel %vm879, %v866, %v892
          %v906 = vsel %vm880, %v867, %v893
          %v907 = vsel %vm881, %v868, %v894
          %v908 = vsel %vm882, %v869, %v895
          %v909 = vsel %vm883, %v870, %v896
          %v910 = vsel %vm884, %v871, %v897
          %v911 = vsel %vm885, %v872, %v898
          %v912 = vpack.c.bf16 %v900, %v899
          %v913 = vpack.c.bf16 %v902, %v901
          %v914 = vpack.c.bf16 %v904, %v903
          %v915 = vpack.c.bf16 %v906, %v905
          %v916 = vpack.c.bf16 %v908, %v907
          %v917 = vpack.c.bf16 %v910, %v909
          %v918 = vpack.c.bf16 %v911, %v911
          %v926 = vunpack.c.l.b16 %v912
          %v927 = vunpack.c.h.b16 %v912
          %v928 = vunpack.c.l.b16 %v913
          %v929 = vunpack.c.h.b16 %v913
          %v930 = vunpack.c.l.b16 %v914
          %v931 = vunpack.c.h.b16 %v914
          %v932 = vunpack.c.l.b16 %v915
          %v933 = vunpack.c.h.b16 %v915
          %v934 = vunpack.c.l.b16 %v916
          %v935 = vunpack.c.h.b16 %v916
          %v936 = vunpack.c.l.b16 %v917
          %v937 = vunpack.c.h.b16 %v917
          %v938 = vunpack.c.l.b16 %v918
          %v939 = vpack.c.b16 %v926, %v926
          %v940 = vpack.c.b16 %v927, %v927
          %v941 = vpack.c.b16 %v928, %v928
          %v942 = vpack.c.b16 %v929, %v929
          %v943 = vpack.c.b16 %v930, %v930
          %v944 = vpack.c.b16 %v931, %v931
          %v945 = vpack.c.b16 %v932, %v932
          %v946 = vpack.c.b16 %v933, %v933
          %v947 = vpack.c.b16 %v934, %v934
          %v948 = vpack.c.b16 %v935, %v935
          %v949 = vpack.c.b16 %v936, %v936
          %v950 = vpack.c.b16 %v937, %v937
          %v951 = vpack.c.b16 %v938, %v938
          %965 = vst [vmem:[%s5] sm:$0xf] %v939
          %966 = vst [vmem:[%s5 + $0x4] sm:$0xf] %v940
          %967 = vst [vmem:[%s5 + $0x8] sm:$0xf] %v941
          %968 = vst [vmem:[%s5 + $0xc] sm:$0xf] %v942
          %969 = vst [vmem:[%s5 + $0x10] sm:$0xf] %v943
          %970 = vst [vmem:[%s5 + $0x14] sm:$0xf] %v944
          %971 = vst [vmem:[%s5 + $0x18] sm:$0xf] %v945
          %972 = vst [vmem:[%s5 + $0x1c] sm:$0xf] %v946
          %973 = vst [vmem:[%s5 + $0x20] sm:$0xf] %v947
          %974 = vst [vmem:[%s5 + $0x24] sm:$0xf] %v948
          %975 = vst [vmem:[%s5 + $0x28] sm:$0xf] %v949
          %976 = vst [vmem:[%s5 + $0x2c] sm:$0xf] %v950
          %977 = vst [vmem:[%s5 + $0x30] sm:$0x1] %v951
        $region102: #{discriminator_forward.4} parent=73 // pred_fallthru
          _
        // Predicated region
        $region103: #{discriminator_forward.4} parent=73 // pred_check
          %p978 = pneg %p149
        $region104: #{discriminator_forward.4} parent=73 // pred_check_branch
          %980 = sbr.rel (%p978) target = $region106
        $region105: #{discriminator_forward.4} parent=73 // pred_region
          _
        $region106: #{discriminator_forward.4} parent=73 // pred_fallthru
          _
        // Predicated region
        $region107: #{discriminator_forward.4} parent=73 // pred_check
          %p981 = pneg %p149
        $region108: #{discriminator_forward.4} parent=73 // pred_check_branch
          %983 = sbr.rel (%p981) target = $region110
        $region109: #{discriminator_forward.4} parent=73 // pred_region
          _
        $region110: #{discriminator_forward.4} parent=73 // pred_fallthru
          _
      $region74: #{discriminator_forward.4} parent=5 // pred_fallthru
        _
      %p984 = scmp.le.s32.totalorder 2, %s16
      // Predicated region
      $region111: #{discriminator_forward.4} parent=5 // pred_check
        %p985 = pneg %p984
      $region112: #{discriminator_forward.4} parent=5 // pred_check_branch
        %987 = sbr.rel (%p985) target = $region114
      $region113: #{discriminator_forward.4} parent=5 // pred_region
        %s988 = ssub.s32 %s16, 2
      $region114: #{discriminator_forward.4} parent=5 // pred_fallthru
        _
    $region6: #{discriminator_forward.4} parent=1 // loop_footer
      %s20 = sadd.s32 1, %s16
    $region7: #{discriminator_forward.4} parent=1 // loop_footer_branch
      %15 = sbr.rel target = $region3
    $region8: #{discriminator_forward.4} parent=1 // loop_exit
      _
    %989 = vsyncpa [#allocation5], 1
    %s990 = scalar_lea.sflag [#allocation5], 1
    %991 = vsyncpa %s990, 1
    %992 = vsyncpa [#allocation7], 1
    %993 = vsyncpa [#allocation10], 1

// kernel: discriminator_forward.5
$region0: #{discriminator_forward.5}
  #allocation0 [shape = 'u32[]', space=smem, size = 0x4, offset = 0x4, fixed_abs, tag = 'smem constant byte address 0x4 - core index']
  #allocation1 [shape = 'u32[144,128]{1,0:T(1,128)}', space=vmem, size = 0x12000, scoped, tag = 'internal scratch']
  #allocation2 [shape = 'f32[2,512]{1,0:T(2,128)}', space=vmem, size = 0x1000, scoped, tag = 'scratch operand']
  %s0 = inlined_call_operand.vmem [shape: bf16[2,6272], index: 0, kind: input, shape index: {}]
  %s1 = inlined_call_operand.hbm [shape: bf16[6272,1024], index: 1, kind: input, shape index: {}]
  %s2 = inlined_call_operand.hbm [shape: f32[1,1024], index: 2, kind: input, shape index: {}]
  %s3 = inlined_call_operand.hbm [shape: f32[1,1024], index: 3, kind: input, shape index: {}]
  %s4 = inlined_call_operand.hbm [shape: f32[1,1024], index: 4, kind: input, shape index: {}]
  %s5 = inlined_call_operand.hbm [shape: f32[1,1024], index: 5, kind: input, shape index: {}]
  %s6 = inlined_call_operand.vmem [shape: f32[2,2,1], index: 6, kind: output, shape index: {}]
  %s7 = sld [smem:[#allocation0]]
  $region85: #{discriminator_forward.5} parent=0
    _
  %s9 = ssub.s32 1, %s7
  %s10 = scalar_select 0, %s9, %s7
  $region1: #{discriminator_forward.5} parent=0
    #allocation3 [shape = 'u8[1835008]{0}', space=vmem, size = 0x1c0000, scoped, tag = 'input window, operand 1']
    #allocation4 [shape = 's32[2]{0}', space=sflag, size = 0x8, scoped, tag = 'scoped memory for discriminator_forward.5']
    #allocation5 [shape = 'u8[4096]{0}', space=vmem, size = 0x1000, scoped, tag = 'input window, operand 2']
    #allocation6 [shape = 's32[2]{0}', space=sflag, size = 0x8, scoped, tag = 'scoped memory for discriminator_forward.5']
    #allocation7 [shape = 'u8[4096]{0}', space=vmem, size = 0x1000, scoped, tag = 'input window, operand 3']
    #allocation8 [shape = 'u8[4096]{0}', space=vmem, size = 0x1000, scoped, tag = 'input window, operand 4']
    #allocation9 [shape = 's32[2]{0}', space=sflag, size = 0x8, scoped, tag = 'scoped memory for discriminator_forward.5']
    #allocation10 [shape = 'u8[4096]{0}', space=vmem, size = 0x1000, scoped, tag = 'input window, operand 5']
    %11 = vsyncpa [#allocation4], 0
    %s12 = scalar_lea.sflag [#allocation4], 1
    %13 = vsyncpa %s12, 0
    %14 = vsyncpa [#allocation6], 0
    %s15 = scalar_lea.sflag [#allocation6], 1
    %16 = vsyncpa %s15, 0
    %17 = vsyncpa [#allocation9], 0
    %s18 = scalar_lea.sflag [#allocation9], 1
    %19 = vsyncpa %s18, 0
    loop: start=0, step=1, limit=16
    $region2: #{discriminator_forward.5} parent=1 // loop_pre_header
      _
    $region3: #{discriminator_forward.5} parent=1 // loop_header
      %s21 = sphi 0, %s25
      %p22 = scmp.ge.s32.totalorder %s21, 16
      %s28 = sphi 0, %s40
      %s29 = sphi 0, %s36
      %s30 = sphi 0, %s28
      %s31 = sphi 0, %s29
      %s32 = sphi 0, %s30
      %s33 = sphi 0, %s31
      %s43 = sphi 0, %s45
      %s46 = sphi 0, %s43
      %s47 = sphi 0, %s46
      %s63 = sphi 0, %s47
      %s71 = sphi 0, %s73
      %s74 = sphi 0, %s71
      %s75 = sphi 0, %s74
      %s91 = sphi 0, %s75
      %s97 = sphi 0, %s99
      %s100 = sphi 0, %s97
      %s101 = sphi 0, %s100
      %s117 = sphi 0, %s101
      %s123 = sphi 0, %s125
      %s126 = sphi 0, %s123
      %s127 = sphi 0, %s126
      %s143 = sphi 0, %s127
      %s149 = sphi 0, %s151
      %s152 = sphi 0, %s149
      %s153 = sphi 0, %s152
      %s169 = sphi 0, %s153
      %s175 = sphi 0, %s177
      %s178 = sphi 0, %s175
      %s179 = sphi 0, %s178
      %s195 = sphi 0, %s179
      %s201 = sphi 0, %s203
      %s204 = sphi 0, %s201
      %s205 = sphi 0, %s204
      %s221 = sphi 0, %s205
    $region4: #{discriminator_forward.5} parent=1 // loop_header_branch
      %24 = sbr.rel (%p22) target = $region8
    $region5: #{discriminator_forward.5} parent=1 // loop_body
      %s26 = ssub.s32 %s21, 1
      %s27 = ssub.s32 %s21, 2
      %s34 = sadd.s32 1, %s29
      %p35 = scmp.ge.s32.totalorder %s34, 7
      %s36 = scalar_select %p35, 0, %s34
      %s37 = sadd.s32 1, %s28
      %s38 = scalar_select %p35, %s37, %s28
      %p39 = scmp.ge.s32.totalorder %s38, 2
      %s40 = scalar_select %p39, 0, %s38
      %s41 = ssub.s32 %s29, %s36
      %p42 = scmp.eq.s32.totalorder %s41, 0
      %s44 = sadd.s32 %s43, 1
      %s45 = scalar_select %p42, %s43, %s44
      %p48 = pneg %p42
      %p49 = scmp.eq.s32.totalorder %s21, 13
      %p50 = por %p48, %p49
      %p51 = scmp.ne.s32.totalorder %s43, %s46
      %p52 = scmp.eq.s32.totalorder %s21, 0
      %p53 = por %p51, %p52
      %p54 = scmp.ne.s32.totalorder %s43, %s46
      %p55 = scmp.eq.s32.totalorder %s26, 13
      %p56 = por %p54, %p55
      %p57 = scmp.ne.s32.totalorder %s46, %s47
      %p58 = scmp.eq.s32.totalorder %s26, 0
      %p59 = por %p57, %p58
      %p60 = scmp.ne.s32.totalorder %s46, %s47
      %p61 = scmp.eq.s32.totalorder %s27, 13
      %p62 = por %p60, %p61
      %p64 = scmp.ne.s32.totalorder %s47, %s63
      %p65 = scmp.eq.s32.totalorder %s27, 0
      %p66 = por %p64, %p65
      %s67 = ssub.s32 %s29, %s36
      %s68 = ssub.s32 %s28, %s40
      %s69 = sor.u32 %s67, %s68
      %p70 = scmp.eq.s32.totalorder %s69, 0
      %s72 = sadd.s32 %s71, 1
      %s73 = scalar_select %p70, %s71, %s72
      %p76 = pneg %p70
      %p77 = scmp.eq.s32.totalorder %s21, 13
      %p78 = por %p76, %p77
      %p79 = scmp.ne.s32.totalorder %s71, %s74
      %p80 = scmp.eq.s32.totalorder %s21, 0
      %p81 = por %p79, %p80
      %p82 = scmp.ne.s32.totalorder %s71, %s74
      %p83 = scmp.eq.s32.totalorder %s26, 13
      %p84 = por %p82, %p83
      %p85 = scmp.ne.s32.totalorder %s74, %s75
      %p86 = scmp.eq.s32.totalorder %s26, 0
      %p87 = por %p85, %p86
      %p88 = scmp.ne.s32.totalorder %s74, %s75
      %p89 = scmp.eq.s32.totalorder %s27, 13
      %p90 = por %p88, %p89
      %p92 = scmp.ne.s32.totalorder %s75, %s91
      %p93 = scmp.eq.s32.totalorder %s27, 0
      %p94 = por %p92, %p93
      %s95 = ssub.s32 %s28, %s40
      %p96 = scmp.eq.s32.totalorder %s95, 0
      %s98 = sadd.s32 %s97, 1
      %s99 = scalar_select %p96, %s97, %s98
      %p102 = pneg %p96
      %p103 = scmp.eq.s32.totalorder %s21, 13
      %p104 = por %p102, %p103
      %p105 = scmp.ne.s32.totalorder %s97, %s100
      %p106 = scmp.eq.s32.totalorder %s21, 0
      %p107 = por %p105, %p106
      %p108 = scmp.ne.s32.totalorder %s97, %s100
      %p109 = scmp.eq.s32.totalorder %s26, 13
      %p110 = por %p108, %p109
      %p111 = scmp.ne.s32.totalorder %s100, %s101
      %p112 = scmp.eq.s32.totalorder %s26, 0
      %p113 = por %p111, %p112
      %p114 = scmp.ne.s32.totalorder %s100, %s101
      %p115 = scmp.eq.s32.totalorder %s27, 13
      %p116 = por %p114, %p115
      %p118 = scmp.ne.s32.totalorder %s101, %s117
      %p119 = scmp.eq.s32.totalorder %s27, 0
      %p120 = por %p118, %p119
      %s121 = ssub.s32 %s28, %s40
      %p122 = scmp.eq.s32.totalorder %s121, 0
      %s124 = sadd.s32 %s123, 1
      %s125 = scalar_select %p122, %s123, %s124
      %p128 = pneg %p122
      %p129 = scmp.eq.s32.totalorder %s21, 13
      %p130 = por %p128, %p129
      %p131 = scmp.ne.s32.totalorder %s123, %s126
      %p132 = scmp.eq.s32.totalorder %s21, 0
      %p133 = por %p131, %p132
      %p134 = scmp.ne.s32.totalorder %s123, %s126
      %p135 = scmp.eq.s32.totalorder %s26, 13
      %p136 = por %p134, %p135
      %p137 = scmp.ne.s32.totalorder %s126, %s127
      %p138 = scmp.eq.s32.totalorder %s26, 0
      %p139 = por %p137, %p138
      %p140 = scmp.ne.s32.totalorder %s126, %s127
      %p141 = scmp.eq.s32.totalorder %s27, 13
      %p142 = por %p140, %p141
      %p144 = scmp.ne.s32.totalorder %s127, %s143
      %p145 = scmp.eq.s32.totalorder %s27, 0
      %p146 = por %p144, %p145
      %s147 = ssub.s32 %s28, %s40
      %p148 = scmp.eq.s32.totalorder %s147, 0
      %s150 = sadd.s32 %s149, 1
      %s151 = scalar_select %p148, %s149, %s150
      %p154 = pneg %p148
      %p155 = scmp.eq.s32.totalorder %s21, 13
      %p156 = por %p154, %p155
      %p157 = scmp.ne.s32.totalorder %s149, %s152
      %p158 = scmp.eq.s32.totalorder %s21, 0
      %p159 = por %p157, %p158
      %p160 = scmp.ne.s32.totalorder %s149, %s152
      %p161 = scmp.eq.s32.totalorder %s26, 13
      %p162 = por %p160, %p161
      %p163 = scmp.ne.s32.totalorder %s152, %s153
      %p164 = scmp.eq.s32.totalorder %s26, 0
      %p165 = por %p163, %p164
      %p166 = scmp.ne.s32.totalorder %s152, %s153
      %p167 = scmp.eq.s32.totalorder %s27, 13
      %p168 = por %p166, %p167
      %p170 = scmp.ne.s32.totalorder %s153, %s169
      %p171 = scmp.eq.s32.totalorder %s27, 0
      %p172 = por %p170, %p171
      %s173 = ssub.s32 %s28, %s40
      %p174 = scmp.eq.s32.totalorder %s173, 0
      %s176 = sadd.s32 %s175, 1
      %s177 = scalar_select %p174, %s175, %s176
      %p180 = pneg %p174
      %p181 = scmp.eq.s32.totalorder %s21, 13
      %p182 = por %p180, %p181
      %p183 = scmp.ne.s32.totalorder %s175, %s178
      %p184 = scmp.eq.s32.totalorder %s21, 0
      %p185 = por %p183, %p184
      %p186 = scmp.ne.s32.totalorder %s175, %s178
      %p187 = scmp.eq.s32.totalorder %s26, 13
      %p188 = por %p186, %p187
      %p189 = scmp.ne.s32.totalorder %s178, %s179
      %p190 = scmp.eq.s32.totalorder %s26, 0
      %p191 = por %p189, %p190
      %p192 = scmp.ne.s32.totalorder %s178, %s179
      %p193 = scmp.eq.s32.totalorder %s27, 13
      %p194 = por %p192, %p193
      %p196 = scmp.ne.s32.totalorder %s179, %s195
      %p197 = scmp.eq.s32.totalorder %s27, 0
      %p198 = por %p196, %p197
      %s199 = ssub.s32 %s28, %s40
      %p200 = scmp.eq.s32.totalorder %s199, 0
      %s202 = sadd.s32 %s201, 1
      %s203 = scalar_select %p200, %s201, %s202
      %p206 = pneg %p200
      %p207 = scmp.eq.s32.totalorder %s21, 13
      %p208 = por %p206, %p207
      %p209 = scmp.ne.s32.totalorder %s201, %s204
      %p210 = scmp.eq.s32.totalorder %s21, 0
      %p211 = por %p209, %p210
      %p212 = scmp.ne.s32.totalorder %s201, %s204
      %p213 = scmp.eq.s32.totalorder %s26, 13
      %p214 = por %p212, %p213
      %p215 = scmp.ne.s32.totalorder %s204, %s205
      %p216 = scmp.eq.s32.totalorder %s26, 0
      %p217 = por %p215, %p216
      %p218 = scmp.ne.s32.totalorder %s204, %s205
      %p219 = scmp.eq.s32.totalorder %s27, 13
      %p220 = por %p218, %p219
      %p222 = scmp.ne.s32.totalorder %s205, %s221
      %p223 = scmp.eq.s32.totalorder %s27, 0
      %p224 = por %p222, %p223
      %p225 = scmp.le.s32.totalorder 1, %s21
      %p226 = scmp.lt.s32.totalorder %s21, 15
      %p227 = pnand %p225, %p226
      %p228 = pneg %p227
      // Predicated region
      $region9: #{discriminator_forward.5} parent=5 // pred_check
        _
      $region10: #{discriminator_forward.5} parent=5 // pred_check_branch
        %230 = sbr.rel (%p227) target = $region12
      $region11: #{discriminator_forward.5} parent=5 // pred_region
        %s231 = ssub.s32 %s21, 1
      $region12: #{discriminator_forward.5} parent=5 // pred_fallthru
        _
      %p232 = scmp.lt.s32.totalorder %s21, 14
      // Predicated region
      $region13: #{discriminator_forward.5} parent=5 // pred_check
        %p233 = pneg %p232
      $region14: #{discriminator_forward.5} parent=5 // pred_check_branch
        %235 = sbr.rel (%p233) target = $region16
      $region15: #{discriminator_forward.5} parent=5 // pred_region
        // Predicated region
        $region17: #{discriminator_forward.5} parent=15 // pred_check
          %p236 = pneg %p53
        $region18: #{discriminator_forward.5} parent=15 // pred_check_branch
          %238 = sbr.rel (%p236) target = $region20
        $region19: #{discriminator_forward.5} parent=15 // pred_region
          %s239 = smul.u32 7, %s29
          %p240 = scmp.lt.s32.totalorder %s239, 48
          %s241 = scalar_select %p240, %s239, 48
          %s242 = scalar_lea.vmem %s0, %s241
          %s243 = smul.u32 7, %s29
        $region20: #{discriminator_forward.5} parent=15 // pred_fallthru
          _
        // Predicated region
        $region21: #{discriminator_forward.5} parent=15 // pred_check
          %p244 = pneg %p81
        $region22: #{discriminator_forward.5} parent=15 // pred_check_branch
          %246 = sbr.rel (%p244) target = $region24
        $region23: #{discriminator_forward.5} parent=15 // pred_region
          %s247 = sand.u32 %s71, 1
          %s248 = scalar_lea.sflag [#allocation4], %s247
          %s249 = sand.u32 %s71, 1
          %s250 = smul.addr %s249, 1792
          %s251 = scalar_lea.vmem [#allocation3], %s250
          %s252 = smul.u32 112, %s29
          %s253 = smul.u32 4, %s28
          %s255 = ssub.s32 28672, 28672
          %256 = vsyncadd %s248, %s255
          %s257 = smul.addr %s252, 8
          %s258 = sadd.s32 %s253, %s257
          %s259 = smul.addr %s258, 64
          %s260 = scalar_lea.hbm %s1, %s259
          %s261 = sshll.u32 %s251, 4
          %s262 = int_to_ptr.vmem [resolvable:$true] %s261
          %267 = dma.hbm_to_vmem [thread:$0]  %s260, 28672, %s262, %s248, 512, 256, 16
        $region24: #{discriminator_forward.5} parent=15 // pred_fallthru
          _
        // Predicated region
        $region25: #{discriminator_forward.5} parent=15 // pred_check
          %p268 = pneg %p107
        $region26: #{discriminator_forward.5} parent=15 // pred_check_branch
          %270 = sbr.rel (%p268) target = $region28
        $region27: #{discriminator_forward.5} parent=15 // pred_region
          %s271 = sand.u32 %s21, 1
          %s272 = scalar_lea.sflag [#allocation6], %s271
          %s273 = sand.u32 %s97, 1
          %s274 = smul.addr %s273, 4
          %s275 = scalar_lea.vmem [#allocation5], %s274
          %s276 = smul.u32 4, %s28
          %s278 = ssub.s32 64, 64
          %279 = vsyncadd %s272, %s278
          %s280 = smul.addr %s276, 16
          %s281 = scalar_lea.hbm %s2, %s280
          %s283 = sshll.u32 %s275, 4
          %s284 = int_to_ptr.vmem [resolvable:$true] %s283
          %286 = dma.hbm_to_vmem [thread:$0]  %s281, 64, %s284, %s272
        $region28: #{discriminator_forward.5} parent=15 // pred_fallthru
          _
        // Predicated region
        $region29: #{discriminator_forward.5} parent=15 // pred_check
          %p287 = pneg %p133
        $region30: #{discriminator_forward.5} parent=15 // pred_check_branch
          %289 = sbr.rel (%p287) target = $region32
        $region31: #{discriminator_forward.5} parent=15 // pred_region
          %s290 = sand.u32 %s21, 1
          %s291 = scalar_lea.sflag [#allocation6], %s290
          %s292 = sand.u32 %s123, 1
          %s293 = smul.addr %s292, 4
          %s294 = scalar_lea.vmem [#allocation7], %s293
          %s295 = smul.u32 4, %s28
          %s297 = ssub.s32 64, 64
          %298 = vsyncadd %s291, %s297
          %s299 = smul.addr %s295, 16
          %s300 = scalar_lea.hbm %s3, %s299
          %s302 = sshll.u32 %s294, 4
          %s303 = int_to_ptr.vmem [resolvable:$true] %s302
          %305 = dma.hbm_to_vmem [thread:$0]  %s300, 64, %s303, %s291
        $region32: #{discriminator_forward.5} parent=15 // pred_fallthru
          _
        // Predicated region
        $region33: #{discriminator_forward.5} parent=15 // pred_check
          %p306 = pneg %p159
        $region34: #{discriminator_forward.5} parent=15 // pred_check_branch
          %308 = sbr.rel (%p306) target = $region36
        $region35: #{discriminator_forward.5} parent=15 // pred_region
          %s309 = sand.u32 %s21, 1
          %s310 = scalar_lea.sflag [#allocation9], %s309
          %s311 = sand.u32 %s149, 1
          %s312 = smul.addr %s311, 4
          %s313 = scalar_lea.vmem [#allocation8], %s312
          %s314 = smul.u32 4, %s28
          %s316 = ssub.s32 64, 64
          %317 = vsyncadd %s310, %s316
          %s318 = smul.addr %s314, 16
          %s319 = scalar_lea.hbm %s4, %s318
          %s321 = sshll.u32 %s313, 4
          %s322 = int_to_ptr.vmem [resolvable:$true] %s321
          %324 = dma.hbm_to_vmem [thread:$0]  %s319, 64, %s322, %s310
        $region36: #{discriminator_forward.5} parent=15 // pred_fallthru
          _
        // Predicated region
        $region37: #{discriminator_forward.5} parent=15 // pred_check
          %p325 = pneg %p185
        $region38: #{discriminator_forward.5} parent=15 // pred_check_branch
          %327 = sbr.rel (%p325) target = $region40
        $region39: #{discriminator_forward.5} parent=15 // pred_region
          %s328 = sand.u32 %s21, 1
          %s329 = scalar_lea.sflag [#allocation9], %s328
          %s330 = sand.u32 %s175, 1
          %s331 = smul.addr %s330, 4
          %s332 = scalar_lea.vmem [#allocation10], %s331
          %s333 = smul.u32 4, %s28
          %s335 = ssub.s32 64, 64
          %336 = vsyncadd %s329, %s335
          %s337 = smul.addr %s333, 16
          %s338 = scalar_lea.hbm %s5, %s337
          %s340 = sshll.u32 %s332, 4
          %s341 = int_to_ptr.vmem [resolvable:$true] %s340
          %343 = dma.hbm_to_vmem [thread:$0]  %s338, 64, %s341, %s329
        $region40: #{discriminator_forward.5} parent=15 // pred_fallthru
          _
      $region16: #{discriminator_forward.5} parent=5 // pred_fallthru
        _
      %p344 = scmp.le.s32.totalorder 1, %s21
      %p345 = scmp.lt.s32.totalorder %s21, 15
      %p346 = pnand %p344, %p345
      %p347 = pneg %p346
      // Predicated region
      $region41: #{discriminator_forward.5} parent=5 // pred_check
        _
      $region42: #{discriminator_forward.5} parent=5 // pred_check_branch
        %349 = sbr.rel (%p346) target = $region44
      $region43: #{discriminator_forward.5} parent=5 // pred_region
        %s350 = ssub.s32 %s21, 1
        %s351 = sand.u32 %s74, 1
        %s352 = scalar_lea.sflag [#allocation4], %s351
        %s353 = sand.u32 %s74, 1
        %s354 = smul.addr %s353, 1792
        %s355 = scalar_lea.vmem [#allocation3], %s354
        // Predicated region
        $region45: #{discriminator_forward.5} parent=43 // pred_check
          %p356 = pneg %p87
        $region46: #{discriminator_forward.5} parent=43 // pred_check_branch
          %358 = sbr.rel (%p356) target = $region48
        $region47: #{discriminator_forward.5} parent=43 // pred_region
          %359 = dma.done %s352, 28672
        $region48: #{discriminator_forward.5} parent=43 // pred_fallthru
          _
        %s360 = sand.u32 %s26, 1
        %s361 = scalar_lea.sflag [#allocation6], %s360
        %s362 = sand.u32 %s100, 1
        %s363 = smul.addr %s362, 4
        %s364 = scalar_lea.vmem [#allocation5], %s363
        // Predicated region
        $region49: #{discriminator_forward.5} parent=43 // pred_check
          %p365 = pneg %p113
        $region50: #{discriminator_forward.5} parent=43 // pred_check_branch
          %367 = sbr.rel (%p365) target = $region52
        $region51: #{discriminator_forward.5} parent=43 // pred_region
          %368 = dma.done %s361, 64
        $region52: #{discriminator_forward.5} parent=43 // pred_fallthru
          _
        %s369 = sand.u32 %s26, 1
        %s370 = scalar_lea.sflag [#allocation6], %s369
        %s371 = sand.u32 %s126, 1
        %s372 = smul.addr %s371, 4
        %s373 = scalar_lea.vmem [#allocation7], %s372
        // Predicated region
        $region53: #{discriminator_forward.5} parent=43 // pred_check
          %p374 = pneg %p139
        $region54: #{discriminator_forward.5} parent=43 // pred_check_branch
          %376 = sbr.rel (%p374) target = $region56
        $region55: #{discriminator_forward.5} parent=43 // pred_region
          %377 = dma.done %s370, 64
        $region56: #{discriminator_forward.5} parent=43 // pred_fallthru
          _
        %s378 = sand.u32 %s26, 1
        %s379 = scalar_lea.sflag [#allocation9], %s378
        %s380 = sand.u32 %s152, 1
        %s381 = smul.addr %s380, 4
        %s382 = scalar_lea.vmem [#allocation8], %s381
        // Predicated region
        $region57: #{discriminator_forward.5} parent=43 // pred_check
          %p383 = pneg %p165
        $region58: #{discriminator_forward.5} parent=43 // pred_check_branch
          %385 = sbr.rel (%p383) target = $region60
        $region59: #{discriminator_forward.5} parent=43 // pred_region
          %386 = dma.done %s379, 64
        $region60: #{discriminator_forward.5} parent=43 // pred_fallthru
          _
        %s387 = sand.u32 %s26, 1
        %s388 = scalar_lea.sflag [#allocation9], %s387
        %s389 = sand.u32 %s178, 1
        %s390 = smul.addr %s389, 4
        %s391 = scalar_lea.vmem [#allocation10], %s390
        // Predicated region
        $region61: #{discriminator_forward.5} parent=43 // pred_check
          %p392 = pneg %p191
        $region62: #{discriminator_forward.5} parent=43 // pred_check_branch
          %394 = sbr.rel (%p392) target = $region64
        $region63: #{discriminator_forward.5} parent=43 // pred_region
          %395 = dma.done %s388, 64
        $region64: #{discriminator_forward.5} parent=43 // pred_fallthru
          _
        %s396 = smul.u32 7, %s31
        %p397 = scmp.lt.s32.totalorder %s396, 48
        %s398 = scalar_select %p397, %s396, 48
        %s399 = scalar_lea.vmem %s0, %s398
        %p400 = pneg %p59
        %p401 = pneg %p56
        %s402 = sand.u32 %s74, 1
        %s403 = scalar_lea.sflag [#allocation4], %s402
        %s404 = sand.u32 %s74, 1
        %s405 = smul.addr %s404, 1792
        %s406 = scalar_lea.vmem [#allocation3], %s405
        %p407 = pneg %p87
        %p408 = pneg %p84
        %s409 = sand.u32 %s26, 1
        %s410 = scalar_lea.sflag [#allocation6], %s409
        %s411 = sand.u32 %s100, 1
        %s412 = smul.addr %s411, 4
        %s413 = scalar_lea.vmem [#allocation5], %s412
        %p414 = pneg %p113
        %p415 = pneg %p110
        %s416 = sand.u32 %s26, 1
        %s417 = scalar_lea.sflag [#allocation6], %s416
        %s418 = sand.u32 %s126, 1
        %s419 = smul.addr %s418, 4
        %s420 = scalar_lea.vmem [#allocation7], %s419
        %p421 = pneg %p139
        %p422 = pneg %p136
        %s423 = sand.u32 %s26, 1
        %s424 = scalar_lea.sflag [#allocation9], %s423
        %s425 = sand.u32 %s152, 1
        %s426 = smul.addr %s425, 4
        %s427 = scalar_lea.vmem [#allocation8], %s426
        %p428 = pneg %p165
        %p429 = pneg %p162
        %s430 = sand.u32 %s26, 1
        %s431 = scalar_lea.sflag [#allocation9], %s430
        %s432 = sand.u32 %s178, 1
        %s433 = smul.addr %s432, 4
        %s434 = scalar_lea.vmem [#allocation10], %s433
        %p435 = pneg %p191
        %p436 = pneg %p188
        %p437 = pneg %p217
        %p438 = pneg %p214
        %p439 = scmp.lt.s32.totalorder %s30, 1
        %s440 = scalar_select %p439, %s30, 1
        %s441 = smul.addr %s440, 2
        %s442 = scalar_lea.vmem %s6, %s441
        %s443 = smul.u32 7, %s31
        %p444 = scmp.lt.s32.totalorder %s443, 48
        %s445 = scalar_select %p444, %s443, 48
        %s446 = scalar_lea.vmem %s0, %s445
        %s447 = smul.u32 7, %s31
        %s448 = smul.u32 112, %s31
        %s449 = smul.u32 4, %s30
        %s450 = smul.u32 4, %s30
        %s451 = smul.u32 4, %s30
        %s452 = smul.u32 4, %s30
        %s453 = smul.u32 4, %s30
        %p454 = scmp.lt.s32.totalorder %s30, 1
        %s455 = scalar_select %p454, %s30, 1
        %s456 = smul.addr %s455, 2
        %s457 = scalar_lea.vmem %s6, %s456
        %p459 = scmp.eq.s32.totalorder %s31, 0
        // Predicated region
        $region65: #{discriminator_forward.5} parent=43 // pred_check
          %p460 = pneg %p459
        $region66: #{discriminator_forward.5} parent=43 // pred_check_branch
          %462 = sbr.rel (%p460) target = $region68
        $region67: #{discriminator_forward.5} parent=43 // pred_region
          %v463 = vld [vmem:[%s364] sm:$0xf]
          %v465 = vlaneseq
          %v466 = vshrl.u32 %v465, 7
          %v467 = vsub.s32 0, %v466
          %v468 = vrot.slane %v463, %v467
          %v469 = vlaneseq
          %v470 = vshrl.u32 %v469, 7
          %v471 = vsub.s32 1, %v470
          %v472 = vrot.slane %v463, %v471
          %v473 = vlaneseq
          %v474 = vshrl.u32 %v473, 7
          %v475 = vsub.s32 2, %v474
          %v476 = vrot.slane %v463, %v475
          %v477 = vlaneseq
          %v478 = vshrl.u32 %v477, 7
          %v479 = vsub.s32 3, %v478
          %v480 = vrot.slane %v463, %v479
          %v481 = vcombine.low %v468, %v472
          %v482 = vcombine.low %v476, %v480
          %v484 = vunpack.c.l.s4 1983009808
          %v485 = vunpack.c.0.s8 %v484
          %v486 = vlaneseq
          %v487 = vshrl.u32 %v486, 7
          %v488 = vsub.s32 %v485, %v487
          %v489 = vrot.slane %v481, %v488
          %v491 = vunpack.c.l.s4 1983009808
          %v492 = vunpack.c.0.s8 %v491
          %v493 = vlaneseq
          %v494 = vshrl.u32 %v493, 7
          %v495 = vsub.s32 %v492, %v494
          %v496 = vrot.slane %v482, %v495
          %v497 = vcombine.low %v489, %v496
          %499 = vst [vmem:[#allocation2] sm:$0xff] %v497
        $region68: #{discriminator_forward.5} parent=43 // pred_fallthru
          _
        %v500 = vld [vmem:[#allocation2] sm:$0xff]
        %v501 = vld [vmem:[%s446] sm:$0x7f]
        %v502 = vld [vmem:[%s355] sm:$0xff]
        %v503 = vld [vmem:[%s355 + $0x8] sm:$0xff]
        %v504 = vld [vmem:[%s355 + $0x10] sm:$0xff]
        %v505 = vld [vmem:[%s355 + $0x18] sm:$0xff]
        %v506 = vld [vmem:[%s355 + $0x20] sm:$0xff]
        %v507 = vld [vmem:[%s355 + $0x28] sm:$0xff]
        %v508 = vld [vmem:[%s355 + $0x30] sm:$0xff]
        %v509 = vld [vmem:[%s355 + $0x38] sm:$0xff]
        %v510 = vld [vmem:[%s355 + $0x40] sm:$0xff]
        %v511 = vld [vmem:[%s355 + $0x48] sm:$0xff]
        %v512 = vld [vmem:[%s355 + $0x50] sm:$0xff]
        %v513 = vld [vmem:[%s355 + $0x58] sm:$0xff]
        %v514 = vld [vmem:[%s355 + $0x60] sm:$0xff]
        %v515 = vld [vmem:[%s355 + $0x68] sm:$0xff]
        %v516 = vld [vmem:[%s355 + $0x70] sm:$0xff]
        %v517 = vld [vmem:[%s355 + $0x78] sm:$0xff]
        %v518 = vld [vmem:[%s355 + $0x80] sm:$0xff]
        %v519 = vld [vmem:[%s355 + $0x88] sm:$0xff]
        %v520 = vld [vmem:[%s355 + $0x90] sm:$0xff]
        %v521 = vld [vmem:[%s355 + $0x98] sm:$0xff]
        %v522 = vld [vmem:[%s355 + $0xa0] sm:$0xff]
        %v523 = vld [vmem:[%s355 + $0xa8] sm:$0xff]
        %v524 = vld [vmem:[%s355 + $0xb0] sm:$0xff]
        %v525 = vld [vmem:[%s355 + $0xb8] sm:$0xff]
        %v526 = vld [vmem:[%s355 + $0xc0] sm:$0xff]
        %v527 = vld [vmem:[%s355 + $0xc8] sm:$0xff]
        %v528 = vld [vmem:[%s355 + $0xd0] sm:$0xff]
        %v529 = vld [vmem:[%s355 + $0xd8] sm:$0xff]
        %v530 = vld [vmem:[%s355 + $0xe0] sm:$0xff]
        %v531 = vld [vmem:[%s355 + $0xe8] sm:$0xff]
        %v532 = vld [vmem:[%s355 + $0xf0] sm:$0xff]
        %v533 = vld [vmem:[%s355 + $0xf8] sm:$0xff]
        %v534 = vld [vmem:[%s355 + $0x100] sm:$0xff]
        %v535 = vld [vmem:[%s355 + $0x108] sm:$0xff]
        %v536 = vld [vmem:[%s355 + $0x110] sm:$0xff]
        %v537 = vld [vmem:[%s355 + $0x118] sm:$0xff]
        %v538 = vld [vmem:[%s355 + $0x120] sm:$0xff]
        %v539 = vld [vmem:[%s355 + $0x128] sm:$0xff]
        %v540 = vld [vmem:[%s355 + $0x130] sm:$0xff]
        %v541 = vld [vmem:[%s355 + $0x138] sm:$0xff]
        %v542 = vld [vmem:[%s355 + $0x140] sm:$0xff]
        %v543 = vld [vmem:[%s355 + $0x148] sm:$0xff]
        %v544 = vld [vmem:[%s355 + $0x150] sm:$0xff]
        %v545 = vld [vmem:[%s355 + $0x158] sm:$0xff]
        %v546 = vld [vmem:[%s355 + $0x160] sm:$0xff]
        %v547 = vld [vmem:[%s355 + $0x168] sm:$0xff]
        %v548 = vld [vmem:[%s355 + $0x170] sm:$0xff]
        %v549 = vld [vmem:[%s355 + $0x178] sm:$0xff]
        %v550 = vld [vmem:[%s355 + $0x180] sm:$0xff]
        %v551 = vld [vmem:[%s355 + $0x188] sm:$0xff]
        %v552 = vld [vmem:[%s355 + $0x190] sm:$0xff]
        %v553 = vld [vmem:[%s355 + $0x198] sm:$0xff]
        %v554 = vld [vmem:[%s355 + $0x1a0] sm:$0xff]
        %v555 = vld [vmem:[%s355 + $0x1a8] sm:$0xff]
        %v556 = vld [vmem:[%s355 + $0x1b0] sm:$0xff]
        %v557 = vld [vmem:[%s355 + $0x1b8] sm:$0xff]
        %v558 = vld [vmem:[%s355 + $0x1c0] sm:$0xff]
        %v559 = vld [vmem:[%s355 + $0x1c8] sm:$0xff]
        %v560 = vld [vmem:[%s355 + $0x1d0] sm:$0xff]
        %v561 = vld [vmem:[%s355 + $0x1d8] sm:$0xff]
        %v562 = vld [vmem:[%s355 + $0x1e0] sm:$0xff]
        %v563 = vld [vmem:[%s355 + $0x1e8] sm:$0xff]
        %v564 = vld [vmem:[%s355 + $0x1f0] sm:$0xff]
        %v565 = vld [vmem:[%s355 + $0x1f8] sm:$0xff]
        %v566 = vld [vmem:[%s355 + $0x200] sm:$0xff]
        %v567 = vld [vmem:[%s355 + $0x208] sm:$0xff]
        %v568 = vld [vmem:[%s355 + $0x210] sm:$0xff]
        %v569 = vld [vmem:[%s355 + $0x218] sm:$0xff]
        %v570 = vld [vmem:[%s355 + $0x220] sm:$0xff]
        %v571 = vld [vmem:[%s355 + $0x228] sm:$0xff]
        %v572 = vld [vmem:[%s355 + $0x230] sm:$0xff]
        %v573 = vld [vmem:[%s355 + $0x238] sm:$0xff]
        %v574 = vld [vmem:[%s355 + $0x240] sm:$0xff]
        %v575 = vld [vmem:[%s355 + $0x248] sm:$0xff]
        %v576 = vld [vmem:[%s355 + $0x250] sm:$0xff]
        %v577 = vld [vmem:[%s355 + $0x258] sm:$0xff]
        %v578 = vld [vmem:[%s355 + $0x260] sm:$0xff]
        %v579 = vld [vmem:[%s355 + $0x268] sm:$0xff]
        %v580 = vld [vmem:[%s355 + $0x270] sm:$0xff]
        %v581 = vld [vmem:[%s355 + $0x278] sm:$0xff]
        %v582 = vld [vmem:[%s355 + $0x280] sm:$0xff]
        %v583 = vld [vmem:[%s355 + $0x288] sm:$0xff]
        %v584 = vld [vmem:[%s355 + $0x290] sm:$0xff]
        %v585 = vld [vmem:[%s355 + $0x298] sm:$0xff]
        %v586 = vld [vmem:[%s355 + $0x2a0] sm:$0xff]
        %v587 = vld [vmem:[%s355 + $0x2a8] sm:$0xff]
        %v588 = vld [vmem:[%s355 + $0x2b0] sm:$0xff]
        %v589 = vld [vmem:[%s355 + $0x2b8] sm:$0xff]
        %v590 = vld [vmem:[%s355 + $0x2c0] sm:$0xff]
        %v591 = vld [vmem:[%s355 + $0x2c8] sm:$0xff]
        %v592 = vld [vmem:[%s355 + $0x2d0] sm:$0xff]
        %v593 = vld [vmem:[%s355 + $0x2d8] sm:$0xff]
        %v594 = vld [vmem:[%s355 + $0x2e0] sm:$0xff]
        %v595 = vld [vmem:[%s355 + $0x2e8] sm:$0xff]
        %v596 = vld [vmem:[%s355 + $0x2f0] sm:$0xff]
        %v597 = vld [vmem:[%s355 + $0x2f8] sm:$0xff]
        %v598 = vld [vmem:[%s355 + $0x300] sm:$0xff]
        %v599 = vld [vmem:[%s355 + $0x308] sm:$0xff]
        %v600 = vld [vmem:[%s355 + $0x310] sm:$0xff]
        %v601 = vld [vmem:[%s355 + $0x318] sm:$0xff]
        %v602 = vld [vmem:[%s355 + $0x320] sm:$0xff]
        %v603 = vld [vmem:[%s355 + $0x328] sm:$0xff]
        %v604 = vld [vmem:[%s355 + $0x330] sm:$0xff]
        %v605 = vld [vmem:[%s355 + $0x338] sm:$0xff]
        %v606 = vld [vmem:[%s355 + $0x340] sm:$0xff]
        %v607 = vld [vmem:[%s355 + $0x348] sm:$0xff]
        %v608 = vld [vmem:[%s355 + $0x350] sm:$0xff]
        %v609 = vld [vmem:[%s355 + $0x358] sm:$0xff]
        %v610 = vld [vmem:[%s355 + $0x360] sm:$0xff]
        %v611 = vld [vmem:[%s355 + $0x368] sm:$0xff]
        %v612 = vld [vmem:[%s355 + $0x370] sm:$0xff]
        %v613 = vld [vmem:[%s355 + $0x378] sm:$0xff]
        %v614 = vld [vmem:[%s355 + $0x380] sm:$0xff]
        %v615 = vld [vmem:[%s355 + $0x388] sm:$0xff]
        %v616 = vld [vmem:[%s355 + $0x390] sm:$0xff]
        %v617 = vld [vmem:[%s355 + $0x398] sm:$0xff]
        %v618 = vld [vmem:[%s355 + $0x3a0] sm:$0xff]
        %v619 = vld [vmem:[%s355 + $0x3a8] sm:$0xff]
        %v620 = vld [vmem:[%s355 + $0x3b0] sm:$0xff]
        %v621 = vld [vmem:[%s355 + $0x3b8] sm:$0xff]
        %v622 = vld [vmem:[%s355 + $0x3c0] sm:$0xff]
        %v623 = vld [vmem:[%s355 + $0x3c8] sm:$0xff]
        %v624 = vld [vmem:[%s355 + $0x3d0] sm:$0xff]
        %v625 = vld [vmem:[%s355 + $0x3d8] sm:$0xff]
        %v626 = vld [vmem:[%s355 + $0x3e0] sm:$0xff]
        %v627 = vld [vmem:[%s355 + $0x3e8] sm:$0xff]
        %v628 = vld [vmem:[%s355 + $0x3f0] sm:$0xff]
        %v629 = vld [vmem:[%s355 + $0x3f8] sm:$0xff]
        %v630 = vld [vmem:[%s355 + $0x400] sm:$0xff]
        %v631 = vld [vmem:[%s355 + $0x408] sm:$0xff]
        %v632 = vld [vmem:[%s355 + $0x410] sm:$0xff]
        %v633 = vld [vmem:[%s355 + $0x418] sm:$0xff]
        %v634 = vld [vmem:[%s355 + $0x420] sm:$0xff]
        %v635 = vld [vmem:[%s355 + $0x428] sm:$0xff]
        %v636 = vld [vmem:[%s355 + $0x430] sm:$0xff]
        %v637 = vld [vmem:[%s355 + $0x438] sm:$0xff]
        %v638 = vld [vmem:[%s355 + $0x440] sm:$0xff]
        %v639 = vld [vmem:[%s355 + $0x448] sm:$0xff]
        %v640 = vld [vmem:[%s355 + $0x450] sm:$0xff]
        %v641 = vld [vmem:[%s355 + $0x458] sm:$0xff]
        %v642 = vld [vmem:[%s355 + $0x460] sm:$0xff]
        %v643 = vld [vmem:[%s355 + $0x468] sm:$0xff]
        %v644 = vld [vmem:[%s355 + $0x470] sm:$0xff]
        %v645 = vld [vmem:[%s355 + $0x478] sm:$0xff]
        %v646 = vld [vmem:[%s355 + $0x480] sm:$0xff]
        %v647 = vld [vmem:[%s355 + $0x488] sm:$0xff]
        %v648 = vld [vmem:[%s355 + $0x490] sm:$0xff]
        %v649 = vld [vmem:[%s355 + $0x498] sm:$0xff]
        %v650 = vld [vmem:[%s355 + $0x4a0] sm:$0xff]
        %v651 = vld [vmem:[%s355 + $0x4a8] sm:$0xff]
        %v652 = vld [vmem:[%s355 + $0x4b0] sm:$0xff]
        %v653 = vld [vmem:[%s355 + $0x4b8] sm:$0xff]
        %v654 = vld [vmem:[%s355 + $0x4c0] sm:$0xff]
        %v655 = vld [vmem:[%s355 + $0x4c8] sm:$0xff]
        %v656 = vld [vmem:[%s355 + $0x4d0] sm:$0xff]
        %v657 = vld [vmem:[%s355 + $0x4d8] sm:$0xff]
        %v658 = vld [vmem:[%s355 + $0x4e0] sm:$0xff]
        %v659 = vld [vmem:[%s355 + $0x4e8] sm:$0xff]
        %v660 = vld [vmem:[%s355 + $0x4f0] sm:$0xff]
        %v661 = vld [vmem:[%s355 + $0x4f8] sm:$0xff]
        %v662 = vld [vmem:[%s355 + $0x500] sm:$0xff]
        %v663 = vld [vmem:[%s355 + $0x508] sm:$0xff]
        %v664 = vld [vmem:[%s355 + $0x510] sm:$0xff]
        %v665 = vld [vmem:[%s355 + $0x518] sm:$0xff]
        %v666 = vld [vmem:[%s355 + $0x520] sm:$0xff]
        %v667 = vld [vmem:[%s355 + $0x528] sm:$0xff]
        %v668 = vld [vmem:[%s355 + $0x530] sm:$0xff]
        %v669 = vld [vmem:[%s355 + $0x538] sm:$0xff]
        %v670 = vld [vmem:[%s355 + $0x540] sm:$0xff]
        %v671 = vld [vmem:[%s355 + $0x548] sm:$0xff]
        %v672 = vld [vmem:[%s355 + $0x550] sm:$0xff]
        %v673 = vld [vmem:[%s355 + $0x558] sm:$0xff]
        %v674 = vld [vmem:[%s355 + $0x560] sm:$0xff]
        %v675 = vld [vmem:[%s355 + $0x568] sm:$0xff]
        %v676 = vld [vmem:[%s355 + $0x570] sm:$0xff]
        %v677 = vld [vmem:[%s355 + $0x578] sm:$0xff]
        %v678 = vld [vmem:[%s355 + $0x580] sm:$0xff]
        %v679 = vld [vmem:[%s355 + $0x588] sm:$0xff]
        %v680 = vld [vmem:[%s355 + $0x590] sm:$0xff]
        %v681 = vld [vmem:[%s355 + $0x598] sm:$0xff]
        %v682 = vld [vmem:[%s355 + $0x5a0] sm:$0xff]
        %v683 = vld [vmem:[%s355 + $0x5a8] sm:$0xff]
        %v684 = vld [vmem:[%s355 + $0x5b0] sm:$0xff]
        %v685 = vld [vmem:[%s355 + $0x5b8] sm:$0xff]
        %v686 = vld [vmem:[%s355 + $0x5c0] sm:$0xff]
        %v687 = vld [vmem:[%s355 + $0x5c8] sm:$0xff]
        %v688 = vld [vmem:[%s355 + $0x5d0] sm:$0xff]
        %v689 = vld [vmem:[%s355 + $0x5d8] sm:$0xff]
        %v690 = vld [vmem:[%s355 + $0x5e0] sm:$0xff]
        %v691 = vld [vmem:[%s355 + $0x5e8] sm:$0xff]
        %v692 = vld [vmem:[%s355 + $0x5f0] sm:$0xff]
        %v693 = vld [vmem:[%s355 + $0x5f8] sm:$0xff]
        %v694 = vld [vmem:[%s355 + $0x600] sm:$0xff]
        %v695 = vld [vmem:[%s355 + $0x608] sm:$0xff]
        %v696 = vld [vmem:[%s355 + $0x610] sm:$0xff]
        %v697 = vld [vmem:[%s355 + $0x618] sm:$0xff]
        %v698 = vld [vmem:[%s355 + $0x620] sm:$0xff]
        %v699 = vld [vmem:[%s355 + $0x628] sm:$0xff]
        %v700 = vld [vmem:[%s355 + $0x630] sm:$0xff]
        %v701 = vld [vmem:[%s355 + $0x638] sm:$0xff]
        %v702 = vld [vmem:[%s355 + $0x640] sm:$0xff]
        %v703 = vld [vmem:[%s355 + $0x648] sm:$0xff]
        %v704 = vld [vmem:[%s355 + $0x650] sm:$0xff]
        %v705 = vld [vmem:[%s355 + $0x658] sm:$0xff]
        %v706 = vld [vmem:[%s355 + $0x660] sm:$0xff]
        %v707 = vld [vmem:[%s355 + $0x668] sm:$0xff]
        %v708 = vld [vmem:[%s355 + $0x670] sm:$0xff]
        %v709 = vld [vmem:[%s355 + $0x678] sm:$0xff]
        %v710 = vld [vmem:[%s355 + $0x680] sm:$0xff]
        %v711 = vld [vmem:[%s355 + $0x688] sm:$0xff]
        %v712 = vld [vmem:[%s355 + $0x690] sm:$0xff]
        %v713 = vld [vmem:[%s355 + $0x698] sm:$0xff]
        %v714 = vld [vmem:[%s355 + $0x6a0] sm:$0xff]
        %v715 = vld [vmem:[%s355 + $0x6a8] sm:$0xff]
        %v716 = vld [vmem:[%s355 + $0x6b0] sm:$0xff]
        %v717 = vld [vmem:[%s355 + $0x6b8] sm:$0xff]
        %v718 = vld [vmem:[%s355 + $0x6c0] sm:$0xff]
        %v719 = vld [vmem:[%s355 + $0x6c8] sm:$0xff]
        %v720 = vld [vmem:[%s355 + $0x6d0] sm:$0xff]
        %v721 = vld [vmem:[%s355 + $0x6d8] sm:$0xff]
        %v722 = vld [vmem:[%s355 + $0x6e0] sm:$0xff]
        %v723 = vld [vmem:[%s355 + $0x6e8] sm:$0xff]
        %v724 = vld [vmem:[%s355 + $0x6f0] sm:$0xff]
        %v725 = vld [vmem:[%s355 + $0x6f8] sm:$0xff]
        %v727 = vcombine.high %v501, %v501
        %v729 = vunpack.c.l.s4 1966171168
        %v730 = vunpack.c.0.s8 %v729
        %v731 = vlaneseq
        %v732 = vshrl.u32 %v731, 7
        %v733 = vsub.s32 %v730, %v732
        %v734 = vrot.slane %v501, %v733
        %v736 = vunpack.c.l.s4 1966171168
        %v737 = vunpack.c.0.s8 %v736
        %v738 = vlaneseq
        %v739 = vshrl.u32 %v738, 7
        %v740 = vsub.s32 %v737, %v739
        %v741 = vrot.slane %v727, %v740
        %v742 = vcombine.high %v734, %v734
        %v743 = vcombine.high %v741, %v741
        %v745 = vunpack.c.l.s4 1966171168
        %v746 = vunpack.c.0.s8 %v745
        %v747 = vlaneseq
        %v748 = vshrl.u32 %v747, 7
        %v749 = vsub.s32 %v746, %v748
        %v750 = vrot.slane %v734, %v749
        %v752 = vunpack.c.l.s4 1966171168
        %v753 = vunpack.c.0.s8 %v752
        %v754 = vlaneseq
        %v755 = vshrl.u32 %v754, 7
        %v756 = vsub.s32 %v753, %v755
        %v757 = vrot.slane %v741, %v756
        %v759 = vunpack.c.l.s4 1966171168
        %v760 = vunpack.c.0.s8 %v759
        %v761 = vlaneseq
        %v762 = vshrl.u32 %v761, 7
        %v763 = vsub.s32 %v760, %v762
        %v764 = vrot.slane %v742, %v763
        %v766 = vunpack.c.l.s4 1966171168
        %v767 = vunpack.c.0.s8 %v766
        %v768 = vlaneseq
        %v769 = vshrl.u32 %v768, 7
        %v770 = vsub.s32 %v767, %v769
        %v771 = vrot.slane %v743, %v770
        %v772 = vcombine.high %v750, %v750
        %v773 = vcombine.high %v757, %v757
        %v774 = vcombine.high %v764, %v764
        %v1006 = vunpack.c.l.b16 %v502
        %v1007 = vunpack.c.h.b16 %v502
        %v1008 = vunpack.c.l.b16 %v503
        %v1009 = vunpack.c.h.b16 %v503
        %v1010 = vunpack.c.l.b16 %v504
        %v1011 = vunpack.c.h.b16 %v504
        %v1012 = vunpack.c.l.b16 %v505
        %v1013 = vunpack.c.h.b16 %v505
        %v1014 = vunpack.c.l.b16 %v506
        %v1015 = vunpack.c.h.b16 %v506
        %v1016 = vunpack.c.l.b16 %v507
        %v1017 = vunpack.c.h.b16 %v507
        %v1018 = vunpack.c.l.b16 %v508
        %v1019 = vunpack.c.h.b16 %v508
        %v1020 = vunpack.c.l.b16 %v509
        %v1021 = vunpack.c.h.b16 %v509
        %v1022 = vunpack.c.l.b16 %v510
        %v1023 = vunpack.c.h.b16 %v510
        %v1024 = vunpack.c.l.b16 %v511
        %v1025 = vunpack.c.h.b16 %v511
        %v1026 = vunpack.c.l.b16 %v512
        %v1027 = vunpack.c.h.b16 %v512
        %v1028 = vunpack.c.l.b16 %v513
        %v1029 = vunpack.c.h.b16 %v513
        %v1030 = vunpack.c.l.b16 %v514
        %v1031 = vunpack.c.h.b16 %v514
        %v1032 = vunpack.c.l.b16 %v515
        %v1033 = vunpack.c.h.b16 %v515
        %v1034 = vunpack.c.l.b16 %v516
        %v1035 = vunpack.c.h.b16 %v516
        %v1036 = vunpack.c.l.b16 %v517
        %v1037 = vunpack.c.h.b16 %v517
        %v1038 = vunpack.c.l.b16 %v518
        %v1039 = vunpack.c.h.b16 %v518
        %v1040 = vunpack.c.l.b16 %v519
        %v1041 = vunpack.c.h.b16 %v519
        %v1042 = vunpack.c.l.b16 %v520
        %v1043 = vunpack.c.h.b16 %v520
        %v1044 = vunpack.c.l.b16 %v521
        %v1045 = vunpack.c.h.b16 %v521
        %v1046 = vunpack.c.l.b16 %v522
        %v1047 = vunpack.c.h.b16 %v522
        %v1048 = vunpack.c.l.b16 %v523
        %v1049 = vunpack.c.h.b16 %v523
        %v1050 = vunpack.c.l.b16 %v524
        %v1051 = vunpack.c.h.b16 %v524
        %v1052 = vunpack.c.l.b16 %v525
        %v1053 = vunpack.c.h.b16 %v525
        %v1054 = vunpack.c.l.b16 %v526
        %v1055 = vunpack.c.h.b16 %v526
        %v1056 = vunpack.c.l.b16 %v527
        %v1057 = vunpack.c.h.b16 %v527
        %v1058 = vunpack.c.l.b16 %v528
        %v1059 = vunpack.c.h.b16 %v528
        %v1060 = vunpack.c.l.b16 %v529
        %v1061 = vunpack.c.h.b16 %v529
        %v1062 = vunpack.c.l.b16 %v530
        %v1063 = vunpack.c.h.b16 %v530
        %v1064 = vunpack.c.l.b16 %v531
        %v1065 = vunpack.c.h.b16 %v531
        %v1066 = vunpack.c.l.b16 %v532
        %v1067 = vunpack.c.h.b16 %v532
        %v1068 = vunpack.c.l.b16 %v533
        %v1069 = vunpack.c.h.b16 %v533
        %v1070 = vunpack.c.l.b16 %v534
        %v1071 = vunpack.c.h.b16 %v534
        %v1072 = vunpack.c.l.b16 %v535
        %v1073 = vunpack.c.h.b16 %v535
        %v1074 = vunpack.c.l.b16 %v536
        %v1075 = vunpack.c.h.b16 %v536
        %v1076 = vunpack.c.l.b16 %v537
        %v1077 = vunpack.c.h.b16 %v537
        %v1078 = vunpack.c.l.b16 %v538
        %v1079 = vunpack.c.h.b16 %v538
        %v1080 = vunpack.c.l.b16 %v539
        %v1081 = vunpack.c.h.b16 %v539
        %v1082 = vunpack.c.l.b16 %v540
        %v1083 = vunpack.c.h.b16 %v540
        %v1084 = vunpack.c.l.b16 %v541
        %v1085 = vunpack.c.h.b16 %v541
        %v1086 = vunpack.c.l.b16 %v542
        %v1087 = vunpack.c.h.b16 %v542
        %v1088 = vunpack.c.l.b16 %v543
        %v1089 = vunpack.c.h.b16 %v543
        %v1090 = vunpack.c.l.b16 %v544
        %v1091 = vunpack.c.h.b16 %v544
        %v1092 = vunpack.c.l.b16 %v545
        %v1093 = vunpack.c.h.b16 %v545
        %v1094 = vunpack.c.l.b16 %v546
        %v1095 = vunpack.c.h.b16 %v546
        %v1096 = vunpack.c.l.b16 %v547
        %v1097 = vunpack.c.h.b16 %v547
        %v1098 = vunpack.c.l.b16 %v548
        %v1099 = vunpack.c.h.b16 %v548
        %v1100 = vunpack.c.l.b16 %v549
        %v1101 = vunpack.c.h.b16 %v549
        %v1102 = vunpack.c.l.b16 %v550
        %v1103 = vunpack.c.h.b16 %v550
        %v1104 = vunpack.c.l.b16 %v551
        %v1105 = vunpack.c.h.b16 %v551
        %v1106 = vunpack.c.l.b16 %v552
        %v1107 = vunpack.c.h.b16 %v552
        %v1108 = vunpack.c.l.b16 %v553
        %v1109 = vunpack.c.h.b16 %v553
        %v1110 = vunpack.c.l.b16 %v554
        %v1111 = vunpack.c.h.b16 %v554
        %v1112 = vunpack.c.l.b16 %v555
        %v1113 = vunpack.c.h.b16 %v555
        %v1114 = vunpack.c.l.b16 %v556
        %v1115 = vunpack.c.h.b16 %v556
        %v1116 = vunpack.c.l.b16 %v557
        %v1117 = vunpack.c.h.b16 %v557
        %v1118 = vunpack.c.l.b16 %v558
        %v1119 = vunpack.c.h.b16 %v558
        %v1120 = vunpack.c.l.b16 %v559
        %v1121 = vunpack.c.h.b16 %v559
        %v1122 = vunpack.c.l.b16 %v560
        %v1123 = vunpack.c.h.b16 %v560
        %v1124 = vunpack.c.l.b16 %v561
        %v1125 = vunpack.c.h.b16 %v561
        %v1126 = vunpack.c.l.b16 %v562
        %v1127 = vunpack.c.h.b16 %v562
        %v1128 = vunpack.c.l.b16 %v563
        %v1129 = vunpack.c.h.b16 %v563
        %v1130 = vunpack.c.l.b16 %v564
        %v1131 = vunpack.c.h.b16 %v564
        %v1132 = vunpack.c.l.b16 %v565
        %v1133 = vunpack.c.h.b16 %v565
        %v1134 = vunpack.c.l.b16 %v566
        %v1135 = vunpack.c.h.b16 %v566
        %v1136 = vunpack.c.l.b16 %v567
        %v1137 = vunpack.c.h.b16 %v567
        %v1138 = vunpack.c.l.b16 %v568
        %v1139 = vunpack.c.h.b16 %v568
        %v1140 = vunpack.c.l.b16 %v569
        %v1141 = vunpack.c.h.b16 %v569
        %v1142 = vunpack.c.l.b16 %v570
        %v1143 = vunpack.c.h.b16 %v570
        %v1144 = vunpack.c.l.b16 %v571
        %v1145 = vunpack.c.h.b16 %v571
        %v1146 = vunpack.c.l.b16 %v572
        %v1147 = vunpack.c.h.b16 %v572
        %v1148 = vunpack.c.l.b16 %v573
        %v1149 = vunpack.c.h.b16 %v573
        %v1150 = vunpack.c.l.b16 %v574
        %v1151 = vunpack.c.h.b16 %v574
        %v1152 = vunpack.c.l.b16 %v575
        %v1153 = vunpack.c.h.b16 %v575
        %v1154 = vunpack.c.l.b16 %v576
        %v1155 = vunpack.c.h.b16 %v576
        %v1156 = vunpack.c.l.b16 %v577
        %v1157 = vunpack.c.h.b16 %v577
        %v1158 = vunpack.c.l.b16 %v578
        %v1159 = vunpack.c.h.b16 %v578
        %v1160 = vunpack.c.l.b16 %v579
        %v1161 = vunpack.c.h.b16 %v579
        %v1162 = vunpack.c.l.b16 %v580
        %v1163 = vunpack.c.h.b16 %v580
        %v1164 = vunpack.c.l.b16 %v581
        %v1165 = vunpack.c.h.b16 %v581
        %v1166 = vunpack.c.l.b16 %v582
        %v1167 = vunpack.c.h.b16 %v582
        %v1168 = vunpack.c.l.b16 %v583
        %v1169 = vunpack.c.h.b16 %v583
        %v1170 = vunpack.c.l.b16 %v584
        %v1171 = vunpack.c.h.b16 %v584
        %v1172 = vunpack.c.l.b16 %v585
        %v1173 = vunpack.c.h.b16 %v585
        %v1174 = vunpack.c.l.b16 %v586
        %v1175 = vunpack.c.h.b16 %v586
        %v1176 = vunpack.c.l.b16 %v587
        %v1177 = vunpack.c.h.b16 %v587
        %v1178 = vunpack.c.l.b16 %v588
        %v1179 = vunpack.c.h.b16 %v588
        %v1180 = vunpack.c.l.b16 %v589
        %v1181 = vunpack.c.h.b16 %v589
        %v1182 = vunpack.c.l.b16 %v590
        %v1183 = vunpack.c.h.b16 %v590
        %v1184 = vunpack.c.l.b16 %v591
        %v1185 = vunpack.c.h.b16 %v591
        %v1186 = vunpack.c.l.b16 %v592
        %v1187 = vunpack.c.h.b16 %v592
        %v1188 = vunpack.c.l.b16 %v593
        %v1189 = vunpack.c.h.b16 %v593
        %v1190 = vunpack.c.l.b16 %v594
        %v1191 = vunpack.c.h.b16 %v594
        %v1192 = vunpack.c.l.b16 %v595
        %v1193 = vunpack.c.h.b16 %v595
        %v1194 = vunpack.c.l.b16 %v596
        %v1195 = vunpack.c.h.b16 %v596
        %v1196 = vunpack.c.l.b16 %v597
        %v1197 = vunpack.c.h.b16 %v597
        %v1198 = vunpack.c.l.b16 %v598
        %v1199 = vunpack.c.h.b16 %v598
        %v1200 = vunpack.c.l.b16 %v599
        %v1201 = vunpack.c.h.b16 %v599
        %v1202 = vunpack.c.l.b16 %v600
        %v1203 = vunpack.c.h.b16 %v600
        %v1204 = vunpack.c.l.b16 %v601
        %v1205 = vunpack.c.h.b16 %v601
        %v1206 = vunpack.c.l.b16 %v602
        %v1207 = vunpack.c.h.b16 %v602
        %v1208 = vunpack.c.l.b16 %v603
        %v1209 = vunpack.c.h.b16 %v603
        %v1210 = vunpack.c.l.b16 %v604
        %v1211 = vunpack.c.h.b16 %v604
        %v1212 = vunpack.c.l.b16 %v605
        %v1213 = vunpack.c.h.b16 %v605
        %v1214 = vunpack.c.l.b16 %v606
        %v1215 = vunpack.c.h.b16 %v606
        %v1216 = vunpack.c.l.b16 %v607
        %v1217 = vunpack.c.h.b16 %v607
        %v1218 = vunpack.c.l.b16 %v608
        %v1219 = vunpack.c.h.b16 %v608
        %v1220 = vunpack.c.l.b16 %v609
        %v1221 = vunpack.c.h.b16 %v609
        %v1222 = vunpack.c.l.b16 %v610
        %v1223 = vunpack.c.h.b16 %v610
        %v1224 = vunpack.c.l.b16 %v611
        %v1225 = vunpack.c.h.b16 %v611
        %v1226 = vunpack.c.l.b16 %v612
        %v1227 = vunpack.c.h.b16 %v612
        %v1228 = vunpack.c.l.b16 %v613
        %v1229 = vunpack.c.h.b16 %v613
        %v1230 = vunpack.c.l.b16 %v614
        %v1231 = vunpack.c.h.b16 %v614
        %v1232 = vunpack.c.l.b16 %v615
        %v1233 = vunpack.c.h.b16 %v615
        %v1234 = vunpack.c.l.b16 %v616
        %v1235 = vunpack.c.h.b16 %v616
        %v1236 = vunpack.c.l.b16 %v617
        %v1237 = vunpack.c.h.b16 %v617
        %v1238 = vunpack.c.l.b16 %v618
        %v1239 = vunpack.c.h.b16 %v618
        %v1240 = vunpack.c.l.b16 %v619
        %v1241 = vunpack.c.h.b16 %v619
        %v1242 = vunpack.c.l.b16 %v620
        %v1243 = vunpack.c.h.b16 %v620
        %v1244 = vunpack.c.l.b16 %v621
        %v1245 = vunpack.c.h.b16 %v621
        %v1246 = vunpack.c.l.b16 %v622
        %v1247 = vunpack.c.h.b16 %v622
        %v1248 = vunpack.c.l.b16 %v623
        %v1249 = vunpack.c.h.b16 %v623
        %v1250 = vunpack.c.l.b16 %v624
        %v1251 = vunpack.c.h.b16 %v624
        %v1252 = vunpack.c.l.b16 %v625
        %v1253 = vunpack.c.h.b16 %v625
        %v1254 = vunpack.c.l.b16 %v626
        %v1255 = vunpack.c.h.b16 %v626
        %v1256 = vunpack.c.l.b16 %v627
        %v1257 = vunpack.c.h.b16 %v627
        %v1258 = vunpack.c.l.b16 %v628
        %v1259 = vunpack.c.h.b16 %v628
        %v1260 = vunpack.c.l.b16 %v629
        %v1261 = vunpack.c.h.b16 %v629
        %v1262 = vunpack.c.l.b16 %v630
        %v1263 = vunpack.c.h.b16 %v630
        %v1264 = vunpack.c.l.b16 %v631
        %v1265 = vunpack.c.h.b16 %v631
        %v1266 = vunpack.c.l.b16 %v632
        %v1267 = vunpack.c.h.b16 %v632
        %v1268 = vunpack.c.l.b16 %v633
        %v1269 = vunpack.c.h.b16 %v633
        %v1270 = vunpack.c.l.b16 %v634
        %v1271 = vunpack.c.h.b16 %v634
        %v1272 = vunpack.c.l.b16 %v635
        %v1273 = vunpack.c.h.b16 %v635
        %v1274 = vunpack.c.l.b16 %v636
        %v1275 = vunpack.c.h.b16 %v636
        %v1276 = vunpack.c.l.b16 %v637
        %v1277 = vunpack.c.h.b16 %v637
        %v1278 = vunpack.c.l.b16 %v638
        %v1279 = vunpack.c.h.b16 %v638
        %v1280 = vunpack.c.l.b16 %v639
        %v1281 = vunpack.c.h.b16 %v639
        %v1282 = vunpack.c.l.b16 %v640
        %v1283 = vunpack.c.h.b16 %v640
        %v1284 = vunpack.c.l.b16 %v641
        %v1285 = vunpack.c.h.b16 %v641
        %v1286 = vunpack.c.l.b16 %v642
        %v1287 = vunpack.c.h.b16 %v642
        %v1288 = vunpack.c.l.b16 %v643
        %v1289 = vunpack.c.h.b16 %v643
        %v1290 = vunpack.c.l.b16 %v644
        %v1291 = vunpack.c.h.b16 %v644
        %v1292 = vunpack.c.l.b16 %v645
        %v1293 = vunpack.c.h.b16 %v645
        %v1294 = vunpack.c.l.b16 %v646
        %v1295 = vunpack.c.h.b16 %v646
        %v1296 = vunpack.c.l.b16 %v647
        %v1297 = vunpack.c.h.b16 %v647
        %v1298 = vunpack.c.l.b16 %v648
        %v1299 = vunpack.c.h.b16 %v648
        %v1300 = vunpack.c.l.b16 %v649
        %v1301 = vunpack.c.h.b16 %v649
        %v1302 = vunpack.c.l.b16 %v650
        %v1303 = vunpack.c.h.b16 %v650
        %v1304 = vunpack.c.l.b16 %v651
        %v1305 = vunpack.c.h.b16 %v651
        %v1306 = vunpack.c.l.b16 %v652
        %v1307 = vunpack.c.h.b16 %v652
        %v1308 = vunpack.c.l.b16 %v653
        %v1309 = vunpack.c.h.b16 %v653
        %v1310 = vunpack.c.l.b16 %v654
        %v1311 = vunpack.c.h.b16 %v654
        %v1312 = vunpack.c.l.b16 %v655
        %v1313 = vunpack.c.h.b16 %v655
        %v1314 = vunpack.c.l.b16 %v656
        %v1315 = vunpack.c.h.b16 %v656
        %v1316 = vunpack.c.l.b16 %v657
        %v1317 = vunpack.c.h.b16 %v657
        %v1318 = vunpack.c.l.b16 %v658
        %v1319 = vunpack.c.h.b16 %v658
        %v1320 = vunpack.c.l.b16 %v659
        %v1321 = vunpack.c.h.b16 %v659
        %v1322 = vunpack.c.l.b16 %v660
        %v1323 = vunpack.c.h.b16 %v660
        %v1324 = vunpack.c.l.b16 %v661
        %v1325 = vunpack.c.h.b16 %v661
        %v1326 = vunpack.c.l.b16 %v662
        %v1327 = vunpack.c.h.b16 %v662
        %v1328 = vunpack.c.l.b16 %v663
        %v1329 = vunpack.c.h.b16 %v663
        %v1330 = vunpack.c.l.b16 %v664
        %v1331 = vunpack.c.h.b16 %v664
        %v1332 = vunpack.c.l.b16 %v665
        %v1333 = vunpack.c.h.b16 %v665
        %v1334 = vunpack.c.l.b16 %v666
        %v1335 = vunpack.c.h.b16 %v666
        %v1336 = vunpack.c.l.b16 %v667
        %v1337 = vunpack.c.h.b16 %v667
        %v1338 = vunpack.c.l.b16 %v668
        %v1339 = vunpack.c.h.b16 %v668
        %v1340 = vunpack.c.l.b16 %v669
        %v1341 = vunpack.c.h.b16 %v669
        %v1342 = vunpack.c.l.b16 %v670
        %v1343 = vunpack.c.h.b16 %v670
        %v1344 = vunpack.c.l.b16 %v671
        %v1345 = vunpack.c.h.b16 %v671
        %v1346 = vunpack.c.l.b16 %v672
        %v1347 = vunpack.c.h.b16 %v672
        %v1348 = vunpack.c.l.b16 %v673
        %v1349 = vunpack.c.h.b16 %v673
        %v1350 = vunpack.c.l.b16 %v674
        %v1351 = vunpack.c.h.b16 %v674
        %v1352 = vunpack.c.l.b16 %v675
        %v1353 = vunpack.c.h.b16 %v675
        %v1354 = vunpack.c.l.b16 %v676
        %v1355 = vunpack.c.h.b16 %v676
        %v1356 = vunpack.c.l.b16 %v677
        %v1357 = vunpack.c.h.b16 %v677
        %v1358 = vunpack.c.l.b16 %v678
        %v1359 = vunpack.c.h.b16 %v678
        %v1360 = vunpack.c.l.b16 %v679
        %v1361 = vunpack.c.h.b16 %v679
        %v1362 = vunpack.c.l.b16 %v680
        %v1363 = vunpack.c.h.b16 %v680
        %v1364 = vunpack.c.l.b16 %v681
        %v1365 = vunpack.c.h.b16 %v681
        %v1366 = vunpack.c.l.b16 %v682
        %v1367 = vunpack.c.h.b16 %v682
        %v1368 = vunpack.c.l.b16 %v683
        %v1369 = vunpack.c.h.b16 %v683
        %v1370 = vunpack.c.l.b16 %v684
        %v1371 = vunpack.c.h.b16 %v684
        %v1372 = vunpack.c.l.b16 %v685
        %v1373 = vunpack.c.h.b16 %v685
        %v1374 = vunpack.c.l.b16 %v686
        %v1375 = vunpack.c.h.b16 %v686
        %v1376 = vunpack.c.l.b16 %v687
        %v1377 = vunpack.c.h.b16 %v687
        %v1378 = vunpack.c.l.b16 %v688
        %v1379 = vunpack.c.h.b16 %v688
        %v1380 = vunpack.c.l.b16 %v689
        %v1381 = vunpack.c.h.b16 %v689
        %v1382 = vunpack.c.l.b16 %v690
        %v1383 = vunpack.c.h.b16 %v690
        %v1384 = vunpack.c.l.b16 %v691
        %v1385 = vunpack.c.h.b16 %v691
        %v1386 = vunpack.c.l.b16 %v692
        %v1387 = vunpack.c.h.b16 %v692
        %v1388 = vunpack.c.l.b16 %v693
        %v1389 = vunpack.c.h.b16 %v693
        %v1390 = vunpack.c.l.b16 %v694
        %v1391 = vunpack.c.h.b16 %v694
        %v1392 = vunpack.c.l.b16 %v695
        %v1393 = vunpack.c.h.b16 %v695
        %v1394 = vunpack.c.l.b16 %v696
        %v1395 = vunpack.c.h.b16 %v696
        %v1396 = vunpack.c.l.b16 %v697
        %v1397 = vunpack.c.h.b16 %v697
        %v1398 = vunpack.c.l.b16 %v698
        %v1399 = vunpack.c.h.b16 %v698
        %v1400 = vunpack.c.l.b16 %v699
        %v1401 = vunpack.c.h.b16 %v699
        %v1402 = vunpack.c.l.b16 %v700
        %v1403 = vunpack.c.h.b16 %v700
        %v1404 = vunpack.c.l.b16 %v701
        %v1405 = vunpack.c.h.b16 %v701
        %v1406 = vunpack.c.l.b16 %v702
        %v1407 = vunpack.c.h.b16 %v702
        %v1408 = vunpack.c.l.b16 %v703
        %v1409 = vunpack.c.h.b16 %v703
        %v1410 = vunpack.c.l.b16 %v704
        %v1411 = vunpack.c.h.b16 %v704
        %v1412 = vunpack.c.l.b16 %v705
        %v1413 = vunpack.c.h.b16 %v705
        %v1414 = vunpack.c.l.b16 %v706
        %v1415 = vunpack.c.h.b16 %v706
        %v1416 = vunpack.c.l.b16 %v707
        %v1417 = vunpack.c.h.b16 %v707
        %v1418 = vunpack.c.l.b16 %v708
        %v1419 = vunpack.c.h.b16 %v708
        %v1420 = vunpack.c.l.b16 %v709
        %v1421 = vunpack.c.h.b16 %v709
        %v1422 = vunpack.c.l.b16 %v710
        %v1423 = vunpack.c.h.b16 %v710
        %v1424 = vunpack.c.l.b16 %v711
        %v1425 = vunpack.c.h.b16 %v711
        %v1426 = vunpack.c.l.b16 %v712
        %v1427 = vunpack.c.h.b16 %v712
        %v1428 = vunpack.c.l.b16 %v713
        %v1429 = vunpack.c.h.b16 %v713
        %v1430 = vunpack.c.l.b16 %v714
        %v1431 = vunpack.c.h.b16 %v714
        %v1432 = vunpack.c.l.b16 %v715
        %v1433 = vunpack.c.h.b16 %v715
        %v1434 = vunpack.c.l.b16 %v716
        %v1435 = vunpack.c.h.b16 %v716
        %v1436 = vunpack.c.l.b16 %v717
        %v1437 = vunpack.c.h.b16 %v717
        %v1438 = vunpack.c.l.b16 %v718
        %v1439 = vunpack.c.h.b16 %v718
        %v1440 = vunpack.c.l.b16 %v719
        %v1441 = vunpack.c.h.b16 %v719
        %v1442 = vunpack.c.l.b16 %v720
        %v1443 = vunpack.c.h.b16 %v720
        %v1444 = vunpack.c.l.b16 %v721
        %v1445 = vunpack.c.h.b16 %v721
        %v1446 = vunpack.c.l.b16 %v722
        %v1447 = vunpack.c.h.b16 %v722
        %v1448 = vunpack.c.l.b16 %v723
        %v1449 = vunpack.c.h.b16 %v723
        %v1450 = vunpack.c.l.b16 %v724
        %v1451 = vunpack.c.h.b16 %v724
        %v1452 = vunpack.c.l.b16 %v725
        %v1453 = vunpack.c.h.b16 %v725
        %v1454 = vpack.c.b16 %v1010, %v1006
        %v1455 = vpack.c.b16 %v1011, %v1007
        %v1456 = vpack.c.b16 %v1012, %v1008
        %v1457 = vpack.c.b16 %v1013, %v1009
        %v1458 = vpack.c.b16 %v1018, %v1014
        %v1459 = vpack.c.b16 %v1019, %v1015
        %v1460 = vpack.c.b16 %v1020, %v1016
        %v1461 = vpack.c.b16 %v1021, %v1017
        %v1462 = vpack.c.b16 %v1026, %v1022
        %v1463 = vpack.c.b16 %v1027, %v1023
        %v1464 = vpack.c.b16 %v1028, %v1024
        %v1465 = vpack.c.b16 %v1029, %v1025
        %v1466 = vpack.c.b16 %v1034, %v1030
        %v1467 = vpack.c.b16 %v1035, %v1031
        %v1468 = vpack.c.b16 %v1036, %v1032
        %v1469 = vpack.c.b16 %v1037, %v1033
        %v1470 = vpack.c.b16 %v1042, %v1038
        %v1471 = vpack.c.b16 %v1043, %v1039
        %v1472 = vpack.c.b16 %v1044, %v1040
        %v1473 = vpack.c.b16 %v1045, %v1041
        %v1474 = vpack.c.b16 %v1050, %v1046
        %v1475 = vpack.c.b16 %v1051, %v1047
        %v1476 = vpack.c.b16 %v1052, %v1048
        %v1477 = vpack.c.b16 %v1053, %v1049
        %v1478 = vpack.c.b16 %v1058, %v1054
        %v1479 = vpack.c.b16 %v1059, %v1055
        %v1480 = vpack.c.b16 %v1060, %v1056
        %v1481 = vpack.c.b16 %v1061, %v1057
        %v1482 = vpack.c.b16 %v1066, %v1062
        %v1483 = vpack.c.b16 %v1067, %v1063
        %v1484 = vpack.c.b16 %v1068, %v1064
        %v1485 = vpack.c.b16 %v1069, %v1065
        %v1486 = vpack.c.b16 %v1074, %v1070
        %v1487 = vpack.c.b16 %v1075, %v1071
        %v1488 = vpack.c.b16 %v1076, %v1072
        %v1489 = vpack.c.b16 %v1077, %v1073
        %v1490 = vpack.c.b16 %v1082, %v1078
        %v1491 = vpack.c.b16 %v1083, %v1079
        %v1492 = vpack.c.b16 %v1084, %v1080
        %v1493 = vpack.c.b16 %v1085, %v1081
        %v1494 = vpack.c.b16 %v1090, %v1086
        %v1495 = vpack.c.b16 %v1091, %v1087
        %v1496 = vpack.c.b16 %v1092, %v1088
        %v1497 = vpack.c.b16 %v1093, %v1089
        %v1498 = vpack.c.b16 %v1098, %v1094
        %v1499 = vpack.c.b16 %v1099, %v1095
        %v1500 = vpack.c.b16 %v1100, %v1096
        %v1501 = vpack.c.b16 %v1101, %v1097
        %v1502 = vpack.c.b16 %v1106, %v1102
        %v1503 = vpack.c.b16 %v1107, %v1103
        %v1504 = vpack.c.b16 %v1108, %v1104
        %v1505 = vpack.c.b16 %v1109, %v1105
        %v1506 = vpack.c.b16 %v1114, %v1110
        %v1507 = vpack.c.b16 %v1115, %v1111
        %v1508 = vpack.c.b16 %v1116, %v1112
        %v1509 = vpack.c.b16 %v1117, %v1113
        %v1510 = vpack.c.b16 %v1122, %v1118
        %v1511 = vpack.c.b16 %v1123, %v1119
        %v1512 = vpack.c.b16 %v1124, %v1120
        %v1513 = vpack.c.b16 %v1125, %v1121
        %v1514 = vpack.c.b16 %v1130, %v1126
        %v1515 = vpack.c.b16 %v1131, %v1127
        %v1516 = vpack.c.b16 %v1132, %v1128
        %v1517 = vpack.c.b16 %v1133, %v1129
        %v1518 = vpack.c.b16 %v1138, %v1134
        %v1519 = vpack.c.b16 %v1139, %v1135
        %v1520 = vpack.c.b16 %v1140, %v1136
        %v1521 = vpack.c.b16 %v1141, %v1137
        %v1522 = vpack.c.b16 %v1146, %v1142
        %v1523 = vpack.c.b16 %v1147, %v1143
        %v1524 = vpack.c.b16 %v1148, %v1144
        %v1525 = vpack.c.b16 %v1149, %v1145
        %v1526 = vpack.c.b16 %v1154, %v1150
        %v1527 = vpack.c.b16 %v1155, %v1151
        %v1528 = vpack.c.b16 %v1156, %v1152
        %v1529 = vpack.c.b16 %v1157, %v1153
        %v1530 = vpack.c.b16 %v1162, %v1158
        %v1531 = vpack.c.b16 %v1163, %v1159
        %v1532 = vpack.c.b16 %v1164, %v1160
        %v1533 = vpack.c.b16 %v1165, %v1161
        %v1534 = vpack.c.b16 %v1170, %v1166
        %v1535 = vpack.c.b16 %v1171, %v1167
        %v1536 = vpack.c.b16 %v1172, %v1168
        %v1537 = vpack.c.b16 %v1173, %v1169
        %v1538 = vpack.c.b16 %v1178, %v1174
        %v1539 = vpack.c.b16 %v1179, %v1175
        %v1540 = vpack.c.b16 %v1180, %v1176
        %v1541 = vpack.c.b16 %v1181, %v1177
        %v1542 = vpack.c.b16 %v1186, %v1182
        %v1543 = vpack.c.b16 %v1187, %v1183
        %v1544 = vpack.c.b16 %v1188, %v1184
        %v1545 = vpack.c.b16 %v1189, %v1185
        %v1546 = vpack.c.b16 %v1194, %v1190
        %v1547 = vpack.c.b16 %v1195, %v1191
        %v1548 = vpack.c.b16 %v1196, %v1192
        %v1549 = vpack.c.b16 %v1197, %v1193
        %v1550 = vpack.c.b16 %v1202, %v1198
        %v1551 = vpack.c.b16 %v1203, %v1199
        %v1552 = vpack.c.b16 %v1204, %v1200
        %v1553 = vpack.c.b16 %v1205, %v1201
        %v1554 = vpack.c.b16 %v1210, %v1206
        %v1555 = vpack.c.b16 %v1211, %v1207
        %v1556 = vpack.c.b16 %v1212, %v1208
        %v1557 = vpack.c.b16 %v1213, %v1209
        %v1558 = vpack.c.b16 %v1218, %v1214
        %v1559 = vpack.c.b16 %v1219, %v1215
        %v1560 = vpack.c.b16 %v1220, %v1216
        %v1561 = vpack.c.b16 %v1221, %v1217
        %v1562 = vpack.c.b16 %v1226, %v1222
        %v1563 = vpack.c.b16 %v1227, %v1223
        %v1564 = vpack.c.b16 %v1228, %v1224
        %v1565 = vpack.c.b16 %v1229, %v1225
        %v1566 = vpack.c.b16 %v1234, %v1230
        %v1567 = vpack.c.b16 %v1235, %v1231
        %v1568 = vpack.c.b16 %v1236, %v1232
        %v1569 = vpack.c.b16 %v1237, %v1233
        %v1570 = vpack.c.b16 %v1242, %v1238
        %v1571 = vpack.c.b16 %v1243, %v1239
        %v1572 = vpack.c.b16 %v1244, %v1240
        %v1573 = vpack.c.b16 %v1245, %v1241
        %v1574 = vpack.c.b16 %v1250, %v1246
        %v1575 = vpack.c.b16 %v1251, %v1247
        %v1576 = vpack.c.b16 %v1252, %v1248
        %v1577 = vpack.c.b16 %v1253, %v1249
        %v1578 = vpack.c.b16 %v1258, %v1254
        %v1579 = vpack.c.b16 %v1259, %v1255
        %v1580 = vpack.c.b16 %v1260, %v1256
        %v1581 = vpack.c.b16 %v1261, %v1257
        %v1582 = vpack.c.b16 %v1266, %v1262
        %v1583 = vpack.c.b16 %v1267, %v1263
        %v1584 = vpack.c.b16 %v1268, %v1264
        %v1585 = vpack.c.b16 %v1269, %v1265
        %v1586 = vpack.c.b16 %v1274, %v1270
        %v1587 = vpack.c.b16 %v1275, %v1271
        %v1588 = vpack.c.b16 %v1276, %v1272
        %v1589 = vpack.c.b16 %v1277, %v1273
        %v1590 = vpack.c.b16 %v1282, %v1278
        %v1591 = vpack.c.b16 %v1283, %v1279
        %v1592 = vpack.c.b16 %v1284, %v1280
        %v1593 = vpack.c.b16 %v1285, %v1281
        %v1594 = vpack.c.b16 %v1290, %v1286
        %v1595 = vpack.c.b16 %v1291, %v1287
        %v1596 = vpack.c.b16 %v1292, %v1288
        %v1597 = vpack.c.b16 %v1293, %v1289
        %v1598 = vpack.c.b16 %v1298, %v1294
        %v1599 = vpack.c.b16 %v1299, %v1295
        %v1600 = vpack.c.b16 %v1300, %v1296
        %v1601 = vpack.c.b16 %v1301, %v1297
        %v1602 = vpack.c.b16 %v1306, %v1302
        %v1603 = vpack.c.b16 %v1307, %v1303
        %v1604 = vpack.c.b16 %v1308, %v1304
        %v1605 = vpack.c.b16 %v1309, %v1305
        %v1606 = vpack.c.b16 %v1314, %v1310
        %v1607 = vpack.c.b16 %v1315, %v1311
        %v1608 = vpack.c.b16 %v1316, %v1312
        %v1609 = vpack.c.b16 %v1317, %v1313
        %v1610 = vpack.c.b16 %v1322, %v1318
        %v1611 = vpack.c.b16 %v1323, %v1319
        %v1612 = vpack.c.b16 %v1324, %v1320
        %v1613 = vpack.c.b16 %v1325, %v1321
        %v1614 = vpack.c.b16 %v1330, %v1326
        %v1615 = vpack.c.b16 %v1331, %v1327
        %v1616 = vpack.c.b16 %v1332, %v1328
        %v1617 = vpack.c.b16 %v1333, %v1329
        %v1618 = vpack.c.b16 %v1338, %v1334
        %v1619 = vpack.c.b16 %v1339, %v1335
        %v1620 = vpack.c.b16 %v1340, %v1336
        %v1621 = vpack.c.b16 %v1341, %v1337
        %v1622 = vpack.c.b16 %v1346, %v1342
        %v1623 = vpack.c.b16 %v1347, %v1343
        %v1624 = vpack.c.b16 %v1348, %v1344
        %v1625 = vpack.c.b16 %v1349, %v1345
        %v1626 = vpack.c.b16 %v1354, %v1350
        %v1627 = vpack.c.b16 %v1355, %v1351
        %v1628 = vpack.c.b16 %v1356, %v1352
        %v1629 = vpack.c.b16 %v1357, %v1353
        %v1630 = vpack.c.b16 %v1362, %v1358
        %v1631 = vpack.c.b16 %v1363, %v1359
        %v1632 = vpack.c.b16 %v1364, %v1360
        %v1633 = vpack.c.b16 %v1365, %v1361
        %v1634 = vpack.c.b16 %v1370, %v1366
        %v1635 = vpack.c.b16 %v1371, %v1367
        %v1636 = vpack.c.b16 %v1372, %v1368
        %v1637 = vpack.c.b16 %v1373, %v1369
        %v1638 = vpack.c.b16 %v1378, %v1374
        %v1639 = vpack.c.b16 %v1379, %v1375
        %v1640 = vpack.c.b16 %v1380, %v1376
        %v1641 = vpack.c.b16 %v1381, %v1377
        %v1642 = vpack.c.b16 %v1386, %v1382
        %v1643 = vpack.c.b16 %v1387, %v1383
        %v1644 = vpack.c.b16 %v1388, %v1384
        %v1645 = vpack.c.b16 %v1389, %v1385
        %v1646 = vpack.c.b16 %v1394, %v1390
        %v1647 = vpack.c.b16 %v1395, %v1391
        %v1648 = vpack.c.b16 %v1396, %v1392
        %v1649 = vpack.c.b16 %v1397, %v1393
        %v1650 = vpack.c.b16 %v1402, %v1398
        %v1651 = vpack.c.b16 %v1403, %v1399
        %v1652 = vpack.c.b16 %v1404, %v1400
        %v1653 = vpack.c.b16 %v1405, %v1401
        %v1654 = vpack.c.b16 %v1410, %v1406
        %v1655 = vpack.c.b16 %v1411, %v1407
        %v1656 = vpack.c.b16 %v1412, %v1408
        %v1657 = vpack.c.b16 %v1413, %v1409
        %v1658 = vpack.c.b16 %v1418, %v1414
        %v1659 = vpack.c.b16 %v1419, %v1415
        %v1660 = vpack.c.b16 %v1420, %v1416
        %v1661 = vpack.c.b16 %v1421, %v1417
        %v1662 = vpack.c.b16 %v1426, %v1422
        %v1663 = vpack.c.b16 %v1427, %v1423
        %v1664 = vpack.c.b16 %v1428, %v1424
        %v1665 = vpack.c.b16 %v1429, %v1425
        %v1666 = vpack.c.b16 %v1434, %v1430
        %v1667 = vpack.c.b16 %v1435, %v1431
        %v1668 = vpack.c.b16 %v1436, %v1432
        %v1669 = vpack.c.b16 %v1437, %v1433
        %v1670 = vpack.c.b16 %v1442, %v1438
        %v1671 = vpack.c.b16 %v1443, %v1439
        %v1672 = vpack.c.b16 %v1444, %v1440
        %v1673 = vpack.c.b16 %v1445, %v1441
        %v1674 = vpack.c.b16 %v1450, %v1446
        %v1675 = vpack.c.b16 %v1451, %v1447
        %v1676 = vpack.c.b16 %v1452, %v1448
        %v1677 = vpack.c.b16 %v1453, %v1449
        %1902 = vmatprep.subr.bf16.mxu0 %v1455
        %1903 = vmatpush1.bf16.msra.mxu0 %v1454
        %1904 = vmatprep.subr.bf16.mxu0 %v1459
        %1905 = vmatpush1.bf16.msra.mxu0 %v1458
        %1906 = vmatprep.subr.bf16.mxu0 %v1463
        %1907 = vmatpush1.bf16.msra.mxu0 %v1462
        %1908 = vmatprep.subr.bf16.mxu0 %v1467
        %1909 = vmatpush1.bf16.msra.mxu0 %v1466
        %1910 = vmatprep.subr.bf16.mxu0 %v1471
        %1911 = vmatpush1.bf16.msra.mxu0 %v1470
        %1912 = vmatprep.subr.bf16.mxu0 %v1475
        %1913 = vmatpush1.bf16.msra.mxu0 %v1474
        %1914 = vmatprep.subr.bf16.mxu0 %v1479
        %1915 = vmatpush1.bf16.msra.mxu0 %v1478
        %1916 = vmatprep.subr.bf16.mxu0 %v1483
        %1917 = vmatpush1.bf16.msra.mxu0 %v1482
        %1918 = vmatprep.subr.bf16.mxu0 %v1487
        %1919 = vmatpush1.bf16.msra.mxu0 %v1486
        %1920 = vmatprep.subr.bf16.mxu0 %v1491
        %1921 = vmatpush1.bf16.msra.mxu0 %v1490
        %1922 = vmatprep.subr.bf16.mxu0 %v1495
        %1923 = vmatpush1.bf16.msra.mxu0 %v1494
        %1924 = vmatprep.subr.bf16.mxu0 %v1499
        %1925 = vmatpush1.bf16.msra.mxu0 %v1498
        %1926 = vmatprep.subr.bf16.mxu0 %v1503
        %1927 = vmatpush1.bf16.msra.mxu0 %v1502
        %1928 = vmatprep.subr.bf16.mxu0 %v1507
        %1929 = vmatpush1.bf16.msra.mxu0 %v1506
        %1930 = vmatprep.subr.bf16.mxu0 %v1511
        %1931 = vmatpush1.bf16.msra.mxu0 %v1510
        %1932 = vmatprep.subr.bf16.mxu0 %v1515
        %1933 = vmatpush1.bf16.msra.mxu0 %v1514
        %1934 = vmatprep.mubr.bf16.mxu0 %v764
        %1935 = vmatmul.mubr.bf16.gmra.mrb[0].mxu0 %v750
        %v1936 = vpop.f32.mrb[0].mxu0
        %v1937 = vadd.f32 0.0, %v1936
        %v1938 = vpop.f32.mrb[0].mxu0
        %v1939 = vadd.f32 0.0, %v1938
        %v1940 = vpop.f32.mrb[0].mxu0
        %v1941 = vpop.f32.mrb[0].mxu0
        %1942 = vdwg.mxu0
        %1943 = vmatprep.subr.bf16.mxu0 %v1519
        %1944 = vmatpush1.bf16.msra.mxu0 %v1518
        %1945 = vmatprep.subr.bf16.mxu0 %v1523
        %1946 = vmatpush1.bf16.msra.mxu0 %v1522
        %1947 = vmatprep.subr.bf16.mxu0 %v1527
        %1948 = vmatpush1.bf16.msra.mxu0 %v1526
        %1949 = vmatprep.subr.bf16.mxu0 %v1531
        %1950 = vmatpush1.bf16.msra.mxu0 %v1530
        %1951 = vmatprep.subr.bf16.mxu0 %v1535
        %1952 = vmatpush1.bf16.msra.mxu0 %v1534
        %1953 = vmatprep.subr.bf16.mxu0 %v1539
        %1954 = vmatpush1.bf16.msra.mxu0 %v1538
        %1955 = vmatprep.subr.bf16.mxu0 %v1543
        %1956 = vmatpush1.bf16.msra.mxu0 %v1542
        %1957 = vmatprep.subr.bf16.mxu0 %v1547
        %1958 = vmatpush1.bf16.msra.mxu0 %v1546
        %1959 = vmatprep.subr.bf16.mxu0 %v1551
        %1960 = vmatpush1.bf16.msra.mxu0 %v1550
        %1961 = vmatprep.subr.bf16.mxu0 %v1555
        %1962 = vmatpush1.bf16.msra.mxu0 %v1554
        %1963 = vmatprep.subr.bf16.mxu0 %v1559
        %1964 = vmatpush1.bf16.msra.mxu0 %v1558
        %1965 = vmatprep.subr.bf16.mxu0 %v1563
        %1966 = vmatpush1.bf16.msra.mxu0 %v1562
        %1967 = vmatprep.subr.bf16.mxu0 %v1567
        %1968 = vmatpush1.bf16.msra.mxu0 %v1566
        %1969 = vmatprep.subr.bf16.mxu0 %v1571
        %1970 = vmatpush1.bf16.msra.mxu0 %v1570
        %1971 = vmatprep.subr.bf16.mxu0 %v1575
        %1972 = vmatpush1.bf16.msra.mxu0 %v1574
        %1973 = vmatprep.subr.bf16.mxu0 %v1579
        %1974 = vmatpush1.bf16.msra.mxu0 %v1578
        %1975 = vmatprep.mubr.bf16.mxu0 %v774
        %1976 = vmatmul.mubr.bf16.gmra.mrb[0].mxu0 %v772
        %v1977 = vpop.f32.mrb[0].mxu0
        %v1978 = vadd.f32 %v1937, %v1977
        %v1979 = vpop.f32.mrb[0].mxu0
        %v1980 = vadd.f32 %v1939, %v1979
        %v1981 = vpop.f32.mrb[0].mxu0
        %v1982 = vpop.f32.mrb[0].mxu0
        %1983 = vdwg.mxu0
        %1984 = vmatprep.subr.bf16.mxu0 %v1583
        %1985 = vmatpush1.bf16.msra.mxu0 %v1582
        %1986 = vmatprep.subr.bf16.mxu0 %v1587
        %1987 = vmatpush1.bf16.msra.mxu0 %v1586
        %1988 = vmatprep.subr.bf16.mxu0 %v1591
        %1989 = vmatpush1.bf16.msra.mxu0 %v1590
        %1990 = vmatprep.subr.bf16.mxu0 %v1595
        %1991 = vmatpush1.bf16.msra.mxu0 %v1594
        %1992 = vmatprep.subr.bf16.mxu0 %v1599
        %1993 = vmatpush1.bf16.msra.mxu0 %v1598
        %1994 = vmatprep.subr.bf16.mxu0 %v1603
        %1995 = vmatpush1.bf16.msra.mxu0 %v1602
        %1996 = vmatprep.subr.bf16.mxu0 %v1607
        %1997 = vmatpush1.bf16.msra.mxu0 %v1606
        %1998 = vmatprep.subr.bf16.mxu0 %v1611
        %1999 = vmatpush1.bf16.msra.mxu0 %v1610
        %2000 = vmatprep.subr.bf16.mxu0 %v1615
        %2001 = vmatpush1.bf16.msra.mxu0 %v1614
        %2002 = vmatprep.subr.bf16.mxu0 %v1619
        %2003 = vmatpush1.bf16.msra.mxu0 %v1618
        %2004 = vmatprep.subr.bf16.mxu0 %v1623
        %2005 = vmatpush1.bf16.msra.mxu0 %v1622
        %2006 = vmatprep.subr.bf16.mxu0 %v1627
        %2007 = vmatpush1.bf16.msra.mxu0 %v1626
        %2008 = vmatprep.subr.bf16.mxu0 %v1631
        %2009 = vmatpush1.bf16.msra.mxu0 %v1630
        %2010 = vmatprep.subr.bf16.mxu0 %v1635
        %2011 = vmatpush1.bf16.msra.mxu0 %v1634
        %2012 = vmatprep.subr.bf16.mxu0 %v1639
        %2013 = vmatpush1.bf16.msra.mxu0 %v1638
        %2014 = vmatprep.subr.bf16.mxu0 %v1643
        %2015 = vmatpush1.bf16.msra.mxu0 %v1642
        %2016 = vmatprep.mubr.bf16.mxu0 %v771
        %2017 = vmatmul.mubr.bf16.gmra.mrb[0].mxu0 %v757
        %v2018 = vpop.f32.mrb[0].mxu0
        %v2019 = vadd.f32 %v1978, %v2018
        %v2020 = vpop.f32.mrb[0].mxu0
        %v2021 = vadd.f32 %v1980, %v2020
        %v2022 = vpop.f32.mrb[0].mxu0
        %v2023 = vpop.f32.mrb[0].mxu0
        %2024 = vdwg.mxu0
        %2025 = vmatprep.subr.bf16.mxu0 %v1647
        %2026 = vmatpush1.bf16.msra.mxu0 %v1646
        %2027 = vmatprep.subr.bf16.mxu0 %v1651
        %2028 = vmatpush1.bf16.msra.mxu0 %v1650
        %2029 = vmatprep.subr.bf16.mxu0 %v1655
        %2030 = vmatpush1.bf16.msra.mxu0 %v1654
        %2031 = vmatprep.subr.bf16.mxu0 %v1659
        %2032 = vmatpush1.bf16.msra.mxu0 %v1658
        %2033 = vmatprep.subr.bf16.mxu0 %v1663
        %2034 = vmatpush1.bf16.msra.mxu0 %v1662
        %2035 = vmatprep.subr.bf16.mxu0 %v1667
        %2036 = vmatpush1.bf16.msra.mxu0 %v1666
        %2037 = vmatprep.subr.bf16.mxu0 %v1671
        %2038 = vmatpush1.bf16.msra.mxu0 %v1670
        %2039 = vmatprep.subr.bf16.mxu0 %v1675
        %2040 = vmatpush1.bf16.msra.mxu0 %v1674
        %2041 = vmatprep.subr.bf16.mxu0 0
        %2042 = vmatpush1.bf16.msra.mxu0 0
        %2043 = vmatprep.subr.bf16.mxu0 0
        %2044 = vmatpush1.bf16.msra.mxu0 0
        %2045 = vmatprep.subr.bf16.mxu0 0
        %2046 = vmatpush1.bf16.msra.mxu0 0
        %2047 = vmatprep.subr.bf16.mxu0 0
        %2048 = vmatpush1.bf16.msra.mxu0 0
        %2049 = vmatprep.subr.bf16.mxu0 0
        %2050 = vmatpush1.bf16.msra.mxu0 0
        %2051 = vmatprep.subr.bf16.mxu0 0
        %2052 = vmatpush1.bf16.msra.mxu0 0
        %2053 = vmatprep.subr.bf16.mxu0 0
        %2054 = vmatpush1.bf16.msra.mxu0 0
        %2055 = vmatprep.subr.bf16.mxu0 0
        %2056 = vmatpush1.bf16.msra.mxu0 0
        %2057 = vmatprep.mubr.bf16.mxu0 0
        %2058 = vmatmul.mubr.bf16.gmra.mrb[0].mxu0 %v773
        %v2059 = vpop.f32.mrb[0].mxu0
        %v2060 = vadd.f32 %v2019, %v2059
        %v2061 = vpop.f32.mrb[0].mxu0
        %v2062 = vadd.f32 %v2021, %v2061
        %v2063 = vpop.f32.mrb[0].mxu0
        %v2064 = vpop.f32.mrb[0].mxu0
        %2065 = vdwg.mxu0
        %2066 = vmatprep.subr.bf16.mxu0 %v1457
        %2067 = vmatpush1.bf16.msra.mxu0 %v1456
        %2068 = vmatprep.subr.bf16.mxu0 %v1461
        %2069 = vmatpush1.bf16.msra.mxu0 %v1460
        %2070 = vmatprep.subr.bf16.mxu0 %v1465
        %2071 = vmatpush1.bf16.msra.mxu0 %v1464
        %2072 = vmatprep.subr.bf16.mxu0 %v1469
        %2073 = vmatpush1.bf16.msra.mxu0 %v1468
        %2074 = vmatprep.subr.bf16.mxu0 %v1473
        %2075 = vmatpush1.bf16.msra.mxu0 %v1472
        %2076 = vmatprep.subr.bf16.mxu0 %v1477
        %2077 = vmatpush1.bf16.msra.mxu0 %v1476
        %2078 = vmatprep.subr.bf16.mxu0 %v1481
        %2079 = vmatpush1.bf16.msra.mxu0 %v1480
        %2080 = vmatprep.subr.bf16.mxu0 %v1485
        %2081 = vmatpush1.bf16.msra.mxu0 %v1484
        %2082 = vmatprep.subr.bf16.mxu0 %v1489
        %2083 = vmatpush1.bf16.msra.mxu0 %v1488
        %2084 = vmatprep.subr.bf16.mxu0 %v1493
        %2085 = vmatpush1.bf16.msra.mxu0 %v1492
        %2086 = vmatprep.subr.bf16.mxu0 %v1497
        %2087 = vmatpush1.bf16.msra.mxu0 %v1496
        %2088 = vmatprep.subr.bf16.mxu0 %v1501
        %2089 = vmatpush1.bf16.msra.mxu0 %v1500
        %2090 = vmatprep.subr.bf16.mxu0 %v1505
        %2091 = vmatpush1.bf16.msra.mxu0 %v1504
        %2092 = vmatprep.subr.bf16.mxu0 %v1509
        %2093 = vmatpush1.bf16.msra.mxu0 %v1508
        %2094 = vmatprep.subr.bf16.mxu0 %v1513
        %2095 = vmatpush1.bf16.msra.mxu0 %v1512
        %2096 = vmatprep.subr.bf16.mxu0 %v1517
        %2097 = vmatpush1.bf16.msra.mxu0 %v1516
        %2098 = vmatprep.mubr.bf16.mxu0 %v764
        %2099 = vmatmul.mubr.bf16.gmra.mrb[0].mxu0 %v750
        %v2100 = vpop.f32.mrb[0].mxu0
        %v2101 = vadd.f32 0.0, %v2100
        %v2102 = vpop.f32.mrb[0].mxu0
        %v2103 = vadd.f32 0.0, %v2102
        %v2104 = vpop.f32.mrb[0].mxu0
        %v2105 = vpop.f32.mrb[0].mxu0
        %2106 = vdwg.mxu0
        %2107 = vmatprep.subr.bf16.mxu0 %v1521
        %2108 = vmatpush1.bf16.msra.mxu0 %v1520
        %2109 = vmatprep.subr.bf16.mxu0 %v1525
        %2110 = vmatpush1.bf16.msra.mxu0 %v1524
        %2111 = vmatprep.subr.bf16.mxu0 %v1529
        %2112 = vmatpush1.bf16.msra.mxu0 %v1528
        %2113 = vmatprep.subr.bf16.mxu0 %v1533
        %2114 = vmatpush1.bf16.msra.mxu0 %v1532
        %2115 = vmatprep.subr.bf16.mxu0 %v1537
        %2116 = vmatpush1.bf16.msra.mxu0 %v1536
        %2117 = vmatprep.subr.bf16.mxu0 %v1541
        %2118 = vmatpush1.bf16.msra.mxu0 %v1540
        %2119 = vmatprep.subr.bf16.mxu0 %v1545
        %2120 = vmatpush1.bf16.msra.mxu0 %v1544
        %2121 = vmatprep.subr.bf16.mxu0 %v1549
        %2122 = vmatpush1.bf16.msra.mxu0 %v1548
        %2123 = vmatprep.subr.bf16.mxu0 %v1553
        %2124 = vmatpush1.bf16.msra.mxu0 %v1552
        %2125 = vmatprep.subr.bf16.mxu0 %v1557
        %2126 = vmatpush1.bf16.msra.mxu0 %v1556
        %2127 = vmatprep.subr.bf16.mxu0 %v1561
        %2128 = vmatpush1.bf16.msra.mxu0 %v1560
        %2129 = vmatprep.subr.bf16.mxu0 %v1565
        %2130 = vmatpush1.bf16.msra.mxu0 %v1564
        %2131 = vmatprep.subr.bf16.mxu0 %v1569
        %2132 = vmatpush1.bf16.msra.mxu0 %v1568
        %2133 = vmatprep.subr.bf16.mxu0 %v1573
        %2134 = vmatpush1.bf16.msra.mxu0 %v1572
        %2135 = vmatprep.subr.bf16.mxu0 %v1577
        %2136 = vmatpush1.bf16.msra.mxu0 %v1576
        %2137 = vmatprep.subr.bf16.mxu0 %v1581
        %2138 = vmatpush1.bf16.msra.mxu0 %v1580
        %2139 = vmatprep.mubr.bf16.mxu0 %v774
        %2140 = vmatmul.mubr.bf16.gmra.mrb[0].mxu0 %v772
        %v2141 = vpop.f32.mrb[0].mxu0
        %v2142 = vadd.f32 %v2101, %v2141
        %v2143 = vpop.f32.mrb[0].mxu0
        %v2144 = vadd.f32 %v2103, %v2143
        %v2145 = vpop.f32.mrb[0].mxu0
        %v2146 = vpop.f32.mrb[0].mxu0
        %2147 = vdwg.mxu0
        %2148 = vmatprep.subr.bf16.mxu0 %v1585
        %2149 = vmatpush1.bf16.msra.mxu0 %v1584
        %2150 = vmatprep.subr.bf16.mxu0 %v1589
        %2151 = vmatpush1.bf16.msra.mxu0 %v1588
        %2152 = vmatprep.subr.bf16.mxu0 %v1593
        %2153 = vmatpush1.bf16.msra.mxu0 %v1592
        %2154 = vmatprep.subr.bf16.mxu0 %v1597
        %2155 = vmatpush1.bf16.msra.mxu0 %v1596
        %2156 = vmatprep.subr.bf16.mxu0 %v1601
        %2157 = vmatpush1.bf16.msra.mxu0 %v1600
        %2158 = vmatprep.subr.bf16.mxu0 %v1605
        %2159 = vmatpush1.bf16.msra.mxu0 %v1604
        %2160 = vmatprep.subr.bf16.mxu0 %v1609
        %2161 = vmatpush1.bf16.msra.mxu0 %v1608
        %2162 = vmatprep.subr.bf16.mxu0 %v1613
        %2163 = vmatpush1.bf16.msra.mxu0 %v1612
        %2164 = vmatprep.subr.bf16.mxu0 %v1617
        %2165 = vmatpush1.bf16.msra.mxu0 %v1616
        %2166 = vmatprep.subr.bf16.mxu0 %v1621
        %2167 = vmatpush1.bf16.msra.mxu0 %v1620
        %2168 = vmatprep.subr.bf16.mxu0 %v1625
        %2169 = vmatpush1.bf16.msra.mxu0 %v1624
        %2170 = vmatprep.subr.bf16.mxu0 %v1629
        %2171 = vmatpush1.bf16.msra.mxu0 %v1628
        %2172 = vmatprep.subr.bf16.mxu0 %v1633
        %2173 = vmatpush1.bf16.msra.mxu0 %v1632
        %2174 = vmatprep.subr.bf16.mxu0 %v1637
        %2175 = vmatpush1.bf16.msra.mxu0 %v1636
        %2176 = vmatprep.subr.bf16.mxu0 %v1641
        %2177 = vmatpush1.bf16.msra.mxu0 %v1640
        %2178 = vmatprep.subr.bf16.mxu0 %v1645
        %2179 = vmatpush1.bf16.msra.mxu0 %v1644
        %2180 = vmatprep.mubr.bf16.mxu0 %v771
        %2181 = vmatmul.mubr.bf16.gmra.mrb[0].mxu0 %v757
        %v2182 = vpop.f32.mrb[0].mxu0
        %v2183 = vadd.f32 %v2142, %v2182
        %v2184 = vpop.f32.mrb[0].mxu0
        %v2185 = vadd.f32 %v2144, %v2184
        %v2186 = vpop.f32.mrb[0].mxu0
        %v2187 = vpop.f32.mrb[0].mxu0
        %2188 = vdwg.mxu0
        %2189 = vmatprep.subr.bf16.mxu0 %v1649
        %2190 = vmatpush1.bf16.msra.mxu0 %v1648
        %2191 = vmatprep.subr.bf16.mxu0 %v1653
        %2192 = vmatpush1.bf16.msra.mxu0 %v1652
        %2193 = vmatprep.subr.bf16.mxu0 %v1657
        %2194 = vmatpush1.bf16.msra.mxu0 %v1656
        %2195 = vmatprep.subr.bf16.mxu0 %v1661
        %2196 = vmatpush1.bf16.msra.mxu0 %v1660
        %2197 = vmatprep.subr.bf16.mxu0 %v1665
        %2198 = vmatpush1.bf16.msra.mxu0 %v1664
        %2199 = vmatprep.subr.bf16.mxu0 %v1669
        %2200 = vmatpush1.bf16.msra.mxu0 %v1668
        %2201 = vmatprep.subr.bf16.mxu0 %v1673
        %2202 = vmatpush1.bf16.msra.mxu0 %v1672
        %2203 = vmatprep.subr.bf16.mxu0 %v1677
        %2204 = vmatpush1.bf16.msra.mxu0 %v1676
        %2205 = vmatprep.subr.bf16.mxu0 0
        %2206 = vmatpush1.bf16.msra.mxu0 0
        %2207 = vmatprep.subr.bf16.mxu0 0
        %2208 = vmatpush1.bf16.msra.mxu0 0
        %2209 = vmatprep.subr.bf16.mxu0 0
        %2210 = vmatpush1.bf16.msra.mxu0 0
        %2211 = vmatprep.subr.bf16.mxu0 0
        %2212 = vmatpush1.bf16.msra.mxu0 0
        %2213 = vmatprep.subr.bf16.mxu0 0
        %2214 = vmatpush1.bf16.msra.mxu0 0
        %2215 = vmatprep.subr.bf16.mxu0 0
        %2216 = vmatpush1.bf16.msra.mxu0 0
        %2217 = vmatprep.subr.bf16.mxu0 0
        %2218 = vmatpush1.bf16.msra.mxu0 0
        %2219 = vmatprep.subr.bf16.mxu0 0
        %2220 = vmatpush1.bf16.msra.mxu0 0
        %2221 = vmatprep.mubr.bf16.mxu0 0
        %2222 = vmatmul.mubr.bf16.gmra.mrb[0].mxu0 %v773
        %v2223 = vpop.f32.mrb[0].mxu0
        %v2224 = vadd.f32 %v2183, %v2223
        %v2225 = vpop.f32.mrb[0].mxu0
        %v2226 = vadd.f32 %v2185, %v2225
        %v2227 = vpop.f32.mrb[0].mxu0
        %v2228 = vpop.f32.mrb[0].mxu0
        %2229 = vdwg.mxu0
        %v2234 = vcombine.low %v2060, %v2062
        %v2235 = vcombine.low %v2224, %v2226
        %v2237 = vunpack.c.l.s4 1983009808
        %v2238 = vunpack.c.0.s8 %v2237
        %v2239 = vlaneseq
        %v2240 = vshrl.u32 %v2239, 7
        %v2241 = vsub.s32 %v2238, %v2240
        %v2242 = vrot.slane %v2234, %v2241
        %v2244 = vunpack.c.l.s4 1983009808
        %v2245 = vunpack.c.0.s8 %v2244
        %v2246 = vlaneseq
        %v2247 = vshrl.u32 %v2246, 7
        %v2248 = vsub.s32 %v2245, %v2247
        %v2249 = vrot.slane %v2235, %v2248
        %v2250 = vcombine.low %v2242, %v2249
        %v2252 = vadd.f32 %v500, %v2250
        %2253 = vst [vmem:[#allocation2] sm:$0xff] %v2252
        %p2254 = scmp.eq.s32.totalorder %s31, 6
        // Predicated region
        $region69: #{discriminator_forward.5} parent=43 // pred_check
          %p2255 = pneg %p2254
        $region70: #{discriminator_forward.5} parent=43 // pred_check_branch
          %2257 = sbr.rel (%p2255) target = $region72
        $region71: #{discriminator_forward.5} parent=43 // pred_region
          %v2258 = vld [vmem:[#allocation2] sm:$0xff]
          %v2260 = vcombine.high %v2258, %v2258
          %v2262 = vunpack.c.l.s4 1983009808
          %v2263 = vunpack.c.0.s8 %v2262
          %v2264 = vlaneseq
          %v2265 = vshrl.u32 %v2264, 7
          %v2266 = vsub.s32 %v2263, %v2265
          %v2267 = vrot.slane %v2258, %v2266
          %v2269 = vunpack.c.l.s4 1983009808
          %v2270 = vunpack.c.0.s8 %v2269
          %v2271 = vlaneseq
          %v2272 = vshrl.u32 %v2271, 7
          %v2273 = vsub.s32 %v2270, %v2272
          %v2274 = vrot.slane %v2260, %v2273
          %v2275 = vcombine.high %v2267, %v2267
          %v2276 = vcombine.high %v2274, %v2274
          %vm2281 = vcmask 1041408
          %v2282 = vsel %vm2281, %v2267, 0.0
          %v2283 = vrot.slane %v2282, 4
          %v2284 = vadd.f32 %v2282, %v2283
          %v2285 = vrot.slane %v2284, 2
          %v2286 = vadd.f32 %v2284, %v2285
          %v2287 = vrot.slane %v2286, 1
          %v2288 = vadd.f32 %v2286, %v2287
          %v2289 = vsel %vm2281, %v2275, 0.0
          %v2290 = vrot.slane %v2289, 4
          %v2291 = vadd.f32 %v2289, %v2290
          %v2292 = vrot.slane %v2291, 2
          %v2293 = vadd.f32 %v2291, %v2292
          %v2294 = vrot.slane %v2293, 1
          %v2295 = vadd.f32 %v2293, %v2294
          %v2296 = vsel %vm2281, %v2274, 0.0
          %v2297 = vrot.slane %v2296, 4
          %v2298 = vadd.f32 %v2296, %v2297
          %v2299 = vrot.slane %v2298, 2
          %v2300 = vadd.f32 %v2298, %v2299
          %v2301 = vrot.slane %v2300, 1
          %v2302 = vadd.f32 %v2300, %v2301
          %v2303 = vsel %vm2281, %v2276, 0.0
          %v2304 = vrot.slane %v2303, 4
          %v2305 = vadd.f32 %v2303, %v2304
          %v2306 = vrot.slane %v2305, 2
          %v2307 = vadd.f32 %v2305, %v2306
          %v2308 = vrot.slane %v2307, 1
          %v2309 = vadd.f32 %v2307, %v2308
          %v2310 = vrcp.pop 2.0
          %v2311 = vmul.f32 %v2288, %v2310
          %v2312 = vmul.f32 %v2295, %v2310
          %v2313 = vmul.f32 %v2302, %v2310
          %v2314 = vmul.f32 %v2309, %v2310
          %v2319 = vcombine.low %v2311, %v2312
          %v2320 = vcombine.low %v2313, %v2314
          %v2322 = vunpack.c.l.s4 1983009808
          %v2323 = vunpack.c.0.s8 %v2322
          %v2324 = vlaneseq
          %v2325 = vshrl.u32 %v2324, 7
          %v2326 = vsub.s32 %v2323, %v2325
          %v2327 = vrot.slane %v2319, %v2326
          %v2329 = vunpack.c.l.s4 1983009808
          %v2330 = vunpack.c.0.s8 %v2329
          %v2331 = vlaneseq
          %v2332 = vshrl.u32 %v2331, 7
          %v2333 = vsub.s32 %v2330, %v2332
          %v2334 = vrot.slane %v2320, %v2333
          %v2335 = vcombine.low %v2327, %v2334
          %v2337 = vsub.f32 %v2258, %v2335
          %v2338 = vmul.f32 %v2337, %v2337
          %v2340 = vcombine.high %v2338, %v2338
          %v2342 = vunpack.c.l.s4 1983009808
          %v2343 = vunpack.c.0.s8 %v2342
          %v2344 = vlaneseq
          %v2345 = vshrl.u32 %v2344, 7
          %v2346 = vsub.s32 %v2343, %v2345
          %v2347 = vrot.slane %v2338, %v2346
          %v2349 = vunpack.c.l.s4 1983009808
          %v2350 = vunpack.c.0.s8 %v2349
          %v2351 = vlaneseq
          %v2352 = vshrl.u32 %v2351, 7
          %v2353 = vsub.s32 %v2350, %v2352
          %v2354 = vrot.slane %v2340, %v2353
          %v2355 = vcombine.high %v2347, %v2347
          %v2356 = vcombine.high %v2354, %v2354
          %v2361 = vsel %vm2281, %v2347, 0.0
          %v2362 = vrot.slane %v2361, 4
          %v2363 = vadd.f32 %v2361, %v2362
          %v2364 = vrot.slane %v2363, 2
          %v2365 = vadd.f32 %v2363, %v2364
          %v2366 = vrot.slane %v2365, 1
          %v2367 = vadd.f32 %v2365, %v2366
          %v2368 = vsel %vm2281, %v2355, 0.0
          %v2369 = vrot.slane %v2368, 4
          %v2370 = vadd.f32 %v2368, %v2369
          %v2371 = vrot.slane %v2370, 2
          %v2372 = vadd.f32 %v2370, %v2371
          %v2373 = vrot.slane %v2372, 1
          %v2374 = vadd.f32 %v2372, %v2373
          %v2375 = vsel %vm2281, %v2354, 0.0
          %v2376 = vrot.slane %v2375, 4
          %v2377 = vadd.f32 %v2375, %v2376
          %v2378 = vrot.slane %v2377, 2
          %v2379 = vadd.f32 %v2377, %v2378
          %v2380 = vrot.slane %v2379, 1
          %v2381 = vadd.f32 %v2379, %v2380
          %v2382 = vsel %vm2281, %v2356, 0.0
          %v2383 = vrot.slane %v2382, 4
          %v2384 = vadd.f32 %v2382, %v2383
          %v2385 = vrot.slane %v2384, 2
          %v2386 = vadd.f32 %v2384, %v2385
          %v2387 = vrot.slane %v2386, 1
          %v2388 = vadd.f32 %v2386, %v2387
          %v2389 = vmul.f32 %v2367, %v2310
          %v2390 = vmul.f32 %v2374, %v2310
          %v2391 = vmul.f32 %v2381, %v2310
          %v2392 = vmul.f32 %v2388, %v2310
          %v2393 = vadd.f32 %v2389, 1e-05
          %v2394 = vadd.f32 %v2390, 1e-05
          %v2395 = vadd.f32 %v2391, 1e-05
          %v2396 = vadd.f32 %v2392, 1e-05
          %v2397 = vrsqrt.pop %v2393
          %v2398 = vrsqrt.pop %v2394
          %v2399 = vrsqrt.pop %v2395
          %v2400 = vrsqrt.pop %v2396
          %v2405 = vcombine.low %v2397, %v2398
          %v2406 = vcombine.low %v2399, %v2400
          %v2408 = vunpack.c.l.s4 1983009808
          %v2409 = vunpack.c.0.s8 %v2408
          %v2410 = vlaneseq
          %v2411 = vshrl.u32 %v2410, 7
          %v2412 = vsub.s32 %v2409, %v2411
          %v2413 = vrot.slane %v2405, %v2412
          %v2415 = vunpack.c.l.s4 1983009808
          %v2416 = vunpack.c.0.s8 %v2415
          %v2417 = vlaneseq
          %v2418 = vshrl.u32 %v2417, 7
          %v2419 = vsub.s32 %v2416, %v2418
          %v2420 = vrot.slane %v2406, %v2419
          %v2421 = vcombine.low %v2413, %v2420
          %v2423 = vmul.f32 %v2337, %v2421
          %v2424 = vld [vmem:[%s373] sm:$0xf]
          %v2426 = vlaneseq
          %v2427 = vshrl.u32 %v2426, 7
          %v2428 = vsub.s32 0, %v2427
          %v2429 = vrot.slane %v2424, %v2428
          %v2430 = vlaneseq
          %v2431 = vshrl.u32 %v2430, 7
          %v2432 = vsub.s32 1, %v2431
          %v2433 = vrot.slane %v2424, %v2432
          %v2434 = vlaneseq
          %v2435 = vshrl.u32 %v2434, 7
          %v2436 = vsub.s32 2, %v2435
          %v2437 = vrot.slane %v2424, %v2436
          %v2438 = vlaneseq
          %v2439 = vshrl.u32 %v2438, 7
          %v2440 = vsub.s32 3, %v2439
          %v2441 = vrot.slane %v2424, %v2440
          %v2442 = vcombine.low %v2429, %v2433
          %v2443 = vcombine.low %v2437, %v2441
          %v2445 = vunpack.c.l.s4 1983009808
          %v2446 = vunpack.c.0.s8 %v2445
          %v2447 = vlaneseq
          %v2448 = vshrl.u32 %v2447, 7
          %v2449 = vsub.s32 %v2446, %v2448
          %v2450 = vrot.slane %v2442, %v2449
          %v2452 = vunpack.c.l.s4 1983009808
          %v2453 = vunpack.c.0.s8 %v2452
          %v2454 = vlaneseq
          %v2455 = vshrl.u32 %v2454, 7
          %v2456 = vsub.s32 %v2453, %v2455
          %v2457 = vrot.slane %v2443, %v2456
          %v2458 = vcombine.low %v2450, %v2457
          %v2460 = vmul.f32 %v2423, %v2458
          %v2461 = vld [vmem:[%s382] sm:$0xf]
          %v2463 = vlaneseq
          %v2464 = vshrl.u32 %v2463, 7
          %v2465 = vsub.s32 0, %v2464
          %v2466 = vrot.slane %v2461, %v2465
          %v2467 = vlaneseq
          %v2468 = vshrl.u32 %v2467, 7
          %v2469 = vsub.s32 1, %v2468
          %v2470 = vrot.slane %v2461, %v2469
          %v2471 = vlaneseq
          %v2472 = vshrl.u32 %v2471, 7
          %v2473 = vsub.s32 2, %v2472
          %v2474 = vrot.slane %v2461, %v2473
          %v2475 = vlaneseq
          %v2476 = vshrl.u32 %v2475, 7
          %v2477 = vsub.s32 3, %v2476
          %v2478 = vrot.slane %v2461, %v2477
          %v2479 = vcombine.low %v2466, %v2470
          %v2480 = vcombine.low %v2474, %v2478
          %v2482 = vunpack.c.l.s4 1983009808
          %v2483 = vunpack.c.0.s8 %v2482
          %v2484 = vlaneseq
          %v2485 = vshrl.u32 %v2484, 7
          %v2486 = vsub.s32 %v2483, %v2485
          %v2487 = vrot.slane %v2479, %v2486
          %v2489 = vunpack.c.l.s4 1983009808
          %v2490 = vunpack.c.0.s8 %v2489
          %v2491 = vlaneseq
          %v2492 = vshrl.u32 %v2491, 7
          %v2493 = vsub.s32 %v2490, %v2492
          %v2494 = vrot.slane %v2480, %v2493
          %v2495 = vcombine.low %v2487, %v2494
          %v2497 = vadd.f32 %v2460, %v2495
          %vm2498 = vcmp.ge.f32.partialorder %v2497, 0.0
          %v2499 = vmul.f32 %v2497, 0.2
          %v2500 = vsel %vm2498, %v2497, %v2499
          %v2501 = vld [vmem:[%s391] sm:$0xf]
          %v2503 = vlaneseq
          %v2504 = vshrl.u32 %v2503, 7
          %v2505 = vsub.s32 0, %v2504
          %v2506 = vrot.slane %v2501, %v2505
          %v2507 = vlaneseq
          %v2508 = vshrl.u32 %v2507, 7
          %v2509 = vsub.s32 1, %v2508
          %v2510 = vrot.slane %v2501, %v2509
          %v2511 = vlaneseq
          %v2512 = vshrl.u32 %v2511, 7
          %v2513 = vsub.s32 2, %v2512
          %v2514 = vrot.slane %v2501, %v2513
          %v2515 = vlaneseq
          %v2516 = vshrl.u32 %v2515, 7
          %v2517 = vsub.s32 3, %v2516
          %v2518 = vrot.slane %v2501, %v2517
          %v2519 = vcombine.low %v2506, %v2510
          %v2520 = vcombine.low %v2514, %v2518
          %v2522 = vunpack.c.l.s4 1983009808
          %v2523 = vunpack.c.0.s8 %v2522
          %v2524 = vlaneseq
          %v2525 = vshrl.u32 %v2524, 7
          %v2526 = vsub.s32 %v2523, %v2525
          %v2527 = vrot.slane %v2519, %v2526
          %v2529 = vunpack.c.l.s4 1983009808
          %v2530 = vunpack.c.0.s8 %v2529
          %v2531 = vlaneseq
          %v2532 = vshrl.u32 %v2531, 7
          %v2533 = vsub.s32 %v2530, %v2532
          %v2534 = vrot.slane %v2520, %v2533
          %v2535 = vcombine.low %v2527, %v2534
          %v2537 = vmul.f32 %v2500, %v2535
          %v2539 = vcombine.high %v2537, %v2537
          %v2541 = vunpack.c.l.s4 1983009808
          %v2542 = vunpack.c.0.s8 %v2541
          %v2543 = vlaneseq
          %v2544 = vshrl.u32 %v2543, 7
          %v2545 = vsub.s32 %v2542, %v2544
          %v2546 = vrot.slane %v2537, %v2545
          %v2548 = vunpack.c.l.s4 1983009808
          %v2549 = vunpack.c.0.s8 %v2548
          %v2550 = vlaneseq
          %v2551 = vshrl.u32 %v2550, 7
          %v2552 = vsub.s32 %v2549, %v2551
          %v2553 = vrot.slane %v2539, %v2552
          %v2554 = vcombine.high %v2546, %v2546
          %v2555 = vcombine.high %v2553, %v2553
          %v2560 = vsel %vm2281, %v2546, 0.0
          %v2561 = vsel %vm2281, %v2554, 0.0
          %v2562 = vadd.f32 %v2560, %v2561
          %v2563 = vsel %vm2281, %v2553, 0.0
          %v2564 = vadd.f32 %v2562, %v2563
          %v2565 = vsel %vm2281, %v2555, 0.0
          %v2566 = vadd.f32 %v2564, %v2565
          %2567 = vadd.xlane.f32.xlu0 %v2566
          %v2568 = vpop.xlane.xlu0 %2567
          %vm2569 = vcmask 1024
          %2570 = vst.msk [vmem:[%s457] sm:$0x3] %vm2569, %v2568
        $region72: #{discriminator_forward.5} parent=43 // pred_fallthru
          _
        %p2571 = scmp.lt.s32.totalorder %s30, 1
        %s2572 = scalar_select %p2571, %s30, 1
        %s2573 = smul.addr %s2572, 2
        %s2574 = scalar_lea.vmem %s6, %s2573
        // Predicated region
        $region73: #{discriminator_forward.5} parent=43 // pred_check
          %p2575 = pneg %p214
        $region74: #{discriminator_forward.5} parent=43 // pred_check_branch
          %2577 = sbr.rel (%p2575) target = $region76
        $region75: #{discriminator_forward.5} parent=43 // pred_region
          _
        $region76: #{discriminator_forward.5} parent=43 // pred_fallthru
          _
      $region44: #{discriminator_forward.5} parent=5 // pred_fallthru
        _
      %p2578 = scmp.le.s32.totalorder 2, %s21
      // Predicated region
      $region77: #{discriminator_forward.5} parent=5 // pred_check
        %p2579 = pneg %p2578
      $region78: #{discriminator_forward.5} parent=5 // pred_check_branch
        %2581 = sbr.rel (%p2579) target = $region80
      $region79: #{discriminator_forward.5} parent=5 // pred_region
        %s2582 = ssub.s32 %s21, 2
        // Predicated region
        $region81: #{discriminator_forward.5} parent=79 // pred_check
          %p2583 = pneg %p220
        $region82: #{discriminator_forward.5} parent=79 // pred_check_branch
          %2585 = sbr.rel (%p2583) target = $region84
        $region83: #{discriminator_forward.5} parent=79 // pred_region
          %p2586 = scmp.lt.s32.totalorder %s32, 1
          %s2587 = scalar_select %p2586, %s32, 1
          %s2588 = smul.addr %s2587, 2
          %s2589 = scalar_lea.vmem %s6, %s2588
        $region84: #{discriminator_forward.5} parent=79 // pred_fallthru
          _
      $region80: #{discriminator_forward.5} parent=5 // pred_fallthru
        _
    $region6: #{discriminator_forward.5} parent=1 // loop_footer
      %s25 = sadd.s32 1, %s21
    $region7: #{discriminator_forward.5} parent=1 // loop_footer_branch
      %20 = sbr.rel target = $region3
    $region8: #{discriminator_forward.5} parent=1 // loop_exit
      _
    %2590 = vsyncpa [#allocation4], 1
    %s2591 = scalar_lea.sflag [#allocation4], 1
    %2592 = vsyncpa %s2591, 1
    %2593 = vsyncpa [#allocation6], 1
    %s2594 = scalar_lea.sflag [#allocation6], 1
    %2595 = vsyncpa %s2594, 1
    %2596 = vsyncpa [#allocation9], 1
    %s2597 = scalar_lea.sflag [#allocation9], 1
    %2598 = vsyncpa %s2597, 1

</llo_original>
